<compile_context>
chip_gen: v7x
topology: tpu7x:2x2x1
jax: 0.10.0
libtpu: 0.0.40
codegen_flags: <defaults>
</compile_context>

<pallas_src>
import functools

import jax
import jax.numpy as jnp
from jax.experimental import pallas as pl
from jax.experimental.pallas import tpu as pltpu

MAX_LENGTH = 15
HIDDEN = 32
OUTPUT = 64
PACK = 128    # lane-dense packed output width per step: [log_softmax | h | attn | pad]
SLAB_W = 256  # weight-slab lane width (needs >= 5*HIDDEN = 160 for the fused [Wh|Wq])


def _slab_rows(hidden):
    """Row offsets of each weight block inside the packed (rows, SLAB_W) weight slab."""
    r_kv = 0                     # [Wk | Wv]            : (2H, 2H)
    r_qh = r_kv + 2 * hidden     # [Wh | Wq/H]          : (H, 5H)  gates [f,i,o,c] first
    r_o = r_qh + hidden          # Wo                   : (H, O)
    rows = r_o + hidden
    return r_kv, r_qh, r_o, rows


def attn_decoder_kernel(gx_ref, h0_ref, enc_ref, w_ref, b_ref,
                        out_ref, key_scr, val_scr, h_scr, attn_scr,
                        *, seq_len, out_dim):
    """Runs T teacher-forced decode steps for a batch of B sequences.

    gx_ref     : (T, B, 4H)  f32  hoisted x-gate pre-activations (W_embx[tok] + bx + bh)
    h0_ref     : (B, H)      f32  initial hidden state
    enc_ref    : (B*Lp, 2H)  f32  zero-padded encoder outputs, flattened
    w_ref      : (rows, 256) f32  packed weight slab (see _slab_rows)
    b_ref      : (8, 256)    f32  packed bias slab
    out_ref    : (T, B, 128) f32  packed [log_softmax | h | attn | pad]
    key/val_scr: (B, Lp, H)  f32  VMEM scratch for the hoisted K/V projections
    h_scr      : (T, B, H)   f32  per-step hidden states (consumed by the epilogue)
    attn_scr   : (T, B, Lp)  f32  per-step attention weights
    """
    T, B, H4 = gx_ref.shape
    H = h0_ref.shape[-1]
    H2, H3, H5 = 2 * H, 3 * H, 5 * H
    Lp = key_scr.shape[1]
    O = out_dim
    r_kv, r_qh, r_o, _ = _slab_rows(H)

    # ---------------- prologue (off the serial path) ------------------------------
    # K/V projections are step-invariant: one batched matmul over all encoder rows.
    kv = jnp.dot(enc_ref[...], w_ref[r_kv:r_kv + H2, 0:H2],
                 preferred_element_type=jnp.float32) + b_ref[0:1, 0:H2]     # (B*Lp, 2H)
    key_scr[...] = kv[:, 0:H].reshape(B, Lp, H)
    val_scr[...] = kv[:, H:H2].reshape(B, Lp, H)

    # mask for zero-padded encoder positions (static seq_len baked in)
    valid = jax.lax.broadcasted_iota(jnp.int32, (B, Lp), 1) < seq_len

    # ---------------- serial recurrence -------------------------------------------
    def step(t, h_prev):
        # ONE fused MXU push on the critical path: [gates_h | q] = h @ [Wh | Wq/H].
        # Gate lanes 0:4H and query lanes 4H:5H are both 128-lane-tile aligned.
        qg = jnp.dot(h_prev, w_ref[r_qh:r_qh + H, 0:H5],
                     preferred_element_type=jnp.float32) + b_ref[1:2, 0:H5]  # (B, 5H)
        gh = qg[:, 0:H4]
        q = qg[:, H4:H5]

        # Attention: VPU broadcast-multiply + lane reduce (1/H already folded into Wq).
        scores = jnp.sum(q[:, None, :] * key_scr[...], axis=-1)             # (B, Lp)
        scores = jnp.where(valid, scores, jnp.float32(-1e30))
        e = jnp.exp(scores - jnp.max(scores, axis=-1, keepdims=True))
        attn = e / jnp.sum(e, axis=-1, keepdims=True)                       # (B, Lp)
        ctx = jnp.sum(attn[:, :, None] * val_scr[...], axis=1)              # (B,H)==c_prev

        # LSTM gates; x-side pre-activations (incl. biases) were hoisted into gx_ref.
        # Gate order [f, i, o, c]: one contiguous sigmoid over 3H lanes, tanh on the tail.
        g = gx_ref[t] + gh                                                   # (B, 4H)
        sig = jax.nn.sigmoid(g[:, 0:H3])
        f, i, o = sig[:, 0:H], sig[:, H:H2], sig[:, H2:H3]
        c_bar = jnp.tanh(g[:, H3:H4])
        c_next = f * ctx + i * c_bar
        h_next = o * jnp.tanh(c_next)                                        # (B, H)

        h_scr[t] = h_next
        attn_scr[t] = attn
        return h_next

    jax.lax.fori_loop(0, T, step, h0_ref[...], unroll=True)

    # ---------------- epilogue (off the serial path) -------------------------------
    # One batched output projection + log_softmax over all T*B rows, then one
    # lane-dense packed write of the whole (T, B, 128) result.
    h_all = h_scr[...].reshape(T * B, H)
    logits = jnp.dot(h_all, w_ref[r_o:r_o + H, 0:O],
                     preferred_element_type=jnp.float32) + b_ref[2:3, 0:O]   # (T*B, O)
    z = logits - jnp.max(logits, axis=-1, keepdims=True)
    logsm = (z - jnp.log(jnp.sum(jnp.exp(z), axis=-1, keepdims=True))).reshape(T, B, O)

    pieces = [logsm, h_scr[...], attn_scr[...]]
    pad_w = out_ref.shape[-1] - (O + H + Lp)
    if pad_w:
        pieces.append(jnp.zeros((T, B, pad_w), jnp.float32))
    out_ref[...] = jnp.concatenate(pieces, axis=-1)


def init_params(key, hidden=HIDDEN, output=OUTPUT):
    """Synthetic params matching the module (xavier-uniform weights, zero biases)."""
    ks = iter(jax.random.split(key, 16))

    def xavier(shape):
        fan_in, fan_out = shape
        limit = jnp.sqrt(6.0 / (fan_in + fan_out))
        return jax.random.uniform(next(ks), shape, jnp.float32, -limit, limit)

    p = {"embedding": jax.random.normal(next(ks), (output, hidden), jnp.float32)}
    p["wk"] = xavier((2 * hidden, hidden)); p["bk"] = jnp.zeros((hidden,), jnp.float32)
    p["wv"] = xavier((2 * hidden, hidden)); p["bv"] = jnp.zeros((hidden,), jnp.float32)
    p["wq"] = xavier((hidden, hidden));     p["bq"] = jnp.zeros((hidden,), jnp.float32)
    for g in "fico":  # per-gate LSTM linears, pre-transposed to (in, out)
        p[f"w_x{g}"] = xavier((hidden, hidden)); p[f"b_x{g}"] = jnp.zeros((hidden,), jnp.float32)
        p[f"w_h{g}"] = xavier((hidden, hidden)); p[f"b_h{g}"] = jnp.zeros((hidden,), jnp.float32)
    p["wo"] = xavier((hidden, output));     p["bo"] = jnp.zeros((output,), jnp.float32)
    return p


def pack_params(p, hidden=HIDDEN, output=OUTPUT):
    """One-time packing: weight slab + bias slab + the fused embedding/x-gate table."""
    H, O = hidden, output
    hp = jax.lax.Precision.HIGHEST
    r_kv, r_qh, r_o, rows = _slab_rows(H)

    # LSTM gate order [f, i, o, c] so the 3 sigmoids apply to one contiguous lane slice.
    wx = jnp.concatenate([p["w_xf"], p["w_xi"], p["w_xo"], p["w_xc"]], axis=1)  # (H, 4H)
    wh = jnp.concatenate([p["w_hf"], p["w_hi"], p["w_ho"], p["w_hc"]], axis=1)  # (H, 4H)
    bx = jnp.concatenate([p["b_xf"], p["b_xi"], p["b_xo"], p["b_xc"]])
    bh = jnp.concatenate([p["b_hf"], p["b_hi"], p["b_ho"], p["b_hc"]])

    # Fold embedding @ Wx once at f32 HIGHEST precision (off the hot path); per call the
    # token-side pre-activations are then a trivial exact gather: W_embx[tokens] + b_gate.
    w_embx = jnp.dot(p["embedding"], wx, precision=hp)                           # (O, 4H)
    b_gate = bx + bh                                                             # (4H,)

    w = jnp.zeros((rows, SLAB_W), jnp.float32)
    w = w.at[r_kv:r_kv + 2 * H, 0:H].set(p["wk"])
    w = w.at[r_kv:r_kv + 2 * H, H:2 * H].set(p["wv"])
    w = w.at[r_qh:r_qh + H, 0:4 * H].set(wh)                       # h-gates at lanes 0:128
    w = w.at[r_qh:r_qh + H, 4 * H:5 * H].set(p["wq"] * (1.0 / H))  # 1/H scale folded in
    w = w.at[r_o:r_o + H, 0:O].set(p["wo"])

    b = jnp.zeros((8, SLAB_W), jnp.float32)
    b = b.at[0, 0:H].set(p["bk"])
    b = b.at[0, H:2 * H].set(p["bv"])
    b = b.at[1, 4 * H:5 * H].set(p["bq"] * (1.0 / H))
    b = b.at[2, 0:O].set(p["bo"])

    return {"w": w, "b": b, "w_embx": w_embx, "b_gate": b_gate}


@jax.jit
def attn_decoder_decode(tokens, h0, encoder_outputs, packed):
    """Fused T-step, batch-B teacher-forced decode.

    tokens:          (T, B) int32 token ids fed at each step
    h0:              (B, H) f32 initial hidden state
    encoder_outputs: (B, L, 2H) f32
    Returns (log_softmax (T,B,O), h (T,B,H), attn (T,B,L)); step t equals
    AttnDecoderRNN.forward(tokens[t], h_{t-1}, encoder_outputs).
    """
    T, B = tokens.shape
    L = encoder_outputs.shape[1]
    H, O = HIDDEN, OUTPUT
    Lp = max(8, ((L + 7) // 8) * 8)
    assert O + H + Lp <= PACK

    # Token-side matmul hoisted off the serial path: exact gather of the fused table.
    # TODO(synk): training-mode dropout (p=0.1) on the embedding is skipped (eval mode).
    gx = packed["w_embx"][tokens] + packed["b_gate"]                    # (T, B, 4H)
    enc_pad = jnp.zeros((B, Lp, 2 * H), jnp.float32).at[:, :L, :].set(encoder_outputs)
    enc2d = enc_pad.reshape(B * Lp, 2 * H)

    vmem = pl.BlockSpec(memory_space=pltpu.MemorySpace.VMEM)
    # NOTE: at B >= 16 on v7x one would add a leading batch-block grid axis with
    # dimension_semantics=("parallel",) to use both TensorCores; at B=8 keep one call.
    out = pl.pallas_call(
        functools.partial(attn_decoder_kernel, seq_len=L, out_dim=O),
        out_shape=jax.ShapeDtypeStruct((T, B, PACK), jnp.float32),
        in_specs=[vmem] * 5,
        out_specs=vmem,
        scratch_shapes=[pltpu.VMEM((B, Lp, H), jnp.float32),
                        pltpu.VMEM((B, Lp, H), jnp.float32),
                        pltpu.VMEM((T, B, H), jnp.float32),
                        pltpu.VMEM((T, B, Lp), jnp.float32)],
    )(gx, h0.astype(jnp.float32), enc2d, packed["w"], packed["b"])

    log_softmax = out[..., 0:O]
    h_all = out[..., O:O + H]
    attn = out[..., O + H:O + H + L]
    return log_softmax, h_all, attn


def attn_decoder_forward(input_idx, hidden, encoder_outputs, packed):
    """Single-step API mirroring AttnDecoderRNN.forward (batch 1, one token)."""
    if encoder_outputs.ndim == 2:
        encoder_outputs = encoder_outputs[None]                         # (1, L, 2H)
    L = encoder_outputs.shape[1]
    tokens = jnp.asarray(input_idx, jnp.int32).reshape(1, 1)            # (T=1, B=1)
    h0 = jnp.asarray(hidden, jnp.float32).reshape(1, HIDDEN)
    logsm, h_all, attn = attn_decoder_decode(tokens, h0, encoder_outputs, packed)
    return (logsm.reshape(1, 1, OUTPUT),
            h_all.reshape(1, 1, HIDDEN),
            attn.reshape(1, 1, L))


def reference_decode(tokens, h0, enc, p):
    """Pure-JAX reference at HIGHEST precision: the PyTorch forward, step by step."""
    H = HIDDEN
    hp = jax.lax.Precision.HIGHEST
    key = jnp.einsum('bld,dk->blk', enc, p["wk"], precision=hp) + p["bk"]
    value = jnp.einsum('bld,dk->blk', enc, p["wv"], precision=hp) + p["bv"]

    def lin(x, w, b):
        return jnp.dot(x, w, precision=hp) + b

    def step(h_prev, tok):
        emb = p["embedding"][tok]                                        # (B, H)
        q = lin(h_prev, p["wq"], p["bq"])
        scores = jnp.einsum('bh,blh->bl', q, key, precision=hp) / H
        attn = jax.nn.softmax(scores, axis=-1)
        ctx = jnp.einsum('bl,blh->bh', attn, value, precision=hp)        # used as c_prev
        f = jax.nn.sigmoid(lin(emb, p["w_xf"], p["b_xf"]) + lin(h_prev, p["w_hf"], p["b_hf"]))
        i = jax.nn.sigmoid(lin(emb, p["w_xi"], p["b_xi"]) + lin(h_prev, p["w_hi"], p["b_hi"]))
        c_bar = jnp.tanh(lin(emb, p["w_xc"], p["b_xc"]) + lin(h_prev, p["w_hc"], p["b_hc"]))
        o = jax.nn.sigmoid(lin(emb, p["w_xo"], p["b_xo"]) + lin(h_prev, p["w_ho"], p["b_ho"]))
        c_next = f * ctx + i * c_bar
        h_next = o * jnp.tanh(c_next)
        logits = lin(h_next, p["wo"], p["bo"])
        return h_next, (jax.nn.log_softmax(logits, axis=-1), h_next, attn)

    _, (logsm, h_all, attn_all) = jax.lax.scan(step, h0, tokens)
    return logsm, h_all, attn_all


if __name__ == "__main__":
    B, T, L = 8, 6, MAX_LENGTH
    root = jax.random.PRNGKey(0)
    k_param, k_hid, k_enc, k_tok = jax.random.split(root, 4)

    params = init_params(k_param)
    packed = pack_params(params)   # packed once; reused every call

    tokens = jax.random.randint(k_tok, (T, B), 0, OUTPUT, dtype=jnp.int32)
    h0 = jax.random.normal(k_hid, (B, HIDDEN), jnp.float32)
    encoder_outputs = jax.random.normal(k_enc, (B, L, 2 * HIDDEN), jnp.float32)

    # Fused multi-step decode: one pallas_call covers all T steps, weights resident.
    logsm, h_all, attn = attn_decoder_decode(tokens, h0, encoder_outputs, packed)
    jax.block_until_ready((logsm, h_all, attn))

    assert logsm.shape == (T, B, OUTPUT)
    assert h_all.shape == (T, B, HIDDEN)
    assert attn.shape == (T, B, L)

    # Parity vs. a HIGHEST-precision pure-JAX reference. In-kernel dots now run at
    # default TPU matmul precision (single MXU pass, per the perf review), so the
    # tolerance is set at a bf16-pass-appropriate level instead of 2e-3.
    ref_logsm, ref_h, ref_attn = reference_decode(tokens, h0, encoder_outputs, params)
    TOL = 3e-2
    assert bool(jnp.allclose(logsm, ref_logsm, atol=TOL, rtol=TOL))
    assert bool(jnp.allclose(h_all, ref_h, atol=TOL, rtol=TOL))
    assert bool(jnp.allclose(attn, ref_attn, atol=TOL, rtol=TOL))

    # Sanity: attention rows and exp(log_softmax) rows are proper distributions.
    assert bool(jnp.allclose(jnp.sum(attn, axis=-1), 1.0, atol=1e-3))
    assert bool(jnp.allclose(jnp.sum(jnp.exp(logsm), axis=-1), 1.0, atol=1e-3))

    # Single-step, module-style forward() matches step 0 / batch element 0.
    one_log, one_h, one_attn = attn_decoder_forward(
        tokens[0, 0], h0[0].reshape(1, 1, HIDDEN), encoder_outputs[0], packed)
    jax.block_until_ready((one_log, one_h, one_attn))
    assert one_log.shape == (1, 1, OUTPUT)
    assert one_h.shape == (1, 1, HIDDEN)
    assert one_attn.shape == (1, 1, MAX_LENGTH)
    assert bool(jnp.allclose(one_log[0, 0], ref_logsm[0, 0], atol=TOL, rtol=TOL))
    assert bool(jnp.allclose(one_attn[0, 0], ref_attn[0, 0], atol=TOL, rtol=TOL))

    print("KERNEL_OK")
</pallas_src>

<mosaic_0001>
module attributes {stable_mosaic.version = 11 : i64} {
  func.func @attn_decoder_kernel(%arg0: memref<6x8x128xf32, #tpu.memory_space<vmem>>, %arg1: memref<8x32xf32, #tpu.memory_space<vmem>>, %arg2: memref<128x64xf32, #tpu.memory_space<vmem>>, %arg3: memref<128x256xf32, #tpu.memory_space<vmem>>, %arg4: memref<8x256xf32, #tpu.memory_space<vmem>>, %arg5: memref<6x8x128xf32, #tpu.memory_space<vmem>>, %arg6: memref<8x16x32xf32, #tpu.memory_space<vmem>>, %arg7: memref<8x16x32xf32, #tpu.memory_space<vmem>>, %arg8: memref<6x8x32xf32, #tpu.memory_space<vmem>>, %arg9: memref<6x8x16xf32, #tpu.memory_space<vmem>>) attributes {dimension_semantics = [], scalar_prefetch = 0 : i64, scratch_operands = 4 : i64, tpu.core_type = #tpu.core_type<tc>} {
    %c0 = arith.constant 0 : index
    %c0_0 = arith.constant 0 : index
    %0 = vector.load %arg2[%c0, %c0_0] : memref<128x64xf32, #tpu.memory_space<vmem>>, vector<128x64xf32>
    %c0_1 = arith.constant 0 : index
    %c0_2 = arith.constant 0 : index
    %1 = vector.load %arg3[%c0_1, %c0_2] : memref<128x256xf32, #tpu.memory_space<vmem>>, vector<64x64xf32>
    %cst = arith.constant dense<0.000000e+00> : vector<128x64xf32>
    %2 = tpu.matmul %0, %1, %cst {dimension_numbers = #tpu.dot_dimension_numbers<[1], [0], [0], [1], [0, 0, 1, 1], [], []>} : vector<128x64xf32>, vector<64x64xf32>, vector<128x64xf32> -> vector<128x64xf32>
    %c0_3 = arith.constant 0 : index
    %c0_4 = arith.constant 0 : index
    %3 = vector.load %arg4[%c0_3, %c0_4] : memref<8x256xf32, #tpu.memory_space<vmem>>, vector<1x64xf32>
    %4 = vector.broadcast %3 : vector<1x64xf32> to vector<128x64xf32>
    %5 = arith.addf %2, %4 : vector<128x64xf32>
    %6 = vector.extract_strided_slice %5 {offsets = [0, 0], sizes = [128, 32], strides = [1, 1]} : vector<128x64xf32> to vector<128x32xf32>
    %7 = vector.shape_cast %6 : vector<128x32xf32> to vector<8x16x32xf32>
    %c0_5 = arith.constant 0 : index
    %c0_6 = arith.constant 0 : index
    %c0_7 = arith.constant 0 : index
    %8 = vector.load %arg6[%c0_5, %c0_6, %c0_7] : memref<8x16x32xf32, #tpu.memory_space<vmem>>, vector<8x16x32xf32>
    tpu.vector_store %arg6[%c0_5, %c0_6, %c0_7], %7 {strides = array<i32>} : memref<8x16x32xf32, #tpu.memory_space<vmem>>, vector<8x16x32xf32>,
    %9 = vector.extract_strided_slice %5 {offsets = [0, 32], sizes = [128, 32], strides = [1, 1]} : vector<128x64xf32> to vector<128x32xf32>
    %10 = vector.shape_cast %9 : vector<128x32xf32> to vector<8x16x32xf32>
    %c0_8 = arith.constant 0 : index
    %c0_9 = arith.constant 0 : index
    %c0_10 = arith.constant 0 : index
    %11 = vector.load %arg7[%c0_8, %c0_9, %c0_10] : memref<8x16x32xf32, #tpu.memory_space<vmem>>, vector<8x16x32xf32>
    tpu.vector_store %arg7[%c0_8, %c0_9, %c0_10], %10 {strides = array<i32>} : memref<8x16x32xf32, #tpu.memory_space<vmem>>, vector<8x16x32xf32>,
    %12 = tpu.iota {dimensions = array<i32: 1>} : vector<8x16xi32>
    %c15_i32 = arith.constant 15 : i32
    %13 = vector.broadcast %c15_i32 : i32 to vector<8x16xi32>
    %14 = arith.cmpi slt, %12, %13 : vector<8x16xi32>
    %c0_11 = arith.constant 0 : index
    %c0_12 = arith.constant 0 : index
    %15 = vector.load %arg1[%c0_11, %c0_12] : memref<8x32xf32, #tpu.memory_space<vmem>>, vector<8x32xf32>
    %c0_i32 = arith.constant 0 : i32
    %c64 = arith.constant 64 : index
    %c0_13 = arith.constant 0 : index
    %16 = vector.load %arg3[%c64, %c0_13] : memref<128x256xf32, #tpu.memory_space<vmem>>, vector<32x160xf32>
    %cst_14 = arith.constant dense<0.000000e+00> : vector<8x160xf32>
    %17 = tpu.matmul %15, %16, %cst_14 {dimension_numbers = #tpu.dot_dimension_numbers<[1], [0], [0], [1], [0, 0, 1, 1], [], []>} : vector<8x32xf32>, vector<32x160xf32>, vector<8x160xf32> -> vector<8x160xf32>
    %c1 = arith.constant 1 : index
    %c0_15 = arith.constant 0 : index
    %18 = vector.load %arg4[%c1, %c0_15] : memref<8x256xf32, #tpu.memory_space<vmem>>, vector<1x160xf32>
    %19 = vector.broadcast %18 : vector<1x160xf32> to vector<8x160xf32>
    %20 = arith.addf %17, %19 : vector<8x160xf32>
    %21 = vector.extract_strided_slice %20 {offsets = [0, 0], sizes = [8, 128], strides = [1, 1]} : vector<8x160xf32> to vector<8x128xf32>
    %22 = vector.extract_strided_slice %20 {offsets = [0, 128], sizes = [8, 32], strides = [1, 1]} : vector<8x160xf32> to vector<8x32xf32>
    %23 = vector.shape_cast %22 : vector<8x32xf32> to vector<8x1x32xf32>
    %c0_16 = arith.constant 0 : index
    %c0_17 = arith.constant 0 : index
    %c0_18 = arith.constant 0 : index
    %24 = vector.load %arg6[%c0_16, %c0_17, %c0_18] : memref<8x16x32xf32, #tpu.memory_space<vmem>>, vector<8x16x32xf32>
    %25 = vector.broadcast %23 : vector<8x1x32xf32> to vector<8x16x32xf32>
    %26 = arith.mulf %25, %24 : vector<8x16x32xf32>
    %cst_19 = arith.constant dense<0.000000e+00> : vector<8x16xf32>
    %27 = vector.multi_reduction <add>, %26, %cst_19 [2] : vector<8x16x32xf32> to vector<8x16xf32>
    %cst_20 = arith.constant -1.000000e+30 : f32
    %28 = vector.broadcast %cst_20 : f32 to vector<8x16xf32>
    %29 = arith.select %14, %27, %28 : vector<8x16xi1>, vector<8x16xf32>
    %cst_21 = arith.constant dense<0xFF800000> : vector<8xf32>
    %30 = vector.multi_reduction <maximumf>, %29, %cst_21 [1] : vector<8x16xf32> to vector<8xf32>
    %31 = vector.shape_cast %30 : vector<8xf32> to vector<8x1xf32>
    %32 = vector.broadcast %31 : vector<8x1xf32> to vector<8x16xf32>
    %33 = arith.subf %29, %32 : vector<8x16xf32>
    %34 = math.exp %33 : vector<8x16xf32>
    %cst_22 = arith.constant dense<0.000000e+00> : vector<8xf32>
    %35 = vector.multi_reduction <add>, %34, %cst_22 [1] : vector<8x16xf32> to vector<8xf32>
    %36 = vector.shape_cast %35 : vector<8xf32> to vector<8x1xf32>
    %37 = vector.broadcast %36 : vector<8x1xf32> to vector<8x16xf32>
    %38 = arith.divf %34, %37 : vector<8x16xf32>
    %39 = vector.shape_cast %38 : vector<8x16xf32> to vector<8x16x1xf32>
    %c0_23 = arith.constant 0 : index
    %c0_24 = arith.constant 0 : index
    %c0_25 = arith.constant 0 : index
    %40 = vector.load %arg7[%c0_23, %c0_24, %c0_25] : memref<8x16x32xf32, #tpu.memory_space<vmem>>, vector<8x16x32xf32>
    %41 = vector.broadcast %39 : vector<8x16x1xf32> to vector<8x16x32xf32>
    %42 = arith.mulf %41, %40 : vector<8x16x32xf32>
    %cst_26 = arith.constant dense<0.000000e+00> : vector<8x32xf32>
    %43 = vector.multi_reduction <add>, %42, %cst_26 [1] : vector<8x16x32xf32> to vector<8x32xf32>
    %44 = arith.index_cast %c0_i32 : i32 to index
    %c0_27 = arith.constant 0 : index
    %c0_28 = arith.constant 0 : index
    %45 = vector.load %arg0[%44, %c0_27, %c0_28] : memref<6x8x128xf32, #tpu.memory_space<vmem>>, vector<1x8x128xf32>
    %46 = vector.shape_cast %45 : vector<1x8x128xf32> to vector<8x128xf32>
    %47 = arith.addf %46, %21 : vector<8x128xf32>
    %48 = vector.extract_strided_slice %47 {offsets = [0, 0], sizes = [8, 96], strides = [1, 1]} : vector<8x128xf32> to vector<8x96xf32>
    %49 = arith.negf %48 : vector<8x96xf32>
    %50 = math.exp %49 : vector<8x96xf32>
    %cst_29 = arith.constant 1.000000e+00 : f32
    %51 = vector.broadcast %cst_29 : f32 to vector<8x96xf32>
    %52 = arith.addf %51, %50 : vector<8x96xf32>
    %53 = arith.divf %51, %52 : vector<8x96xf32>
    %54 = vector.extract_strided_slice %53 {offsets = [0, 0], sizes = [8, 32], strides = [1, 1]} : vector<8x96xf32> to vector<8x32xf32>
    %55 = vector.extract_strided_slice %53 {offsets = [0, 32], sizes = [8, 32], strides = [1, 1]} : vector<8x96xf32> to vector<8x32xf32>
    %56 = vector.extract_strided_slice %53 {offsets = [0, 64], sizes = [8, 32], strides = [1, 1]} : vector<8x96xf32> to vector<8x32xf32>
    %57 = vector.extract_strided_slice %47 {offsets = [0, 96], sizes = [8, 32], strides = [1, 1]} : vector<8x128xf32> to vector<8x32xf32>
    %58 = math.tanh %57 : vector<8x32xf32>
    %59 = arith.mulf %54, %43 : vector<8x32xf32>
    %60 = arith.mulf %55, %58 : vector<8x32xf32>
    %61 = arith.addf %59, %60 : vector<8x32xf32>
    %62 = math.tanh %61 : vector<8x32xf32>
    %63 = arith.mulf %56, %62 : vector<8x32xf32>
    %64 = arith.index_cast %c0_i32 : i32 to index
    %c0_30 = arith.constant 0 : index
    %c0_31 = arith.constant 0 : index
    %65 = vector.load %arg8[%64, %c0_30, %c0_31] : memref<6x8x32xf32, #tpu.memory_space<vmem>>, vector<1x8x32xf32>
    %66 = vector.shape_cast %65 : vector<1x8x32xf32> to vector<8x32xf32>
    %67 = vector.shape_cast %63 : vector<8x32xf32> to vector<1x8x32xf32>
    tpu.vector_store %arg8[%64, %c0_30, %c0_31], %67 {strides = array<i32>} : memref<6x8x32xf32, #tpu.memory_space<vmem>>, vector<1x8x32xf32>,
    %68 = arith.index_cast %c0_i32 : i32 to index
    %c0_32 = arith.constant 0 : index
    %c0_33 = arith.constant 0 : index
    %69 = vector.load %arg9[%68, %c0_32, %c0_33] : memref<6x8x16xf32, #tpu.memory_space<vmem>>, vector<1x8x16xf32>
    %70 = vector.shape_cast %69 : vector<1x8x16xf32> to vector<8x16xf32>
    %71 = vector.shape_cast %38 : vector<8x16xf32> to vector<1x8x16xf32>
    tpu.vector_store %arg9[%68, %c0_32, %c0_33], %71 {strides = array<i32>} : memref<6x8x16xf32, #tpu.memory_space<vmem>>, vector<1x8x16xf32>,
    %c1_i32 = arith.constant 1 : i32
    %c64_34 = arith.constant 64 : index
    %c0_35 = arith.constant 0 : index
    %72 = vector.load %arg3[%c64_34, %c0_35] : memref<128x256xf32, #tpu.memory_space<vmem>>, vector<32x160xf32>
    %cst_36 = arith.constant dense<0.000000e+00> : vector<8x160xf32>
    %73 = tpu.matmul %63, %72, %cst_36 {dimension_numbers = #tpu.dot_dimension_numbers<[1], [0], [0], [1], [0, 0, 1, 1], [], []>} : vector<8x32xf32>, vector<32x160xf32>, vector<8x160xf32> -> vector<8x160xf32>
    %c1_37 = arith.constant 1 : index
    %c0_38 = arith.constant 0 : index
    %74 = vector.load %arg4[%c1_37, %c0_38] : memref<8x256xf32, #tpu.memory_space<vmem>>, vector<1x160xf32>
    %75 = vector.broadcast %74 : vector<1x160xf32> to vector<8x160xf32>
    %76 = arith.addf %73, %75 : vector<8x160xf32>
    %77 = vector.extract_strided_slice %76 {offsets = [0, 0], sizes = [8, 128], strides = [1, 1]} : vector<8x160xf32> to vector<8x128xf32>
    %78 = vector.extract_strided_slice %76 {offsets = [0, 128], sizes = [8, 32], strides = [1, 1]} : vector<8x160xf32> to vector<8x32xf32>
    %79 = vector.shape_cast %78 : vector<8x32xf32> to vector<8x1x32xf32>
    %c0_39 = arith.constant 0 : index
    %c0_40 = arith.constant 0 : index
    %c0_41 = arith.constant 0 : index
    %80 = vector.load %arg6[%c0_39, %c0_40, %c0_41] : memref<8x16x32xf32, #tpu.memory_space<vmem>>, vector<8x16x32xf32>
    %81 = vector.broadcast %79 : vector<8x1x32xf32> to vector<8x16x32xf32>
    %82 = arith.mulf %81, %80 : vector<8x16x32xf32>
    %cst_42 = arith.constant dense<0.000000e+00> : vector<8x16xf32>
    %83 = vector.multi_reduction <add>, %82, %cst_42 [2] : vector<8x16x32xf32> to vector<8x16xf32>
    %cst_43 = arith.constant -1.000000e+30 : f32
    %84 = vector.broadcast %cst_43 : f32 to vector<8x16xf32>
    %85 = arith.select %14, %83, %84 : vector<8x16xi1>, vector<8x16xf32>
    %cst_44 = arith.constant dense<0xFF800000> : vector<8xf32>
    %86 = vector.multi_reduction <maximumf>, %85, %cst_44 [1] : vector<8x16xf32> to vector<8xf32>
    %87 = vector.shape_cast %86 : vector<8xf32> to vector<8x1xf32>
    %88 = vector.broadcast %87 : vector<8x1xf32> to vector<8x16xf32>
    %89 = arith.subf %85, %88 : vector<8x16xf32>
    %90 = math.exp %89 : vector<8x16xf32>
    %cst_45 = arith.constant dense<0.000000e+00> : vector<8xf32>
    %91 = vector.multi_reduction <add>, %90, %cst_45 [1] : vector<8x16xf32> to vector<8xf32>
    %92 = vector.shape_cast %91 : vector<8xf32> to vector<8x1xf32>
    %93 = vector.broadcast %92 : vector<8x1xf32> to vector<8x16xf32>
    %94 = arith.divf %90, %93 : vector<8x16xf32>
    %95 = vector.shape_cast %94 : vector<8x16xf32> to vector<8x16x1xf32>
    %c0_46 = arith.constant 0 : index
    %c0_47 = arith.constant 0 : index
    %c0_48 = arith.constant 0 : index
    %96 = vector.load %arg7[%c0_46, %c0_47, %c0_48] : memref<8x16x32xf32, #tpu.memory_space<vmem>>, vector<8x16x32xf32>
    %97 = vector.broadcast %95 : vector<8x16x1xf32> to vector<8x16x32xf32>
    %98 = arith.mulf %97, %96 : vector<8x16x32xf32>
    %cst_49 = arith.constant dense<0.000000e+00> : vector<8x32xf32>
    %99 = vector.multi_reduction <add>, %98, %cst_49 [1] : vector<8x16x32xf32> to vector<8x32xf32>
    %100 = arith.index_cast %c1_i32 : i32 to index
    %c0_50 = arith.constant 0 : index
    %c0_51 = arith.constant 0 : index
    %101 = vector.load %arg0[%100, %c0_50, %c0_51] : memref<6x8x128xf32, #tpu.memory_space<vmem>>, vector<1x8x128xf32>
    %102 = vector.shape_cast %101 : vector<1x8x128xf32> to vector<8x128xf32>
    %103 = arith.addf %102, %77 : vector<8x128xf32>
    %104 = vector.extract_strided_slice %103 {offsets = [0, 0], sizes = [8, 96], strides = [1, 1]} : vector<8x128xf32> to vector<8x96xf32>
    %105 = arith.negf %104 : vector<8x96xf32>
    %106 = math.exp %105 : vector<8x96xf32>
    %cst_52 = arith.constant 1.000000e+00 : f32
    %107 = vector.broadcast %cst_52 : f32 to vector<8x96xf32>
    %108 = arith.addf %107, %106 : vector<8x96xf32>
    %109 = arith.divf %107, %108 : vector<8x96xf32>
    %110 = vector.extract_strided_slice %109 {offsets = [0, 0], sizes = [8, 32], strides = [1, 1]} : vector<8x96xf32> to vector<8x32xf32>
    %111 = vector.extract_strided_slice %109 {offsets = [0, 32], sizes = [8, 32], strides = [1, 1]} : vector<8x96xf32> to vector<8x32xf32>
    %112 = vector.extract_strided_slice %109 {offsets = [0, 64], sizes = [8, 32], strides = [1, 1]} : vector<8x96xf32> to vector<8x32xf32>
    %113 = vector.extract_strided_slice %103 {offsets = [0, 96], sizes = [8, 32], strides = [1, 1]} : vector<8x128xf32> to vector<8x32xf32>
    %114 = math.tanh %113 : vector<8x32xf32>
    %115 = arith.mulf %110, %99 : vector<8x32xf32>
    %116 = arith.mulf %111, %114 : vector<8x32xf32>
    %117 = arith.addf %115, %116 : vector<8x32xf32>
    %118 = math.tanh %117 : vector<8x32xf32>
    %119 = arith.mulf %112, %118 : vector<8x32xf32>
    %120 = arith.index_cast %c1_i32 : i32 to index
    %c0_53 = arith.constant 0 : index
    %c0_54 = arith.constant 0 : index
    %121 = vector.load %arg8[%120, %c0_53, %c0_54] : memref<6x8x32xf32, #tpu.memory_space<vmem>>, vector<1x8x32xf32>
    %122 = vector.shape_cast %121 : vector<1x8x32xf32> to vector<8x32xf32>
    %123 = vector.shape_cast %119 : vector<8x32xf32> to vector<1x8x32xf32>
    tpu.vector_store %arg8[%120, %c0_53, %c0_54], %123 {strides = array<i32>} : memref<6x8x32xf32, #tpu.memory_space<vmem>>, vector<1x8x32xf32>,
    %124 = arith.index_cast %c1_i32 : i32 to index
    %c0_55 = arith.constant 0 : index
    %c0_56 = arith.constant 0 : index
    %125 = vector.load %arg9[%124, %c0_55, %c0_56] : memref<6x8x16xf32, #tpu.memory_space<vmem>>, vector<1x8x16xf32>
    %126 = vector.shape_cast %125 : vector<1x8x16xf32> to vector<8x16xf32>
    %127 = vector.shape_cast %94 : vector<8x16xf32> to vector<1x8x16xf32>
    tpu.vector_store %arg9[%124, %c0_55, %c0_56], %127 {strides = array<i32>} : memref<6x8x16xf32, #tpu.memory_space<vmem>>, vector<1x8x16xf32>,
    %c2_i32 = arith.constant 2 : i32
    %c64_57 = arith.constant 64 : index
    %c0_58 = arith.constant 0 : index
    %128 = vector.load %arg3[%c64_57, %c0_58] : memref<128x256xf32, #tpu.memory_space<vmem>>, vector<32x160xf32>
    %cst_59 = arith.constant dense<0.000000e+00> : vector<8x160xf32>
    %129 = tpu.matmul %119, %128, %cst_59 {dimension_numbers = #tpu.dot_dimension_numbers<[1], [0], [0], [1], [0, 0, 1, 1], [], []>} : vector<8x32xf32>, vector<32x160xf32>, vector<8x160xf32> -> vector<8x160xf32>
    %c1_60 = arith.constant 1 : index
    %c0_61 = arith.constant 0 : index
    %130 = vector.load %arg4[%c1_60, %c0_61] : memref<8x256xf32, #tpu.memory_space<vmem>>, vector<1x160xf32>
    %131 = vector.broadcast %130 : vector<1x160xf32> to vector<8x160xf32>
    %132 = arith.addf %129, %131 : vector<8x160xf32>
    %133 = vector.extract_strided_slice %132 {offsets = [0, 0], sizes = [8, 128], strides = [1, 1]} : vector<8x160xf32> to vector<8x128xf32>
    %134 = vector.extract_strided_slice %132 {offsets = [0, 128], sizes = [8, 32], strides = [1, 1]} : vector<8x160xf32> to vector<8x32xf32>
    %135 = vector.shape_cast %134 : vector<8x32xf32> to vector<8x1x32xf32>
    %c0_62 = arith.constant 0 : index
    %c0_63 = arith.constant 0 : index
    %c0_64 = arith.constant 0 : index
    %136 = vector.load %arg6[%c0_62, %c0_63, %c0_64] : memref<8x16x32xf32, #tpu.memory_space<vmem>>, vector<8x16x32xf32>
    %137 = vector.broadcast %135 : vector<8x1x32xf32> to vector<8x16x32xf32>
    %138 = arith.mulf %137, %136 : vector<8x16x32xf32>
    %cst_65 = arith.constant dense<0.000000e+00> : vector<8x16xf32>
    %139 = vector.multi_reduction <add>, %138, %cst_65 [2] : vector<8x16x32xf32> to vector<8x16xf32>
    %cst_66 = arith.constant -1.000000e+30 : f32
    %140 = vector.broadcast %cst_66 : f32 to vector<8x16xf32>
    %141 = arith.select %14, %139, %140 : vector<8x16xi1>, vector<8x16xf32>
    %cst_67 = arith.constant dense<0xFF800000> : vector<8xf32>
    %142 = vector.multi_reduction <maximumf>, %141, %cst_67 [1] : vector<8x16xf32> to vector<8xf32>
    %143 = vector.shape_cast %142 : vector<8xf32> to vector<8x1xf32>
    %144 = vector.broadcast %143 : vector<8x1xf32> to vector<8x16xf32>
    %145 = arith.subf %141, %144 : vector<8x16xf32>
    %146 = math.exp %145 : vector<8x16xf32>
    %cst_68 = arith.constant dense<0.000000e+00> : vector<8xf32>
    %147 = vector.multi_reduction <add>, %146, %cst_68 [1] : vector<8x16xf32> to vector<8xf32>
    %148 = vector.shape_cast %147 : vector<8xf32> to vector<8x1xf32>
    %149 = vector.broadcast %148 : vector<8x1xf32> to vector<8x16xf32>
    %150 = arith.divf %146, %149 : vector<8x16xf32>
    %151 = vector.shape_cast %150 : vector<8x16xf32> to vector<8x16x1xf32>
    %c0_69 = arith.constant 0 : index
    %c0_70 = arith.constant 0 : index
    %c0_71 = arith.constant 0 : index
    %152 = vector.load %arg7[%c0_69, %c0_70, %c0_71] : memref<8x16x32xf32, #tpu.memory_space<vmem>>, vector<8x16x32xf32>
    %153 = vector.broadcast %151 : vector<8x16x1xf32> to vector<8x16x32xf32>
    %154 = arith.mulf %153, %152 : vector<8x16x32xf32>
    %cst_72 = arith.constant dense<0.000000e+00> : vector<8x32xf32>
    %155 = vector.multi_reduction <add>, %154, %cst_72 [1] : vector<8x16x32xf32> to vector<8x32xf32>
    %156 = arith.index_cast %c2_i32 : i32 to index
    %c0_73 = arith.constant 0 : index
    %c0_74 = arith.constant 0 : index
    %157 = vector.load %arg0[%156, %c0_73, %c0_74] : memref<6x8x128xf32, #tpu.memory_space<vmem>>, vector<1x8x128xf32>
    %158 = vector.shape_cast %157 : vector<1x8x128xf32> to vector<8x128xf32>
    %159 = arith.addf %158, %133 : vector<8x128xf32>
    %160 = vector.extract_strided_slice %159 {offsets = [0, 0], sizes = [8, 96], strides = [1, 1]} : vector<8x128xf32> to vector<8x96xf32>
    %161 = arith.negf %160 : vector<8x96xf32>
    %162 = math.exp %161 : vector<8x96xf32>
    %cst_75 = arith.constant 1.000000e+00 : f32
    %163 = vector.broadcast %cst_75 : f32 to vector<8x96xf32>
    %164 = arith.addf %163, %162 : vector<8x96xf32>
    %165 = arith.divf %163, %164 : vector<8x96xf32>
    %166 = vector.extract_strided_slice %165 {offsets = [0, 0], sizes = [8, 32], strides = [1, 1]} : vector<8x96xf32> to vector<8x32xf32>
    %167 = vector.extract_strided_slice %165 {offsets = [0, 32], sizes = [8, 32], strides = [1, 1]} : vector<8x96xf32> to vector<8x32xf32>
    %168 = vector.extract_strided_slice %165 {offsets = [0, 64], sizes = [8, 32], strides = [1, 1]} : vector<8x96xf32> to vector<8x32xf32>
    %169 = vector.extract_strided_slice %159 {offsets = [0, 96], sizes = [8, 32], strides = [1, 1]} : vector<8x128xf32> to vector<8x32xf32>
    %170 = math.tanh %169 : vector<8x32xf32>
    %171 = arith.mulf %166, %155 : vector<8x32xf32>
    %172 = arith.mulf %167, %170 : vector<8x32xf32>
    %173 = arith.addf %171, %172 : vector<8x32xf32>
    %174 = math.tanh %173 : vector<8x32xf32>
    %175 = arith.mulf %168, %174 : vector<8x32xf32>
    %176 = arith.index_cast %c2_i32 : i32 to index
    %c0_76 = arith.constant 0 : index
    %c0_77 = arith.constant 0 : index
    %177 = vector.load %arg8[%176, %c0_76, %c0_77] : memref<6x8x32xf32, #tpu.memory_space<vmem>>, vector<1x8x32xf32>
    %178 = vector.shape_cast %177 : vector<1x8x32xf32> to vector<8x32xf32>
    %179 = vector.shape_cast %175 : vector<8x32xf32> to vector<1x8x32xf32>
    tpu.vector_store %arg8[%176, %c0_76, %c0_77], %179 {strides = array<i32>} : memref<6x8x32xf32, #tpu.memory_space<vmem>>, vector<1x8x32xf32>,
    %180 = arith.index_cast %c2_i32 : i32 to index
    %c0_78 = arith.constant 0 : index
    %c0_79 = arith.constant 0 : index
    %181 = vector.load %arg9[%180, %c0_78, %c0_79] : memref<6x8x16xf32, #tpu.memory_space<vmem>>, vector<1x8x16xf32>
    %182 = vector.shape_cast %181 : vector<1x8x16xf32> to vector<8x16xf32>
    %183 = vector.shape_cast %150 : vector<8x16xf32> to vector<1x8x16xf32>
    tpu.vector_store %arg9[%180, %c0_78, %c0_79], %183 {strides = array<i32>} : memref<6x8x16xf32, #tpu.memory_space<vmem>>, vector<1x8x16xf32>,
    %c3_i32 = arith.constant 3 : i32
    %c64_80 = arith.constant 64 : index
    %c0_81 = arith.constant 0 : index
    %184 = vector.load %arg3[%c64_80, %c0_81] : memref<128x256xf32, #tpu.memory_space<vmem>>, vector<32x160xf32>
    %cst_82 = arith.constant dense<0.000000e+00> : vector<8x160xf32>
    %185 = tpu.matmul %175, %184, %cst_82 {dimension_numbers = #tpu.dot_dimension_numbers<[1], [0], [0], [1], [0, 0, 1, 1], [], []>} : vector<8x32xf32>, vector<32x160xf32>, vector<8x160xf32> -> vector<8x160xf32>
    %c1_83 = arith.constant 1 : index
    %c0_84 = arith.constant 0 : index
    %186 = vector.load %arg4[%c1_83, %c0_84] : memref<8x256xf32, #tpu.memory_space<vmem>>, vector<1x160xf32>
    %187 = vector.broadcast %186 : vector<1x160xf32> to vector<8x160xf32>
    %188 = arith.addf %185, %187 : vector<8x160xf32>
    %189 = vector.extract_strided_slice %188 {offsets = [0, 0], sizes = [8, 128], strides = [1, 1]} : vector<8x160xf32> to vector<8x128xf32>
    %190 = vector.extract_strided_slice %188 {offsets = [0, 128], sizes = [8, 32], strides = [1, 1]} : vector<8x160xf32> to vector<8x32xf32>
    %191 = vector.shape_cast %190 : vector<8x32xf32> to vector<8x1x32xf32>
    %c0_85 = arith.constant 0 : index
    %c0_86 = arith.constant 0 : index
    %c0_87 = arith.constant 0 : index
    %192 = vector.load %arg6[%c0_85, %c0_86, %c0_87] : memref<8x16x32xf32, #tpu.memory_space<vmem>>, vector<8x16x32xf32>
    %193 = vector.broadcast %191 : vector<8x1x32xf32> to vector<8x16x32xf32>
    %194 = arith.mulf %193, %192 : vector<8x16x32xf32>
    %cst_88 = arith.constant dense<0.000000e+00> : vector<8x16xf32>
    %195 = vector.multi_reduction <add>, %194, %cst_88 [2] : vector<8x16x32xf32> to vector<8x16xf32>
    %cst_89 = arith.constant -1.000000e+30 : f32
    %196 = vector.broadcast %cst_89 : f32 to vector<8x16xf32>
    %197 = arith.select %14, %195, %196 : vector<8x16xi1>, vector<8x16xf32>
    %cst_90 = arith.constant dense<0xFF800000> : vector<8xf32>
    %198 = vector.multi_reduction <maximumf>, %197, %cst_90 [1] : vector<8x16xf32> to vector<8xf32>
    %199 = vector.shape_cast %198 : vector<8xf32> to vector<8x1xf32>
    %200 = vector.broadcast %199 : vector<8x1xf32> to vector<8x16xf32>
    %201 = arith.subf %197, %200 : vector<8x16xf32>
    %202 = math.exp %201 : vector<8x16xf32>
    %cst_91 = arith.constant dense<0.000000e+00> : vector<8xf32>
    %203 = vector.multi_reduction <add>, %202, %cst_91 [1] : vector<8x16xf32> to vector<8xf32>
    %204 = vector.shape_cast %203 : vector<8xf32> to vector<8x1xf32>
    %205 = vector.broadcast %204 : vector<8x1xf32> to vector<8x16xf32>
    %206 = arith.divf %202, %205 : vector<8x16xf32>
    %207 = vector.shape_cast %206 : vector<8x16xf32> to vector<8x16x1xf32>
    %c0_92 = arith.constant 0 : index
    %c0_93 = arith.constant 0 : index
    %c0_94 = arith.constant 0 : index
    %208 = vector.load %arg7[%c0_92, %c0_93, %c0_94] : memref<8x16x32xf32, #tpu.memory_space<vmem>>, vector<8x16x32xf32>
    %209 = vector.broadcast %207 : vector<8x16x1xf32> to vector<8x16x32xf32>
    %210 = arith.mulf %209, %208 : vector<8x16x32xf32>
    %cst_95 = arith.constant dense<0.000000e+00> : vector<8x32xf32>
    %211 = vector.multi_reduction <add>, %210, %cst_95 [1] : vector<8x16x32xf32> to vector<8x32xf32>
    %212 = arith.index_cast %c3_i32 : i32 to index
    %c0_96 = arith.constant 0 : index
    %c0_97 = arith.constant 0 : index
    %213 = vector.load %arg0[%212, %c0_96, %c0_97] : memref<6x8x128xf32, #tpu.memory_space<vmem>>, vector<1x8x128xf32>
    %214 = vector.shape_cast %213 : vector<1x8x128xf32> to vector<8x128xf32>
    %215 = arith.addf %214, %189 : vector<8x128xf32>
    %216 = vector.extract_strided_slice %215 {offsets = [0, 0], sizes = [8, 96], strides = [1, 1]} : vector<8x128xf32> to vector<8x96xf32>
    %217 = arith.negf %216 : vector<8x96xf32>
    %218 = math.exp %217 : vector<8x96xf32>
    %cst_98 = arith.constant 1.000000e+00 : f32
    %219 = vector.broadcast %cst_98 : f32 to vector<8x96xf32>
    %220 = arith.addf %219, %218 : vector<8x96xf32>
    %221 = arith.divf %219, %220 : vector<8x96xf32>
    %222 = vector.extract_strided_slice %221 {offsets = [0, 0], sizes = [8, 32], strides = [1, 1]} : vector<8x96xf32> to vector<8x32xf32>
    %223 = vector.extract_strided_slice %221 {offsets = [0, 32], sizes = [8, 32], strides = [1, 1]} : vector<8x96xf32> to vector<8x32xf32>
    %224 = vector.extract_strided_slice %221 {offsets = [0, 64], sizes = [8, 32], strides = [1, 1]} : vector<8x96xf32> to vector<8x32xf32>
    %225 = vector.extract_strided_slice %215 {offsets = [0, 96], sizes = [8, 32], strides = [1, 1]} : vector<8x128xf32> to vector<8x32xf32>
    %226 = math.tanh %225 : vector<8x32xf32>
    %227 = arith.mulf %222, %211 : vector<8x32xf32>
    %228 = arith.mulf %223, %226 : vector<8x32xf32>
    %229 = arith.addf %227, %228 : vector<8x32xf32>
    %230 = math.tanh %229 : vector<8x32xf32>
    %231 = arith.mulf %224, %230 : vector<8x32xf32>
    %232 = arith.index_cast %c3_i32 : i32 to index
    %c0_99 = arith.constant 0 : index
    %c0_100 = arith.constant 0 : index
    %233 = vector.load %arg8[%232, %c0_99, %c0_100] : memref<6x8x32xf32, #tpu.memory_space<vmem>>, vector<1x8x32xf32>
    %234 = vector.shape_cast %233 : vector<1x8x32xf32> to vector<8x32xf32>
    %235 = vector.shape_cast %231 : vector<8x32xf32> to vector<1x8x32xf32>
    tpu.vector_store %arg8[%232, %c0_99, %c0_100], %235 {strides = array<i32>} : memref<6x8x32xf32, #tpu.memory_space<vmem>>, vector<1x8x32xf32>,
    %236 = arith.index_cast %c3_i32 : i32 to index
    %c0_101 = arith.constant 0 : index
    %c0_102 = arith.constant 0 : index
    %237 = vector.load %arg9[%236, %c0_101, %c0_102] : memref<6x8x16xf32, #tpu.memory_space<vmem>>, vector<1x8x16xf32>
    %238 = vector.shape_cast %237 : vector<1x8x16xf32> to vector<8x16xf32>
    %239 = vector.shape_cast %206 : vector<8x16xf32> to vector<1x8x16xf32>
    tpu.vector_store %arg9[%236, %c0_101, %c0_102], %239 {strides = array<i32>} : memref<6x8x16xf32, #tpu.memory_space<vmem>>, vector<1x8x16xf32>,
    %c4_i32 = arith.constant 4 : i32
    %c64_103 = arith.constant 64 : index
    %c0_104 = arith.constant 0 : index
    %240 = vector.load %arg3[%c64_103, %c0_104] : memref<128x256xf32, #tpu.memory_space<vmem>>, vector<32x160xf32>
    %cst_105 = arith.constant dense<0.000000e+00> : vector<8x160xf32>
    %241 = tpu.matmul %231, %240, %cst_105 {dimension_numbers = #tpu.dot_dimension_numbers<[1], [0], [0], [1], [0, 0, 1, 1], [], []>} : vector<8x32xf32>, vector<32x160xf32>, vector<8x160xf32> -> vector<8x160xf32>
    %c1_106 = arith.constant 1 : index
    %c0_107 = arith.constant 0 : index
    %242 = vector.load %arg4[%c1_106, %c0_107] : memref<8x256xf32, #tpu.memory_space<vmem>>, vector<1x160xf32>
    %243 = vector.broadcast %242 : vector<1x160xf32> to vector<8x160xf32>
    %244 = arith.addf %241, %243 : vector<8x160xf32>
    %245 = vector.extract_strided_slice %244 {offsets = [0, 0], sizes = [8, 128], strides = [1, 1]} : vector<8x160xf32> to vector<8x128xf32>
    %246 = vector.extract_strided_slice %244 {offsets = [0, 128], sizes = [8, 32], strides = [1, 1]} : vector<8x160xf32> to vector<8x32xf32>
    %247 = vector.shape_cast %246 : vector<8x32xf32> to vector<8x1x32xf32>
    %c0_108 = arith.constant 0 : index
    %c0_109 = arith.constant 0 : index
    %c0_110 = arith.constant 0 : index
    %248 = vector.load %arg6[%c0_108, %c0_109, %c0_110] : memref<8x16x32xf32, #tpu.memory_space<vmem>>, vector<8x16x32xf32>
    %249 = vector.broadcast %247 : vector<8x1x32xf32> to vector<8x16x32xf32>
    %250 = arith.mulf %249, %248 : vector<8x16x32xf32>
    %cst_111 = arith.constant dense<0.000000e+00> : vector<8x16xf32>
    %251 = vector.multi_reduction <add>, %250, %cst_111 [2] : vector<8x16x32xf32> to vector<8x16xf32>
    %cst_112 = arith.constant -1.000000e+30 : f32
    %252 = vector.broadcast %cst_112 : f32 to vector<8x16xf32>
    %253 = arith.select %14, %251, %252 : vector<8x16xi1>, vector<8x16xf32>
    %cst_113 = arith.constant dense<0xFF800000> : vector<8xf32>
    %254 = vector.multi_reduction <maximumf>, %253, %cst_113 [1] : vector<8x16xf32> to vector<8xf32>
    %255 = vector.shape_cast %254 : vector<8xf32> to vector<8x1xf32>
    %256 = vector.broadcast %255 : vector<8x1xf32> to vector<8x16xf32>
    %257 = arith.subf %253, %256 : vector<8x16xf32>
    %258 = math.exp %257 : vector<8x16xf32>
    %cst_114 = arith.constant dense<0.000000e+00> : vector<8xf32>
    %259 = vector.multi_reduction <add>, %258, %cst_114 [1] : vector<8x16xf32> to vector<8xf32>
    %260 = vector.shape_cast %259 : vector<8xf32> to vector<8x1xf32>
    %261 = vector.broadcast %260 : vector<8x1xf32> to vector<8x16xf32>
    %262 = arith.divf %258, %261 : vector<8x16xf32>
    %263 = vector.shape_cast %262 : vector<8x16xf32> to vector<8x16x1xf32>
    %c0_115 = arith.constant 0 : index
    %c0_116 = arith.constant 0 : index
    %c0_117 = arith.constant 0 : index
    %264 = vector.load %arg7[%c0_115, %c0_116, %c0_117] : memref<8x16x32xf32, #tpu.memory_space<vmem>>, vector<8x16x32xf32>
    %265 = vector.broadcast %263 : vector<8x16x1xf32> to vector<8x16x32xf32>
    %266 = arith.mulf %265, %264 : vector<8x16x32xf32>
    %cst_118 = arith.constant dense<0.000000e+00> : vector<8x32xf32>
    %267 = vector.multi_reduction <add>, %266, %cst_118 [1] : vector<8x16x32xf32> to vector<8x32xf32>
    %268 = arith.index_cast %c4_i32 : i32 to index
    %c0_119 = arith.constant 0 : index
    %c0_120 = arith.constant 0 : index
    %269 = vector.load %arg0[%268, %c0_119, %c0_120] : memref<6x8x128xf32, #tpu.memory_space<vmem>>, vector<1x8x128xf32>
    %270 = vector.shape_cast %269 : vector<1x8x128xf32> to vector<8x128xf32>
    %271 = arith.addf %270, %245 : vector<8x128xf32>
    %272 = vector.extract_strided_slice %271 {offsets = [0, 0], sizes = [8, 96], strides = [1, 1]} : vector<8x128xf32> to vector<8x96xf32>
    %273 = arith.negf %272 : vector<8x96xf32>
    %274 = math.exp %273 : vector<8x96xf32>
    %cst_121 = arith.constant 1.000000e+00 : f32
    %275 = vector.broadcast %cst_121 : f32 to vector<8x96xf32>
    %276 = arith.addf %275, %274 : vector<8x96xf32>
    %277 = arith.divf %275, %276 : vector<8x96xf32>
    %278 = vector.extract_strided_slice %277 {offsets = [0, 0], sizes = [8, 32], strides = [1, 1]} : vector<8x96xf32> to vector<8x32xf32>
    %279 = vector.extract_strided_slice %277 {offsets = [0, 32], sizes = [8, 32], strides = [1, 1]} : vector<8x96xf32> to vector<8x32xf32>
    %280 = vector.extract_strided_slice %277 {offsets = [0, 64], sizes = [8, 32], strides = [1, 1]} : vector<8x96xf32> to vector<8x32xf32>
    %281 = vector.extract_strided_slice %271 {offsets = [0, 96], sizes = [8, 32], strides = [1, 1]} : vector<8x128xf32> to vector<8x32xf32>
    %282 = math.tanh %281 : vector<8x32xf32>
    %283 = arith.mulf %278, %267 : vector<8x32xf32>
    %284 = arith.mulf %279, %282 : vector<8x32xf32>
    %285 = arith.addf %283, %284 : vector<8x32xf32>
    %286 = math.tanh %285 : vector<8x32xf32>
    %287 = arith.mulf %280, %286 : vector<8x32xf32>
    %288 = arith.index_cast %c4_i32 : i32 to index
    %c0_122 = arith.constant 0 : index
    %c0_123 = arith.constant 0 : index
    %289 = vector.load %arg8[%288, %c0_122, %c0_123] : memref<6x8x32xf32, #tpu.memory_space<vmem>>, vector<1x8x32xf32>
    %290 = vector.shape_cast %289 : vector<1x8x32xf32> to vector<8x32xf32>
    %291 = vector.shape_cast %287 : vector<8x32xf32> to vector<1x8x32xf32>
    tpu.vector_store %arg8[%288, %c0_122, %c0_123], %291 {strides = array<i32>} : memref<6x8x32xf32, #tpu.memory_space<vmem>>, vector<1x8x32xf32>,
    %292 = arith.index_cast %c4_i32 : i32 to index
    %c0_124 = arith.constant 0 : index
    %c0_125 = arith.constant 0 : index
    %293 = vector.load %arg9[%292, %c0_124, %c0_125] : memref<6x8x16xf32, #tpu.memory_space<vmem>>, vector<1x8x16xf32>
    %294 = vector.shape_cast %293 : vector<1x8x16xf32> to vector<8x16xf32>
    %295 = vector.shape_cast %262 : vector<8x16xf32> to vector<1x8x16xf32>
    tpu.vector_store %arg9[%292, %c0_124, %c0_125], %295 {strides = array<i32>} : memref<6x8x16xf32, #tpu.memory_space<vmem>>, vector<1x8x16xf32>,
    %c5_i32 = arith.constant 5 : i32
    %c64_126 = arith.constant 64 : index
    %c0_127 = arith.constant 0 : index
    %296 = vector.load %arg3[%c64_126, %c0_127] : memref<128x256xf32, #tpu.memory_space<vmem>>, vector<32x160xf32>
    %cst_128 = arith.constant dense<0.000000e+00> : vector<8x160xf32>
    %297 = tpu.matmul %287, %296, %cst_128 {dimension_numbers = #tpu.dot_dimension_numbers<[1], [0], [0], [1], [0, 0, 1, 1], [], []>} : vector<8x32xf32>, vector<32x160xf32>, vector<8x160xf32> -> vector<8x160xf32>
    %c1_129 = arith.constant 1 : index
    %c0_130 = arith.constant 0 : index
    %298 = vector.load %arg4[%c1_129, %c0_130] : memref<8x256xf32, #tpu.memory_space<vmem>>, vector<1x160xf32>
    %299 = vector.broadcast %298 : vector<1x160xf32> to vector<8x160xf32>
    %300 = arith.addf %297, %299 : vector<8x160xf32>
    %301 = vector.extract_strided_slice %300 {offsets = [0, 0], sizes = [8, 128], strides = [1, 1]} : vector<8x160xf32> to vector<8x128xf32>
    %302 = vector.extract_strided_slice %300 {offsets = [0, 128], sizes = [8, 32], strides = [1, 1]} : vector<8x160xf32> to vector<8x32xf32>
    %303 = vector.shape_cast %302 : vector<8x32xf32> to vector<8x1x32xf32>
    %c0_131 = arith.constant 0 : index
    %c0_132 = arith.constant 0 : index
    %c0_133 = arith.constant 0 : index
    %304 = vector.load %arg6[%c0_131, %c0_132, %c0_133] : memref<8x16x32xf32, #tpu.memory_space<vmem>>, vector<8x16x32xf32>
    %305 = vector.broadcast %303 : vector<8x1x32xf32> to vector<8x16x32xf32>
    %306 = arith.mulf %305, %304 : vector<8x16x32xf32>
    %cst_134 = arith.constant dense<0.000000e+00> : vector<8x16xf32>
    %307 = vector.multi_reduction <add>, %306, %cst_134 [2] : vector<8x16x32xf32> to vector<8x16xf32>
    %cst_135 = arith.constant -1.000000e+30 : f32
    %308 = vector.broadcast %cst_135 : f32 to vector<8x16xf32>
    %309 = arith.select %14, %307, %308 : vector<8x16xi1>, vector<8x16xf32>
    %cst_136 = arith.constant dense<0xFF800000> : vector<8xf32>
    %310 = vector.multi_reduction <maximumf>, %309, %cst_136 [1] : vector<8x16xf32> to vector<8xf32>
    %311 = vector.shape_cast %310 : vector<8xf32> to vector<8x1xf32>
    %312 = vector.broadcast %311 : vector<8x1xf32> to vector<8x16xf32>
    %313 = arith.subf %309, %312 : vector<8x16xf32>
    %314 = math.exp %313 : vector<8x16xf32>
    %cst_137 = arith.constant dense<0.000000e+00> : vector<8xf32>
    %315 = vector.multi_reduction <add>, %314, %cst_137 [1] : vector<8x16xf32> to vector<8xf32>
    %316 = vector.shape_cast %315 : vector<8xf32> to vector<8x1xf32>
    %317 = vector.broadcast %316 : vector<8x1xf32> to vector<8x16xf32>
    %318 = arith.divf %314, %317 : vector<8x16xf32>
    %319 = vector.shape_cast %318 : vector<8x16xf32> to vector<8x16x1xf32>
    %c0_138 = arith.constant 0 : index
    %c0_139 = arith.constant 0 : index
    %c0_140 = arith.constant 0 : index
    %320 = vector.load %arg7[%c0_138, %c0_139, %c0_140] : memref<8x16x32xf32, #tpu.memory_space<vmem>>, vector<8x16x32xf32>
    %321 = vector.broadcast %319 : vector<8x16x1xf32> to vector<8x16x32xf32>
    %322 = arith.mulf %321, %320 : vector<8x16x32xf32>
    %cst_141 = arith.constant dense<0.000000e+00> : vector<8x32xf32>
    %323 = vector.multi_reduction <add>, %322, %cst_141 [1] : vector<8x16x32xf32> to vector<8x32xf32>
    %324 = arith.index_cast %c5_i32 : i32 to index
    %c0_142 = arith.constant 0 : index
    %c0_143 = arith.constant 0 : index
    %325 = vector.load %arg0[%324, %c0_142, %c0_143] : memref<6x8x128xf32, #tpu.memory_space<vmem>>, vector<1x8x128xf32>
    %326 = vector.shape_cast %325 : vector<1x8x128xf32> to vector<8x128xf32>
    %327 = arith.addf %326, %301 : vector<8x128xf32>
    %328 = vector.extract_strided_slice %327 {offsets = [0, 0], sizes = [8, 96], strides = [1, 1]} : vector<8x128xf32> to vector<8x96xf32>
    %329 = arith.negf %328 : vector<8x96xf32>
    %330 = math.exp %329 : vector<8x96xf32>
    %cst_144 = arith.constant 1.000000e+00 : f32
    %331 = vector.broadcast %cst_144 : f32 to vector<8x96xf32>
    %332 = arith.addf %331, %330 : vector<8x96xf32>
    %333 = arith.divf %331, %332 : vector<8x96xf32>
    %334 = vector.extract_strided_slice %333 {offsets = [0, 0], sizes = [8, 32], strides = [1, 1]} : vector<8x96xf32> to vector<8x32xf32>
    %335 = vector.extract_strided_slice %333 {offsets = [0, 32], sizes = [8, 32], strides = [1, 1]} : vector<8x96xf32> to vector<8x32xf32>
    %336 = vector.extract_strided_slice %333 {offsets = [0, 64], sizes = [8, 32], strides = [1, 1]} : vector<8x96xf32> to vector<8x32xf32>
    %337 = vector.extract_strided_slice %327 {offsets = [0, 96], sizes = [8, 32], strides = [1, 1]} : vector<8x128xf32> to vector<8x32xf32>
    %338 = math.tanh %337 : vector<8x32xf32>
    %339 = arith.mulf %334, %323 : vector<8x32xf32>
    %340 = arith.mulf %335, %338 : vector<8x32xf32>
    %341 = arith.addf %339, %340 : vector<8x32xf32>
    %342 = math.tanh %341 : vector<8x32xf32>
    %343 = arith.mulf %336, %342 : vector<8x32xf32>
    %344 = arith.index_cast %c5_i32 : i32 to index
    %c0_145 = arith.constant 0 : index
    %c0_146 = arith.constant 0 : index
    %345 = vector.load %arg8[%344, %c0_145, %c0_146] : memref<6x8x32xf32, #tpu.memory_space<vmem>>, vector<1x8x32xf32>
    %346 = vector.shape_cast %345 : vector<1x8x32xf32> to vector<8x32xf32>
    %347 = vector.shape_cast %343 : vector<8x32xf32> to vector<1x8x32xf32>
    tpu.vector_store %arg8[%344, %c0_145, %c0_146], %347 {strides = array<i32>} : memref<6x8x32xf32, #tpu.memory_space<vmem>>, vector<1x8x32xf32>,
    %348 = arith.index_cast %c5_i32 : i32 to index
    %c0_147 = arith.constant 0 : index
    %c0_148 = arith.constant 0 : index
    %349 = vector.load %arg9[%348, %c0_147, %c0_148] : memref<6x8x16xf32, #tpu.memory_space<vmem>>, vector<1x8x16xf32>
    %350 = vector.shape_cast %349 : vector<1x8x16xf32> to vector<8x16xf32>
    %351 = vector.shape_cast %318 : vector<8x16xf32> to vector<1x8x16xf32>
    tpu.vector_store %arg9[%348, %c0_147, %c0_148], %351 {strides = array<i32>} : memref<6x8x16xf32, #tpu.memory_space<vmem>>, vector<1x8x16xf32>,
    %c6_i32 = arith.constant 6 : i32
    %c0_149 = arith.constant 0 : index
    %c0_150 = arith.constant 0 : index
    %c0_151 = arith.constant 0 : index
    %352 = vector.load %arg8[%c0_149, %c0_150, %c0_151] : memref<6x8x32xf32, #tpu.memory_space<vmem>>, vector<6x8x32xf32>
    %353 = vector.shape_cast %352 : vector<6x8x32xf32> to vector<48x32xf32>
    %c96 = arith.constant 96 : index
    %c0_152 = arith.constant 0 : index
    %354 = vector.load %arg3[%c96, %c0_152] : memref<128x256xf32, #tpu.memory_space<vmem>>, vector<32x64xf32>
    %cst_153 = arith.constant dense<0.000000e+00> : vector<48x64xf32>
    %355 = tpu.matmul %353, %354, %cst_153 {dimension_numbers = #tpu.dot_dimension_numbers<[1], [0], [0], [1], [0, 0, 1, 1], [], []>} : vector<48x32xf32>, vector<32x64xf32>, vector<48x64xf32> -> vector<48x64xf32>
    %c2 = arith.constant 2 : index
    %c0_154 = arith.constant 0 : index
    %356 = vector.load %arg4[%c2, %c0_154] : memref<8x256xf32, #tpu.memory_space<vmem>>, vector<1x64xf32>
    %357 = vector.broadcast %356 : vector<1x64xf32> to vector<48x64xf32>
    %358 = arith.addf %355, %357 : vector<48x64xf32>
    %cst_155 = arith.constant dense<0xFF800000> : vector<48xf32>
    %359 = vector.multi_reduction <maximumf>, %358, %cst_155 [1] : vector<48x64xf32> to vector<48xf32>
    %360 = vector.shape_cast %359 : vector<48xf32> to vector<48x1xf32>
    %361 = vector.broadcast %360 : vector<48x1xf32> to vector<48x64xf32>
    %362 = arith.subf %358, %361 : vector<48x64xf32>
    %363 = math.exp %362 : vector<48x64xf32>
    %cst_156 = arith.constant dense<0.000000e+00> : vector<48xf32>
    %364 = vector.multi_reduction <add>, %363, %cst_156 [1] : vector<48x64xf32> to vector<48xf32>
    %365 = vector.shape_cast %364 : vector<48xf32> to vector<48x1xf32>
    %366 = math.log %365 : vector<48x1xf32>
    %367 = vector.broadcast %366 : vector<48x1xf32> to vector<48x64xf32>
    %368 = arith.subf %362, %367 : vector<48x64xf32>
    %369 = vector.shape_cast %368 : vector<48x64xf32> to vector<6x8x64xf32>
    %c0_157 = arith.constant 0 : index
    %c0_158 = arith.constant 0 : index
    %c0_159 = arith.constant 0 : index
    %370 = vector.load %arg8[%c0_157, %c0_158, %c0_159] : memref<6x8x32xf32, #tpu.memory_space<vmem>>, vector<6x8x32xf32>
    %c0_160 = arith.constant 0 : index
    %c0_161 = arith.constant 0 : index
    %c0_162 = arith.constant 0 : index
    %371 = vector.load %arg9[%c0_160, %c0_161, %c0_162] : memref<6x8x16xf32, #tpu.memory_space<vmem>>, vector<6x8x16xf32>
    %cst_163 = arith.constant 0.000000e+00 : f32
    %372 = vector.broadcast %cst_163 : f32 to vector<6x8x16xf32>
    %373 = tpu.concatenate %369, %370, %371, %372 in 2 : vector<6x8x64xf32>, vector<6x8x32xf32>, vector<6x8x16xf32>, vector<6x8x16xf32> -> vector<6x8x128xf32>
    %c0_164 = arith.constant 0 : index
    %c0_165 = arith.constant 0 : index
    %c0_166 = arith.constant 0 : index
    %374 = vector.load %arg5[%c0_164, %c0_165, %c0_166] : memref<6x8x128xf32, #tpu.memory_space<vmem>>, vector<6x8x128xf32>
    tpu.vector_store %arg5[%c0_164, %c0_165, %c0_166], %373 {strides = array<i32>} : memref<6x8x128xf32, #tpu.memory_space<vmem>>, vector<6x8x128xf32>,
    return
  }
}

</mosaic_0001>

<llo_original>
// kernel: attn_decoder_decode.1
$region0: #{attn_decoder_decode.1}
  #allocation0 [shape = 'u32[]', space=smem, size = 0x4, offset = 0x4, fixed_abs, tag = 'smem constant byte address 0x4 - core index']
  #allocation1 [shape = 'u32[144,128]{1,0:T(1,128)}', space=vmem, size = 0x12000, scoped, tag = 'internal scratch']
  #allocation2 [shape = 'f32[8,16,32]{2,1,0:T(8,128)}', space=vmem, size = 0x10000, scoped, tag = 'scratch operand']
  #allocation3 [shape = 'f32[8,16,32]{2,1,0:T(8,128)}', space=vmem, size = 0x10000, scoped, tag = 'scratch operand']
  #allocation4 [shape = 'f32[6,8,32]{2,1,0:T(8,128)}', space=vmem, size = 0x6000, scoped, tag = 'scratch operand']
  #allocation5 [shape = 'f32[6,8,16]{2,1,0:T(8,128)}', space=vmem, size = 0x6000, scoped, tag = 'scratch operand']
  %s0 = inlined_call_operand.vmem [shape: f32[6,8,128], index: 0, kind: input, shape index: {}]
  %s1 = inlined_call_operand.vmem [shape: f32[8,32], index: 1, kind: input, shape index: {}]
  %s2 = inlined_call_operand.vmem [shape: f32[128,64], index: 2, kind: input, shape index: {}]
  %s3 = inlined_call_operand.vmem [shape: f32[128,256], index: 3, kind: input, shape index: {}]
  %s4 = inlined_call_operand.vmem [shape: f32[8,256], index: 4, kind: input, shape index: {}]
  %s5 = inlined_call_operand.vmem [shape: f32[6,8,128], index: 5, kind: output, shape index: {}]
  %s6 = sld [smem:[#allocation0]]
  $region30: #{attn_decoder_decode.1} parent=0
    _
  %s8 = ssub.s32 1, %s6
  %s9 = scalar_select 0, %s8, %s6
  // Predicated region
  $region2: #{attn_decoder_decode.1} parent=0 // pred_check
    _
  $region3: #{attn_decoder_decode.1} parent=0 // pred_check_branch
    %11 = sbr.rel (0) target = $region5
  $region4: #{attn_decoder_decode.1} parent=0 // pred_region
    _
  $region5: #{attn_decoder_decode.1} parent=0 // pred_fallthru
    _
  // Predicated region
  $region6: #{attn_decoder_decode.1} parent=0 // pred_check
    _
  $region7: #{attn_decoder_decode.1} parent=0 // pred_check_branch
    %13 = sbr.rel (0) target = $region9
  $region8: #{attn_decoder_decode.1} parent=0 // pred_region
    _
  $region9: #{attn_decoder_decode.1} parent=0 // pred_fallthru
    _
  // Predicated region
  $region10: #{attn_decoder_decode.1} parent=0 // pred_check
    _
  $region11: #{attn_decoder_decode.1} parent=0 // pred_check_branch
    %15 = sbr.rel (0) target = $region13
  $region12: #{attn_decoder_decode.1} parent=0 // pred_region
    _
  $region13: #{attn_decoder_decode.1} parent=0 // pred_fallthru
    _
  // Predicated region
  $region14: #{attn_decoder_decode.1} parent=0 // pred_check
    _
  $region15: #{attn_decoder_decode.1} parent=0 // pred_check_branch
    %17 = sbr.rel (0) target = $region17
  $region16: #{attn_decoder_decode.1} parent=0 // pred_region
    _
  $region17: #{attn_decoder_decode.1} parent=0 // pred_fallthru
    _
  // Predicated region
  $region18: #{attn_decoder_decode.1} parent=0 // pred_check
    _
  $region19: #{attn_decoder_decode.1} parent=0 // pred_check_branch
    %19 = sbr.rel (0) target = $region21
  $region20: #{attn_decoder_decode.1} parent=0 // pred_region
    _
  $region21: #{attn_decoder_decode.1} parent=0 // pred_fallthru
    _
  %v20 = vld [vmem:[%s2] sm:$0xff]
  %v21 = vld [vmem:[%s2 + $0x8] sm:$0xff]
  %v22 = vld [vmem:[%s2 + $0x10] sm:$0xff]
  %v23 = vld [vmem:[%s2 + $0x18] sm:$0xff]
  %v24 = vld [vmem:[%s2 + $0x20] sm:$0xff]
  %v25 = vld [vmem:[%s2 + $0x28] sm:$0xff]
  %v26 = vld [vmem:[%s2 + $0x30] sm:$0xff]
  %v27 = vld [vmem:[%s2 + $0x38] sm:$0xff]
  %v28 = vld [vmem:[%s2 + $0x40] sm:$0xff]
  %v29 = vld [vmem:[%s2 + $0x48] sm:$0xff]
  %v30 = vld [vmem:[%s2 + $0x50] sm:$0xff]
  %v31 = vld [vmem:[%s2 + $0x58] sm:$0xff]
  %v32 = vld [vmem:[%s2 + $0x60] sm:$0xff]
  %v33 = vld [vmem:[%s2 + $0x68] sm:$0xff]
  %v34 = vld [vmem:[%s2 + $0x70] sm:$0xff]
  %v35 = vld [vmem:[%s2 + $0x78] sm:$0xff]
  %v36 = vld [vmem:[%s3] sm:$0xff]
  %v37 = vld [vmem:[%s3 + $0x10] sm:$0xff]
  %v38 = vld [vmem:[%s3 + $0x20] sm:$0xff]
  %v39 = vld [vmem:[%s3 + $0x30] sm:$0xff]
  %v40 = vld [vmem:[%s3 + $0x40] sm:$0xff]
  %v41 = vld [vmem:[%s3 + $0x50] sm:$0xff]
  %v42 = vld [vmem:[%s3 + $0x60] sm:$0xff]
  %v43 = vld [vmem:[%s3 + $0x70] sm:$0xff]
  %v44 = vld [vmem:[%s4] ss:$0 sm:$0xff]
  %vm45 = vcmask 523264
  %v47 = vsel %vm45, %v20, 0
  %v50 = vsel %vm45, %v21, 0
  %v53 = vsel %vm45, %v22, 0
  %v56 = vsel %vm45, %v23, 0
  %v59 = vsel %vm45, %v24, 0
  %v62 = vsel %vm45, %v25, 0
  %v65 = vsel %vm45, %v26, 0
  %v68 = vsel %vm45, %v27, 0
  %v71 = vsel %vm45, %v28, 0
  %v74 = vsel %vm45, %v29, 0
  %v77 = vsel %vm45, %v30, 0
  %v80 = vsel %vm45, %v31, 0
  %v83 = vsel %vm45, %v32, 0
  %v86 = vsel %vm45, %v33, 0
  %v89 = vsel %vm45, %v34, 0
  %v92 = vsel %vm45, %v35, 0
  %94 = vmatprep.subr.mxu0 0.0
  %95 = vmatpush1.msra.mxu0 %v36
  %96 = vmatprep.subr.mxu0 0.0
  %97 = vmatpush1.msra.mxu0 %v37
  %98 = vmatprep.subr.mxu0 0.0
  %99 = vmatpush1.msra.mxu0 %v38
  %100 = vmatprep.subr.mxu0 0.0
  %101 = vmatpush1.msra.mxu0 %v39
  %102 = vmatprep.subr.mxu0 0.0
  %103 = vmatpush1.msra.mxu0 %v40
  %104 = vmatprep.subr.mxu0 0.0
  %105 = vmatpush1.msra.mxu0 %v41
  %106 = vmatprep.subr.mxu0 0.0
  %107 = vmatpush1.msra.mxu0 %v42
  %108 = vmatprep.subr.mxu0 0.0
  %109 = vmatpush1.msra.mxu0 %v43
  %110 = vmatprep.subr.mxu0 0.0
  %111 = vmatpush1.msra.mxu0 0.0
  %112 = vmatprep.subr.mxu0 0.0
  %113 = vmatpush1.msra.mxu0 0.0
  %114 = vmatprep.subr.mxu0 0.0
  %115 = vmatpush1.msra.mxu0 0.0
  %116 = vmatprep.subr.mxu0 0.0
  %117 = vmatpush1.msra.mxu0 0.0
  %118 = vmatprep.subr.mxu0 0.0
  %119 = vmatpush1.msra.mxu0 0.0
  %120 = vmatprep.subr.mxu0 0.0
  %121 = vmatpush1.msra.mxu0 0.0
  %122 = vmatprep.subr.mxu0 0.0
  %123 = vmatpush1.msra.mxu0 0.0
  %124 = vmatprep.subr.mxu0 0.0
  %125 = vmatpush1.msra.mxu0 0.0
  %126 = vmatprep.subr.mxu0 0.0
  %127 = vmatpush1.msra.mxu0 0.0
  %128 = vmatprep.subr.mxu0 0.0
  %129 = vmatpush1.msra.mxu0 0.0
  %130 = vmatprep.subr.mxu0 0.0
  %131 = vmatpush1.msra.mxu0 0.0
  %132 = vmatprep.subr.mxu0 0.0
  %133 = vmatpush1.msra.mxu0 0.0
  %134 = vmatprep.subr.mxu0 0.0
  %135 = vmatpush1.msra.mxu0 0.0
  %136 = vmatprep.subr.mxu0 0.0
  %137 = vmatpush1.msra.mxu0 0.0
  %138 = vmatprep.subr.mxu0 0.0
  %139 = vmatpush1.msra.mxu0 0.0
  %140 = vmatprep.subr.mxu0 0.0
  %141 = vmatpush1.msra.mxu0 0.0
  %142 = vmatprep.subr.mxu0 0.0
  %143 = vmatpush1.msra.mxu0 0.0
  %144 = vmatprep.subr.mxu0 0.0
  %145 = vmatpush1.msra.mxu0 0.0
  %146 = vmatprep.subr.mxu0 0.0
  %147 = vmatpush1.msra.mxu0 0.0
  %148 = vmatprep.subr.mxu0 0.0
  %149 = vmatpush1.msra.mxu0 0.0
  %150 = vmatprep.subr.mxu0 0.0
  %151 = vmatpush1.msra.mxu0 0.0
  %152 = vmatprep.subr.mxu0 0.0
  %153 = vmatpush1.msra.mxu0 0.0
  %154 = vmatprep.subr.mxu0 0.0
  %155 = vmatpush1.msra.mxu0 0.0
  %156 = vmatprep.subr.mxu0 0.0
  %157 = vmatpush1.msra.mxu0 0.0
  %158 = vmatprep.mubr.f32.mxu0 0.0
  %159 = vmatmul.mubr.f32.gmra.mrb[0].mxu0 %v47
  %v160 = vpop.f32.mrb[0].mxu0
  %v161 = vadd.f32 %v44, %v160
  %v162 = vpop.f32.mrb[0].mxu0
  %163 = vmatprep.mubr.f32.mxu0 0.0
  %164 = vmatmul.mubr.f32.gmra.mrb[0].mxu0 %v50
  %v165 = vpop.f32.mrb[0].mxu0
  %v166 = vadd.f32 %v44, %v165
  %v167 = vpop.f32.mrb[0].mxu0
  %168 = vmatprep.mubr.f32.mxu0 0.0
  %169 = vmatmul.mubr.f32.gmra.mrb[0].mxu0 %v53
  %v170 = vpop.f32.mrb[0].mxu0
  %v171 = vadd.f32 %v44, %v170
  %v172 = vpop.f32.mrb[0].mxu0
  %173 = vmatprep.mubr.f32.mxu0 0.0
  %174 = vmatmul.mubr.f32.gmra.mrb[0].mxu0 %v56
  %v175 = vpop.f32.mrb[0].mxu0
  %v176 = vadd.f32 %v44, %v175
  %v177 = vpop.f32.mrb[0].mxu0
  %178 = vmatprep.mubr.f32.mxu0 0.0
  %179 = vmatmul.mubr.f32.gmra.mrb[0].mxu0 %v59
  %v180 = vpop.f32.mrb[0].mxu0
  %v181 = vadd.f32 %v44, %v180
  %v182 = vpop.f32.mrb[0].mxu0
  %183 = vmatprep.mubr.f32.mxu0 0.0
  %184 = vmatmul.mubr.f32.gmra.mrb[0].mxu0 %v62
  %v185 = vpop.f32.mrb[0].mxu0
  %v186 = vadd.f32 %v44, %v185
  %v187 = vpop.f32.mrb[0].mxu0
  %188 = vmatprep.mubr.f32.mxu0 0.0
  %189 = vmatmul.mubr.f32.gmra.mrb[0].mxu0 %v65
  %v190 = vpop.f32.mrb[0].mxu0
  %v191 = vadd.f32 %v44, %v190
  %v192 = vpop.f32.mrb[0].mxu0
  %193 = vmatprep.mubr.f32.mxu0 0.0
  %194 = vmatmul.mubr.f32.gmra.mrb[0].mxu0 %v68
  %v195 = vpop.f32.mrb[0].mxu0
  %v196 = vadd.f32 %v44, %v195
  %v197 = vpop.f32.mrb[0].mxu0
  %198 = vmatprep.mubr.f32.mxu0 0.0
  %199 = vmatmul.mubr.f32.gmra.mrb[0].mxu0 %v71
  %v200 = vpop.f32.mrb[0].mxu0
  %v201 = vadd.f32 %v44, %v200
  %v202 = vpop.f32.mrb[0].mxu0
  %203 = vmatprep.mubr.f32.mxu0 0.0
  %204 = vmatmul.mubr.f32.gmra.mrb[0].mxu0 %v74
  %v205 = vpop.f32.mrb[0].mxu0
  %v206 = vadd.f32 %v44, %v205
  %v207 = vpop.f32.mrb[0].mxu0
  %208 = vmatprep.mubr.f32.mxu0 0.0
  %209 = vmatmul.mubr.f32.gmra.mrb[0].mxu0 %v77
  %v210 = vpop.f32.mrb[0].mxu0
  %v211 = vadd.f32 %v44, %v210
  %v212 = vpop.f32.mrb[0].mxu0
  %213 = vmatprep.mubr.f32.mxu0 0.0
  %214 = vmatmul.mubr.f32.gmra.mrb[0].mxu0 %v80
  %v215 = vpop.f32.mrb[0].mxu0
  %v216 = vadd.f32 %v44, %v215
  %v217 = vpop.f32.mrb[0].mxu0
  %218 = vmatprep.mubr.f32.mxu0 0.0
  %219 = vmatmul.mubr.f32.gmra.mrb[0].mxu0 %v83
  %v220 = vpop.f32.mrb[0].mxu0
  %v221 = vadd.f32 %v44, %v220
  %v222 = vpop.f32.mrb[0].mxu0
  %223 = vmatprep.mubr.f32.mxu0 0.0
  %224 = vmatmul.mubr.f32.gmra.mrb[0].mxu0 %v86
  %v225 = vpop.f32.mrb[0].mxu0
  %v226 = vadd.f32 %v44, %v225
  %v227 = vpop.f32.mrb[0].mxu0
  %228 = vmatprep.mubr.f32.mxu0 0.0
  %229 = vmatmul.mubr.f32.gmra.mrb[0].mxu0 %v89
  %v230 = vpop.f32.mrb[0].mxu0
  %v231 = vadd.f32 %v44, %v230
  %v232 = vpop.f32.mrb[0].mxu0
  %233 = vmatprep.mubr.f32.mxu0 0.0
  %234 = vmatmul.mubr.f32.gmra.mrb[0].mxu0 %v92
  %v235 = vpop.f32.mrb[0].mxu0
  %v236 = vadd.f32 %v44, %v235
  %v237 = vpop.f32.mrb[0].mxu0
  %238 = vdwg.mxu0
  %vm239 = vcmask 261120
  %240 = vst.msk [vmem:[#allocation2] sm:$0xff] %vm239, %v161
  %241 = vst.msk [vmem:[#allocation2 + $0x8] sm:$0xff] %vm239, %v166
  %242 = vst.msk [vmem:[#allocation2 + $0x10] sm:$0xff] %vm239, %v171
  %243 = vst.msk [vmem:[#allocation2 + $0x18] sm:$0xff] %vm239, %v176
  %244 = vst.msk [vmem:[#allocation2 + $0x20] sm:$0xff] %vm239, %v181
  %245 = vst.msk [vmem:[#allocation2 + $0x28] sm:$0xff] %vm239, %v186
  %246 = vst.msk [vmem:[#allocation2 + $0x30] sm:$0xff] %vm239, %v191
  %247 = vst.msk [vmem:[#allocation2 + $0x38] sm:$0xff] %vm239, %v196
  %248 = vst.msk [vmem:[#allocation2 + $0x40] sm:$0xff] %vm239, %v201
  %249 = vst.msk [vmem:[#allocation2 + $0x48] sm:$0xff] %vm239, %v206
  %250 = vst.msk [vmem:[#allocation2 + $0x50] sm:$0xff] %vm239, %v211
  %251 = vst.msk [vmem:[#allocation2 + $0x58] sm:$0xff] %vm239, %v216
  %252 = vst.msk [vmem:[#allocation2 + $0x60] sm:$0xff] %vm239, %v221
  %253 = vst.msk [vmem:[#allocation2 + $0x68] sm:$0xff] %vm239, %v226
  %254 = vst.msk [vmem:[#allocation2 + $0x70] sm:$0xff] %vm239, %v231
  %255 = vst.msk [vmem:[#allocation2 + $0x78] sm:$0xff] %vm239, %v236
  %272 = vrot.lane.b32.xlu0 %v161, 96
  %v273 = vpop.permute.xlu0 %272
  %274 = vrot.lane.b32.xlu0 %v166, 96
  %v275 = vpop.permute.xlu0 %274
  %276 = vrot.lane.b32.xlu0 %v171, 96
  %v277 = vpop.permute.xlu0 %276
  %278 = vrot.lane.b32.xlu0 %v176, 96
  %v279 = vpop.permute.xlu0 %278
  %280 = vrot.lane.b32.xlu0 %v181, 96
  %v281 = vpop.permute.xlu0 %280
  %282 = vrot.lane.b32.xlu0 %v186, 96
  %v283 = vpop.permute.xlu0 %282
  %284 = vrot.lane.b32.xlu0 %v191, 96
  %v285 = vpop.permute.xlu0 %284
  %286 = vrot.lane.b32.xlu0 %v196, 96
  %v287 = vpop.permute.xlu0 %286
  %288 = vrot.lane.b32.xlu0 %v201, 96
  %v289 = vpop.permute.xlu0 %288
  %290 = vrot.lane.b32.xlu0 %v206, 96
  %v291 = vpop.permute.xlu0 %290
  %292 = vrot.lane.b32.xlu0 %v211, 96
  %v293 = vpop.permute.xlu0 %292
  %294 = vrot.lane.b32.xlu0 %v216, 96
  %v295 = vpop.permute.xlu0 %294
  %296 = vrot.lane.b32.xlu0 %v221, 96
  %v297 = vpop.permute.xlu0 %296
  %298 = vrot.lane.b32.xlu0 %v226, 96
  %v299 = vpop.permute.xlu0 %298
  %300 = vrot.lane.b32.xlu0 %v231, 96
  %v301 = vpop.permute.xlu0 %300
  %302 = vrot.lane.b32.xlu0 %v236, 96
  %v303 = vpop.permute.xlu0 %302
  %320 = vst.msk [vmem:[#allocation3] sm:$0xff] %vm239, %v273
  %321 = vst.msk [vmem:[#allocation3 + $0x8] sm:$0xff] %vm239, %v275
  %322 = vst.msk [vmem:[#allocation3 + $0x10] sm:$0xff] %vm239, %v277
  %323 = vst.msk [vmem:[#allocation3 + $0x18] sm:$0xff] %vm239, %v279
  %324 = vst.msk [vmem:[#allocation3 + $0x20] sm:$0xff] %vm239, %v281
  %325 = vst.msk [vmem:[#allocation3 + $0x28] sm:$0xff] %vm239, %v283
  %326 = vst.msk [vmem:[#allocation3 + $0x30] sm:$0xff] %vm239, %v285
  %327 = vst.msk [vmem:[#allocation3 + $0x38] sm:$0xff] %vm239, %v287
  %328 = vst.msk [vmem:[#allocation3 + $0x40] sm:$0xff] %vm239, %v289
  %329 = vst.msk [vmem:[#allocation3 + $0x48] sm:$0xff] %vm239, %v291
  %330 = vst.msk [vmem:[#allocation3 + $0x50] sm:$0xff] %vm239, %v293
  %331 = vst.msk [vmem:[#allocation3 + $0x58] sm:$0xff] %vm239, %v295
  %332 = vst.msk [vmem:[#allocation3 + $0x60] sm:$0xff] %vm239, %v297
  %333 = vst.msk [vmem:[#allocation3 + $0x68] sm:$0xff] %vm239, %v299
  %334 = vst.msk [vmem:[#allocation3 + $0x70] sm:$0xff] %vm239, %v301
  %335 = vst.msk [vmem:[#allocation3 + $0x78] sm:$0xff] %vm239, %v303
  %v336 = vlaneseq
  %v337 = vand.u32 %v336, 127
  %vm338 = vcmp.lt.s32.totalorder %v337, 15
  %v339 = vld [vmem:[%s1] sm:$0xff]
  %v340 = vld [vmem:[%s3 + $0x80] sm:$0xff]
  %v341 = vld [vmem:[%s3 + $0x88] sm:$0xff]
  %v342 = vld [vmem:[%s3 + $0x90] sm:$0xff]
  %v343 = vld [vmem:[%s3 + $0x98] sm:$0xff]
  %v344 = vld [vmem:[%s3 + $0xa0] sm:$0xff]
  %v345 = vld [vmem:[%s3 + $0xa8] sm:$0xff]
  %v346 = vld [vmem:[%s3 + $0xb0] sm:$0xff]
  %v347 = vld [vmem:[%s3 + $0xb8] sm:$0xff]
  %s348 = scalar_lea.vmem %s4, 1
  %v349 = vld [vmem:[%s348] ss:$8 sm:$0x3]
  %v351 = vlaneseq
  %v352 = vshrl.u32 %v351, 7
  %v353 = vsub.s32 0, %v352
  %v354 = vrot.slane %v349, %v353
  %v355 = vlaneseq
  %v356 = vshrl.u32 %v355, 7
  %v357 = vsub.s32 1, %v356
  %v358 = vrot.slane %v349, %v357
  %v362 = vsel %vm239, %v339, 0
  %364 = vmatprep.subr.mxu0 %v341
  %365 = vmatpush1.msra.mxu0 %v340
  %366 = vmatprep.subr.mxu0 %v343
  %367 = vmatpush1.msra.mxu0 %v342
  %368 = vmatprep.subr.mxu0 %v345
  %369 = vmatpush1.msra.mxu0 %v344
  %370 = vmatprep.subr.mxu0 %v347
  %371 = vmatpush1.msra.mxu0 %v346
  %372 = vmatprep.subr.mxu0 0.0
  %373 = vmatpush1.msra.mxu0 0.0
  %374 = vmatprep.subr.mxu0 0.0
  %375 = vmatpush1.msra.mxu0 0.0
  %376 = vmatprep.subr.mxu0 0.0
  %377 = vmatpush1.msra.mxu0 0.0
  %378 = vmatprep.subr.mxu0 0.0
  %379 = vmatpush1.msra.mxu0 0.0
  %380 = vmatprep.subr.mxu0 0.0
  %381 = vmatpush1.msra.mxu0 0.0
  %382 = vmatprep.subr.mxu0 0.0
  %383 = vmatpush1.msra.mxu0 0.0
  %384 = vmatprep.subr.mxu0 0.0
  %385 = vmatpush1.msra.mxu0 0.0
  %386 = vmatprep.subr.mxu0 0.0
  %387 = vmatpush1.msra.mxu0 0.0
  %388 = vmatprep.subr.mxu0 0.0
  %389 = vmatpush1.msra.mxu0 0.0
  %390 = vmatprep.subr.mxu0 0.0
  %391 = vmatpush1.msra.mxu0 0.0
  %392 = vmatprep.subr.mxu0 0.0
  %393 = vmatpush1.msra.mxu0 0.0
  %394 = vmatprep.subr.mxu0 0.0
  %395 = vmatpush1.msra.mxu0 0.0
  %396 = vmatprep.subr.mxu0 0.0
  %397 = vmatpush1.msra.mxu0 0.0
  %398 = vmatprep.subr.mxu0 0.0
  %399 = vmatpush1.msra.mxu0 0.0
  %400 = vmatprep.subr.mxu0 0.0
  %401 = vmatpush1.msra.mxu0 0.0
  %402 = vmatprep.subr.mxu0 0.0
  %403 = vmatpush1.msra.mxu0 0.0
  %404 = vmatprep.subr.mxu0 0.0
  %405 = vmatpush1.msra.mxu0 0.0
  %406 = vmatprep.subr.mxu0 0.0
  %407 = vmatpush1.msra.mxu0 0.0
  %408 = vmatprep.subr.mxu0 0.0
  %409 = vmatpush1.msra.mxu0 0.0
  %410 = vmatprep.subr.mxu0 0.0
  %411 = vmatpush1.msra.mxu0 0.0
  %412 = vmatprep.subr.mxu0 0.0
  %413 = vmatpush1.msra.mxu0 0.0
  %414 = vmatprep.subr.mxu0 0.0
  %415 = vmatpush1.msra.mxu0 0.0
  %416 = vmatprep.subr.mxu0 0.0
  %417 = vmatpush1.msra.mxu0 0.0
  %418 = vmatprep.subr.mxu0 0.0
  %419 = vmatpush1.msra.mxu0 0.0
  %420 = vmatprep.subr.mxu0 0.0
  %421 = vmatpush1.msra.mxu0 0.0
  %422 = vmatprep.subr.mxu0 0.0
  %423 = vmatpush1.msra.mxu0 0.0
  %424 = vmatprep.subr.mxu0 0.0
  %425 = vmatpush1.msra.mxu0 0.0
  %426 = vmatprep.subr.mxu0 0.0
  %427 = vmatpush1.msra.mxu0 0.0
  %428 = vmatprep.mubr.f32.mxu0 0.0
  %429 = vmatmul.mubr.f32.gmra.mrb[0].mxu0 %v362
  %v430 = vpop.f32.mrb[0].mxu0
  %v431 = vadd.f32 %v354, %v430
  %v432 = vpop.f32.mrb[0].mxu0
  %v433 = vadd.f32 %v358, %v432
  %434 = vdwg.mxu0
  %v436 = vcombine.high %v433, %v433
  %v438 = vunpack.c.l.s4 1966171168
  %v439 = vunpack.c.0.s8 %v438
  %v440 = vlaneseq
  %v441 = vshrl.u32 %v440, 7
  %v442 = vsub.s32 %v439, %v441
  %v443 = vrot.slane %v433, %v442
  %v445 = vunpack.c.l.s4 1966171168
  %v446 = vunpack.c.0.s8 %v445
  %v447 = vlaneseq
  %v448 = vshrl.u32 %v447, 7
  %v449 = vsub.s32 %v446, %v448
  %v450 = vrot.slane %v436, %v449
  %v451 = vcombine.high %v443, %v443
  %v452 = vcombine.high %v450, %v450
  %v454 = vunpack.c.l.s4 1966171168
  %v455 = vunpack.c.0.s8 %v454
  %v456 = vlaneseq
  %v457 = vshrl.u32 %v456, 7
  %v458 = vsub.s32 %v455, %v457
  %v459 = vrot.slane %v443, %v458
  %v461 = vunpack.c.l.s4 1966171168
  %v462 = vunpack.c.0.s8 %v461
  %v463 = vlaneseq
  %v464 = vshrl.u32 %v463, 7
  %v465 = vsub.s32 %v462, %v464
  %v466 = vrot.slane %v450, %v465
  %v468 = vunpack.c.l.s4 1966171168
  %v469 = vunpack.c.0.s8 %v468
  %v470 = vlaneseq
  %v471 = vshrl.u32 %v470, 7
  %v472 = vsub.s32 %v469, %v471
  %v473 = vrot.slane %v451, %v472
  %v475 = vunpack.c.l.s4 1966171168
  %v476 = vunpack.c.0.s8 %v475
  %v477 = vlaneseq
  %v478 = vshrl.u32 %v477, 7
  %v479 = vsub.s32 %v476, %v478
  %v480 = vrot.slane %v452, %v479
  %v481 = vcombine.high %v459, %v459
  %v482 = vcombine.high %v466, %v466
  %v483 = vcombine.high %v473, %v473
  %v484 = vcombine.high %v480, %v480
  %v485 = vld [vmem:[#allocation2] sm:$0xff]
  %v486 = vld [vmem:[#allocation2 + $0x8] sm:$0xff]
  %v487 = vld [vmem:[#allocation2 + $0x10] sm:$0xff]
  %v488 = vld [vmem:[#allocation2 + $0x18] sm:$0xff]
  %v489 = vld [vmem:[#allocation2 + $0x20] sm:$0xff]
  %v490 = vld [vmem:[#allocation2 + $0x28] sm:$0xff]
  %v491 = vld [vmem:[#allocation2 + $0x30] sm:$0xff]
  %v492 = vld [vmem:[#allocation2 + $0x38] sm:$0xff]
  %v493 = vld [vmem:[#allocation2 + $0x40] sm:$0xff]
  %v494 = vld [vmem:[#allocation2 + $0x48] sm:$0xff]
  %v495 = vld [vmem:[#allocation2 + $0x50] sm:$0xff]
  %v496 = vld [vmem:[#allocation2 + $0x58] sm:$0xff]
  %v497 = vld [vmem:[#allocation2 + $0x60] sm:$0xff]
  %v498 = vld [vmem:[#allocation2 + $0x68] sm:$0xff]
  %v499 = vld [vmem:[#allocation2 + $0x70] sm:$0xff]
  %v500 = vld [vmem:[#allocation2 + $0x78] sm:$0xff]
  %v501 = vlaneseq
  %v502 = vshrl.u32 %v501, 7
  %v503 = vsub.s32 0, %v502
  %v504 = vrot.slane %v459, %v503
  %v505 = vlaneseq
  %v506 = vshrl.u32 %v505, 7
  %v507 = vsub.s32 0, %v506
  %v508 = vrot.slane %v473, %v507
  %v509 = vlaneseq
  %v510 = vshrl.u32 %v509, 7
  %v511 = vsub.s32 0, %v510
  %v512 = vrot.slane %v481, %v511
  %v513 = vlaneseq
  %v514 = vshrl.u32 %v513, 7
  %v515 = vsub.s32 0, %v514
  %v516 = vrot.slane %v483, %v515
  %v517 = vlaneseq
  %v518 = vshrl.u32 %v517, 7
  %v519 = vsub.s32 0, %v518
  %v520 = vrot.slane %v466, %v519
  %v521 = vlaneseq
  %v522 = vshrl.u32 %v521, 7
  %v523 = vsub.s32 0, %v522
  %v524 = vrot.slane %v480, %v523
  %v525 = vlaneseq
  %v526 = vshrl.u32 %v525, 7
  %v527 = vsub.s32 0, %v526
  %v528 = vrot.slane %v482, %v527
  %v529 = vlaneseq
  %v530 = vshrl.u32 %v529, 7
  %v531 = vsub.s32 0, %v530
  %v532 = vrot.slane %v484, %v531
  %v541 = vmul.f32 %v504, %v485
  %v542 = vmul.f32 %v504, %v486
  %v543 = vmul.f32 %v508, %v487
  %v544 = vmul.f32 %v508, %v488
  %v545 = vmul.f32 %v512, %v489
  %v546 = vmul.f32 %v512, %v490
  %v547 = vmul.f32 %v516, %v491
  %v548 = vmul.f32 %v516, %v492
  %v549 = vmul.f32 %v520, %v493
  %v550 = vmul.f32 %v520, %v494
  %v551 = vmul.f32 %v524, %v495
  %v552 = vmul.f32 %v524, %v496
  %v553 = vmul.f32 %v528, %v497
  %v554 = vmul.f32 %v528, %v498
  %v555 = vmul.f32 %v532, %v499
  %v556 = vmul.f32 %v532, %v500
  %v557 = vsel %vm239, %v541, 0.0
  %558 = vadd.xlane.f32.xlu0 %v557
  %v559 = vpop.xlane.xlu0 %558
  %v560 = vsel %vm239, %v542, 0.0
  %561 = vadd.xlane.f32.xlu0 %v560
  %v562 = vpop.xlane.xlu0 %561
  %v563 = vsel %vm239, %v543, 0.0
  %564 = vadd.xlane.f32.xlu0 %v563
  %v565 = vpop.xlane.xlu0 %564
  %v566 = vsel %vm239, %v544, 0.0
  %567 = vadd.xlane.f32.xlu0 %v566
  %v568 = vpop.xlane.xlu0 %567
  %v569 = vsel %vm239, %v545, 0.0
  %570 = vadd.xlane.f32.xlu0 %v569
  %v571 = vpop.xlane.xlu0 %570
  %v572 = vsel %vm239, %v546, 0.0
  %573 = vadd.xlane.f32.xlu0 %v572
  %v574 = vpop.xlane.xlu0 %573
  %v575 = vsel %vm239, %v547, 0.0
  %576 = vadd.xlane.f32.xlu0 %v575
  %v577 = vpop.xlane.xlu0 %576
  %v578 = vsel %vm239, %v548, 0.0
  %579 = vadd.xlane.f32.xlu0 %v578
  %v580 = vpop.xlane.xlu0 %579
  %v581 = vsel %vm239, %v549, 0.0
  %582 = vadd.xlane.f32.xlu0 %v581
  %v583 = vpop.xlane.xlu0 %582
  %v584 = vsel %vm239, %v550, 0.0
  %585 = vadd.xlane.f32.xlu0 %v584
  %v586 = vpop.xlane.xlu0 %585
  %v587 = vsel %vm239, %v551, 0.0
  %588 = vadd.xlane.f32.xlu0 %v587
  %v589 = vpop.xlane.xlu0 %588
  %v590 = vsel %vm239, %v552, 0.0
  %591 = vadd.xlane.f32.xlu0 %v590
  %v592 = vpop.xlane.xlu0 %591
  %v593 = vsel %vm239, %v553, 0.0
  %594 = vadd.xlane.f32.xlu0 %v593
  %v595 = vpop.xlane.xlu0 %594
  %v596 = vsel %vm239, %v554, 0.0
  %597 = vadd.xlane.f32.xlu0 %v596
  %v598 = vpop.xlane.xlu0 %597
  %v599 = vsel %vm239, %v555, 0.0
  %600 = vadd.xlane.f32.xlu0 %v599
  %v601 = vpop.xlane.xlu0 %600
  %v602 = vsel %vm239, %v556, 0.0
  %603 = vadd.xlane.f32.xlu0 %v602
  %v604 = vpop.xlane.xlu0 %603
  %v621 = vlaneseq
  %v622 = vshrl.u32 %v621, 7
  %v623 = vsub.s32 %v337, %v622
  %v624 = vrot.slane %v559, %v623
  %v625 = vadd.s32 %v337, 4294967288
  %v626 = vlaneseq
  %v627 = vshrl.u32 %v626, 7
  %v628 = vsub.s32 %v625, %v627
  %v629 = vrot.slane %v562, %v628
  %vm630 = vcmask 130112
  %v631 = vsel %vm630, %v629, %v624
  %v632 = vlaneseq
  %v633 = vshrl.u32 %v632, 7
  %v634 = vsub.s32 %v337, %v633
  %v635 = vrot.slane %v565, %v634
  %v636 = vlaneseq
  %v637 = vshrl.u32 %v636, 7
  %v638 = vsub.s32 %v625, %v637
  %v639 = vrot.slane %v568, %v638
  %v640 = vsel %vm630, %v639, %v635
  %v641 = vlaneseq
  %v642 = vshrl.u32 %v641, 7
  %v643 = vsub.s32 %v337, %v642
  %v644 = vrot.slane %v571, %v643
  %v645 = vlaneseq
  %v646 = vshrl.u32 %v645, 7
  %v647 = vsub.s32 %v625, %v646
  %v648 = vrot.slane %v574, %v647
  %v649 = vsel %vm630, %v648, %v644
  %v650 = vlaneseq
  %v651 = vshrl.u32 %v650, 7
  %v652 = vsub.s32 %v337, %v651
  %v653 = vrot.slane %v577, %v652
  %v654 = vlaneseq
  %v655 = vshrl.u32 %v654, 7
  %v656 = vsub.s32 %v625, %v655
  %v657 = vrot.slane %v580, %v656
  %v658 = vsel %vm630, %v657, %v653
  %v659 = vlaneseq
  %v660 = vshrl.u32 %v659, 7
  %v661 = vsub.s32 %v337, %v660
  %v662 = vrot.slane %v583, %v661
  %v663 = vlaneseq
  %v664 = vshrl.u32 %v663, 7
  %v665 = vsub.s32 %v625, %v664
  %v666 = vrot.slane %v586, %v665
  %v667 = vsel %vm630, %v666, %v662
  %v668 = vlaneseq
  %v669 = vshrl.u32 %v668, 7
  %v670 = vsub.s32 %v337, %v669
  %v671 = vrot.slane %v589, %v670
  %v672 = vlaneseq
  %v673 = vshrl.u32 %v672, 7
  %v674 = vsub.s32 %v625, %v673
  %v675 = vrot.slane %v592, %v674
  %v676 = vsel %vm630, %v675, %v671
  %v677 = vlaneseq
  %v678 = vshrl.u32 %v677, 7
  %v679 = vsub.s32 %v337, %v678
  %v680 = vrot.slane %v595, %v679
  %v681 = vlaneseq
  %v682 = vshrl.u32 %v681, 7
  %v683 = vsub.s32 %v625, %v682
  %v684 = vrot.slane %v598, %v683
  %v685 = vsel %vm630, %v684, %v680
  %v686 = vlaneseq
  %v687 = vshrl.u32 %v686, 7
  %v688 = vsub.s32 %v337, %v687
  %v689 = vrot.slane %v601, %v688
  %v690 = vlaneseq
  %v691 = vshrl.u32 %v690, 7
  %v692 = vsub.s32 %v625, %v691
  %v693 = vrot.slane %v604, %v692
  %v694 = vsel %vm630, %v693, %v689
  %vm695 = vcmask 1041409
  %v696 = vsel %vm695, %v640, %v631
  %vm697 = vcmask 1042434
  %v698 = vsel %vm697, %v649, %v696
  %vm699 = vcmask 1043459
  %v700 = vsel %vm699, %v658, %v698
  %vm701 = vcmask 1044484
  %v702 = vsel %vm701, %v667, %v700
  %vm703 = vcmask 1045509
  %v704 = vsel %vm703, %v676, %v702
  %vm705 = vcmask 1046534
  %v706 = vsel %vm705, %v685, %v704
  %vm707 = vcmask 1047559
  %v708 = vsel %vm707, %v694, %v706
  %v710 = vsel %vm338, %v708, -1e+30
  %vm711 = vcmask 130048
  %v712 = vsel %vm711, %v710, -inf
  %713 = vmax.xlane.f32.xlu0 %v712
  %v714 = vpop.xlane.xlu0 %713
  %v715 = vsub.f32 %v710, %v714
  %v716 = vmul.f32 %v715, 1.442695
  %v717 = vpow.pop %v716
  %v718 = vsel %vm711, %v717, 0.0
  %719 = vadd.xlane.f32.xlu0 %v718
  %v720 = vpop.xlane.xlu0 %719
  %v721 = vrcp.pop %v720
  %v722 = vmul.f32 %v717, %v721
  %v723 = vlaneseq
  %v724 = vshrl.u32 %v723, 7
  %v725 = vsub.s32 0, %v724
  %v726 = vrot.slane %v722, %v725
  %728 = vbcast.lane.b32.xlu0 %v726, 256
  %v729 = vpop.permute.xlu0 %728
  %s731 = sor.u32 256, 8
  %732 = vbcast.lane.b32.xlu0 %v726, %s731
  %v733 = vpop.permute.xlu0 %732
  %v734 = vlaneseq
  %v735 = vshrl.u32 %v734, 7
  %v736 = vsub.s32 1, %v735
  %v737 = vrot.slane %v722, %v736
  %739 = vbcast.lane.b32.xlu0 %v737, 256
  %v740 = vpop.permute.xlu0 %739
  %s742 = sor.u32 256, 8
  %743 = vbcast.lane.b32.xlu0 %v737, %s742
  %v744 = vpop.permute.xlu0 %743
  %v745 = vlaneseq
  %v746 = vshrl.u32 %v745, 7
  %v747 = vsub.s32 2, %v746
  %v748 = vrot.slane %v722, %v747
  %750 = vbcast.lane.b32.xlu0 %v748, 256
  %v751 = vpop.permute.xlu0 %750
  %s753 = sor.u32 256, 8
  %754 = vbcast.lane.b32.xlu0 %v748, %s753
  %v755 = vpop.permute.xlu0 %754
  %v756 = vlaneseq
  %v757 = vshrl.u32 %v756, 7
  %v758 = vsub.s32 3, %v757
  %v759 = vrot.slane %v722, %v758
  %761 = vbcast.lane.b32.xlu0 %v759, 256
  %v762 = vpop.permute.xlu0 %761
  %s764 = sor.u32 256, 8
  %765 = vbcast.lane.b32.xlu0 %v759, %s764
  %v766 = vpop.permute.xlu0 %765
  %v767 = vlaneseq
  %v768 = vshrl.u32 %v767, 7
  %v769 = vsub.s32 4, %v768
  %v770 = vrot.slane %v722, %v769
  %772 = vbcast.lane.b32.xlu0 %v770, 256
  %v773 = vpop.permute.xlu0 %772
  %s775 = sor.u32 256, 8
  %776 = vbcast.lane.b32.xlu0 %v770, %s775
  %v777 = vpop.permute.xlu0 %776
  %v778 = vlaneseq
  %v779 = vshrl.u32 %v778, 7
  %v780 = vsub.s32 5, %v779
  %v781 = vrot.slane %v722, %v780
  %783 = vbcast.lane.b32.xlu0 %v781, 256
  %v784 = vpop.permute.xlu0 %783
  %s786 = sor.u32 256, 8
  %787 = vbcast.lane.b32.xlu0 %v781, %s786
  %v788 = vpop.permute.xlu0 %787
  %v789 = vlaneseq
  %v790 = vshrl.u32 %v789, 7
  %v791 = vsub.s32 6, %v790
  %v792 = vrot.slane %v722, %v791
  %794 = vbcast.lane.b32.xlu0 %v792, 256
  %v795 = vpop.permute.xlu0 %794
  %s797 = sor.u32 256, 8
  %798 = vbcast.lane.b32.xlu0 %v792, %s797
  %v799 = vpop.permute.xlu0 %798
  %v800 = vlaneseq
  %v801 = vshrl.u32 %v800, 7
  %v802 = vsub.s32 7, %v801
  %v803 = vrot.slane %v722, %v802
  %805 = vbcast.lane.b32.xlu0 %v803, 256
  %v806 = vpop.permute.xlu0 %805
  %s808 = sor.u32 256, 8
  %809 = vbcast.lane.b32.xlu0 %v803, %s808
  %v810 = vpop.permute.xlu0 %809
  %v811 = vld [vmem:[#allocation3] sm:$0xff]
  %v812 = vld [vmem:[#allocation3 + $0x8] sm:$0xff]
  %v813 = vld [vmem:[#allocation3 + $0x10] sm:$0xff]
  %v814 = vld [vmem:[#allocation3 + $0x18] sm:$0xff]
  %v815 = vld [vmem:[#allocation3 + $0x20] sm:$0xff]
  %v816 = vld [vmem:[#allocation3 + $0x28] sm:$0xff]
  %v817 = vld [vmem:[#allocation3 + $0x30] sm:$0xff]
  %v818 = vld [vmem:[#allocation3 + $0x38] sm:$0xff]
  %v819 = vld [vmem:[#allocation3 + $0x40] sm:$0xff]
  %v820 = vld [vmem:[#allocation3 + $0x48] sm:$0xff]
  %v821 = vld [vmem:[#allocation3 + $0x50] sm:$0xff]
  %v822 = vld [vmem:[#allocation3 + $0x58] sm:$0xff]
  %v823 = vld [vmem:[#allocation3 + $0x60] sm:$0xff]
  %v824 = vld [vmem:[#allocation3 + $0x68] sm:$0xff]
  %v825 = vld [vmem:[#allocation3 + $0x70] sm:$0xff]
  %v826 = vld [vmem:[#allocation3 + $0x78] sm:$0xff]
  %v827 = vmul.f32 %v729, %v811
  %v828 = vmul.f32 %v733, %v812
  %v829 = vmul.f32 %v740, %v813
  %v830 = vmul.f32 %v744, %v814
  %v831 = vmul.f32 %v751, %v815
  %v832 = vmul.f32 %v755, %v816
  %v833 = vmul.f32 %v762, %v817
  %v834 = vmul.f32 %v766, %v818
  %v835 = vmul.f32 %v773, %v819
  %v836 = vmul.f32 %v777, %v820
  %v837 = vmul.f32 %v784, %v821
  %v838 = vmul.f32 %v788, %v822
  %v839 = vmul.f32 %v795, %v823
  %v840 = vmul.f32 %v799, %v824
  %v841 = vmul.f32 %v806, %v825
  %v842 = vmul.f32 %v810, %v826
  %v843 = vsel %vm239, %v827, 0.0
  %v844 = vsel %vm239, %v828, 0.0
  %v845 = vadd.f32 %v843, %v844
  %v846 = vrot.slane %v845, 4
  %v847 = vadd.f32 %v845, %v846
  %v848 = vrot.slane %v847, 2
  %v849 = vadd.f32 %v847, %v848
  %v850 = vrot.slane %v849, 1
  %v851 = vadd.f32 %v849, %v850
  %v852 = vsel %vm239, %v829, 0.0
  %v853 = vsel %vm239, %v830, 0.0
  %v854 = vadd.f32 %v852, %v853
  %v855 = vrot.slane %v854, 4
  %v856 = vadd.f32 %v854, %v855
  %v857 = vrot.slane %v856, 2
  %v858 = vadd.f32 %v856, %v857
  %v859 = vrot.slane %v858, 1
  %v860 = vadd.f32 %v858, %v859
  %v861 = vsel %vm239, %v831, 0.0
  %v862 = vsel %vm239, %v832, 0.0
  %v863 = vadd.f32 %v861, %v862
  %v864 = vrot.slane %v863, 4
  %v865 = vadd.f32 %v863, %v864
  %v866 = vrot.slane %v865, 2
  %v867 = vadd.f32 %v865, %v866
  %v868 = vrot.slane %v867, 1
  %v869 = vadd.f32 %v867, %v868
  %v870 = vsel %vm239, %v833, 0.0
  %v871 = vsel %vm239, %v834, 0.0
  %v872 = vadd.f32 %v870, %v871
  %v873 = vrot.slane %v872, 4
  %v874 = vadd.f32 %v872, %v873
  %v875 = vrot.slane %v874, 2
  %v876 = vadd.f32 %v874, %v875
  %v877 = vrot.slane %v876, 1
  %v878 = vadd.f32 %v876, %v877
  %v879 = vsel %vm239, %v835, 0.0
  %v880 = vsel %vm239, %v836, 0.0
  %v881 = vadd.f32 %v879, %v880
  %v882 = vrot.slane %v881, 4
  %v883 = vadd.f32 %v881, %v882
  %v884 = vrot.slane %v883, 2
  %v885 = vadd.f32 %v883, %v884
  %v886 = vrot.slane %v885, 1
  %v887 = vadd.f32 %v885, %v886
  %v888 = vsel %vm239, %v837, 0.0
  %v889 = vsel %vm239, %v838, 0.0
  %v890 = vadd.f32 %v888, %v889
  %v891 = vrot.slane %v890, 4
  %v892 = vadd.f32 %v890, %v891
  %v893 = vrot.slane %v892, 2
  %v894 = vadd.f32 %v892, %v893
  %v895 = vrot.slane %v894, 1
  %v896 = vadd.f32 %v894, %v895
  %v897 = vsel %vm239, %v839, 0.0
  %v898 = vsel %vm239, %v840, 0.0
  %v899 = vadd.f32 %v897, %v898
  %v900 = vrot.slane %v899, 4
  %v901 = vadd.f32 %v899, %v900
  %v902 = vrot.slane %v901, 2
  %v903 = vadd.f32 %v901, %v902
  %v904 = vrot.slane %v903, 1
  %v905 = vadd.f32 %v903, %v904
  %v906 = vsel %vm239, %v841, 0.0
  %v907 = vsel %vm239, %v842, 0.0
  %v908 = vadd.f32 %v906, %v907
  %v909 = vrot.slane %v908, 4
  %v910 = vadd.f32 %v908, %v909
  %v911 = vrot.slane %v910, 2
  %v912 = vadd.f32 %v910, %v911
  %v913 = vrot.slane %v912, 1
  %v914 = vadd.f32 %v912, %v913
  %v915 = vld [vmem:[%s0] sm:$0xff]
  %v916 = vadd.f32 %v915, %v431
  %v917 = vxor.u32 %v916, 2147483648
  %v918 = vmul.f32 %v917, 1.442695
  %v919 = vpow.pop %v918
  %v920 = vadd.f32 %v919, 1.0
  %v921 = vrcp.pop %v920
  %v922 = vmul.f32 1.0, %v921
  %v923 = vtanh.pop %v916
  %v932 = vsel %vm695, %v860, %v851
  %v933 = vsel %vm697, %v869, %v932
  %v934 = vsel %vm699, %v878, %v933
  %v935 = vsel %vm701, %v887, %v934
  %v936 = vsel %vm703, %v896, %v935
  %v937 = vsel %vm705, %v905, %v936
  %v938 = vsel %vm707, %v914, %v937
  %v940 = vmul.f32 %v922, %v938
  %942 = vrot.lane.b32.xlu0 %v923, 64
  %v943 = vpop.permute.xlu0 %942
  %v945 = vmul.f32 %v922, %v943
  %947 = vrot.lane.b32.xlu0 %v945, 96
  %v948 = vpop.permute.xlu0 %947
  %v950 = vadd.f32 %v940, %v948
  %v951 = vtanh.pop %v950
  %953 = vrot.lane.b32.xlu0 %v951, 64
  %v954 = vpop.permute.xlu0 %953
  %v956 = vmul.f32 %v922, %v954
  %958 = vrot.lane.b32.xlu0 %v956, 64
  %v959 = vpop.permute.xlu0 %958
  %961 = vst.msk [vmem:[#allocation4] sm:$0xff] %vm239, %v959
  %962 = vst.msk [vmem:[#allocation5] sm:$0xff] %vm711, %v722
  %v963 = vld [vmem:[%s3 + $0x80] sm:$0xff]
  %v964 = vld [vmem:[%s3 + $0x88] sm:$0xff]
  %v965 = vld [vmem:[%s3 + $0x90] sm:$0xff]
  %v966 = vld [vmem:[%s3 + $0x98] sm:$0xff]
  %v967 = vld [vmem:[%s3 + $0xa0] sm:$0xff]
  %v968 = vld [vmem:[%s3 + $0xa8] sm:$0xff]
  %v969 = vld [vmem:[%s3 + $0xb0] sm:$0xff]
  %v970 = vld [vmem:[%s3 + $0xb8] sm:$0xff]
  %v971 = vld [vmem:[%s348] ss:$8 sm:$0x3]
  %v973 = vlaneseq
  %v974 = vshrl.u32 %v973, 7
  %v975 = vsub.s32 0, %v974
  %v976 = vrot.slane %v971, %v975
  %v977 = vlaneseq
  %v978 = vshrl.u32 %v977, 7
  %v979 = vsub.s32 1, %v978
  %v980 = vrot.slane %v971, %v979
  %v983 = vsel %vm239, %v959, 0
  %985 = vmatprep.subr.mxu0 %v964
  %986 = vmatpush1.msra.mxu0 %v963
  %987 = vmatprep.subr.mxu0 %v966
  %988 = vmatpush1.msra.mxu0 %v965
  %989 = vmatprep.subr.mxu0 %v968
  %990 = vmatpush1.msra.mxu0 %v967
  %991 = vmatprep.subr.mxu0 %v970
  %992 = vmatpush1.msra.mxu0 %v969
  %993 = vmatprep.subr.mxu0 0.0
  %994 = vmatpush1.msra.mxu0 0.0
  %995 = vmatprep.subr.mxu0 0.0
  %996 = vmatpush1.msra.mxu0 0.0
  %997 = vmatprep.subr.mxu0 0.0
  %998 = vmatpush1.msra.mxu0 0.0
  %999 = vmatprep.subr.mxu0 0.0
  %1000 = vmatpush1.msra.mxu0 0.0
  %1001 = vmatprep.subr.mxu0 0.0
  %1002 = vmatpush1.msra.mxu0 0.0
  %1003 = vmatprep.subr.mxu0 0.0
  %1004 = vmatpush1.msra.mxu0 0.0
  %1005 = vmatprep.subr.mxu0 0.0
  %1006 = vmatpush1.msra.mxu0 0.0
  %1007 = vmatprep.subr.mxu0 0.0
  %1008 = vmatpush1.msra.mxu0 0.0
  %1009 = vmatprep.subr.mxu0 0.0
  %1010 = vmatpush1.msra.mxu0 0.0
  %1011 = vmatprep.subr.mxu0 0.0
  %1012 = vmatpush1.msra.mxu0 0.0
  %1013 = vmatprep.subr.mxu0 0.0
  %1014 = vmatpush1.msra.mxu0 0.0
  %1015 = vmatprep.subr.mxu0 0.0
  %1016 = vmatpush1.msra.mxu0 0.0
  %1017 = vmatprep.subr.mxu0 0.0
  %1018 = vmatpush1.msra.mxu0 0.0
  %1019 = vmatprep.subr.mxu0 0.0
  %1020 = vmatpush1.msra.mxu0 0.0
  %1021 = vmatprep.subr.mxu0 0.0
  %1022 = vmatpush1.msra.mxu0 0.0
  %1023 = vmatprep.subr.mxu0 0.0
  %1024 = vmatpush1.msra.mxu0 0.0
  %1025 = vmatprep.subr.mxu0 0.0
  %1026 = vmatpush1.msra.mxu0 0.0
  %1027 = vmatprep.subr.mxu0 0.0
  %1028 = vmatpush1.msra.mxu0 0.0
  %1029 = vmatprep.subr.mxu0 0.0
  %1030 = vmatpush1.msra.mxu0 0.0
  %1031 = vmatprep.subr.mxu0 0.0
  %1032 = vmatpush1.msra.mxu0 0.0
  %1033 = vmatprep.subr.mxu0 0.0
  %1034 = vmatpush1.msra.mxu0 0.0
  %1035 = vmatprep.subr.mxu0 0.0
  %1036 = vmatpush1.msra.mxu0 0.0
  %1037 = vmatprep.subr.mxu0 0.0
  %1038 = vmatpush1.msra.mxu0 0.0
  %1039 = vmatprep.subr.mxu0 0.0
  %1040 = vmatpush1.msra.mxu0 0.0
  %1041 = vmatprep.subr.mxu0 0.0
  %1042 = vmatpush1.msra.mxu0 0.0
  %1043 = vmatprep.subr.mxu0 0.0
  %1044 = vmatpush1.msra.mxu0 0.0
  %1045 = vmatprep.subr.mxu0 0.0
  %1046 = vmatpush1.msra.mxu0 0.0
  %1047 = vmatprep.subr.mxu0 0.0
  %1048 = vmatpush1.msra.mxu0 0.0
  %1049 = vmatprep.mubr.f32.mxu0 0.0
  %1050 = vmatmul.mubr.f32.gmra.mrb[0].mxu0 %v983
  %v1051 = vpop.f32.mrb[0].mxu0
  %v1052 = vadd.f32 %v976, %v1051
  %v1053 = vpop.f32.mrb[0].mxu0
  %v1054 = vadd.f32 %v980, %v1053
  %1055 = vdwg.mxu0
  %v1057 = vcombine.high %v1054, %v1054
  %v1059 = vunpack.c.l.s4 1966171168
  %v1060 = vunpack.c.0.s8 %v1059
  %v1061 = vlaneseq
  %v1062 = vshrl.u32 %v1061, 7
  %v1063 = vsub.s32 %v1060, %v1062
  %v1064 = vrot.slane %v1054, %v1063
  %v1066 = vunpack.c.l.s4 1966171168
  %v1067 = vunpack.c.0.s8 %v1066
  %v1068 = vlaneseq
  %v1069 = vshrl.u32 %v1068, 7
  %v1070 = vsub.s32 %v1067, %v1069
  %v1071 = vrot.slane %v1057, %v1070
  %v1072 = vcombine.high %v1064, %v1064
  %v1073 = vcombine.high %v1071, %v1071
  %v1075 = vunpack.c.l.s4 1966171168
  %v1076 = vunpack.c.0.s8 %v1075
  %v1077 = vlaneseq
  %v1078 = vshrl.u32 %v1077, 7
  %v1079 = vsub.s32 %v1076, %v1078
  %v1080 = vrot.slane %v1064, %v1079
  %v1082 = vunpack.c.l.s4 1966171168
  %v1083 = vunpack.c.0.s8 %v1082
  %v1084 = vlaneseq
  %v1085 = vshrl.u32 %v1084, 7
  %v1086 = vsub.s32 %v1083, %v1085
  %v1087 = vrot.slane %v1071, %v1086
  %v1089 = vunpack.c.l.s4 1966171168
  %v1090 = vunpack.c.0.s8 %v1089
  %v1091 = vlaneseq
  %v1092 = vshrl.u32 %v1091, 7
  %v1093 = vsub.s32 %v1090, %v1092
  %v1094 = vrot.slane %v1072, %v1093
  %v1096 = vunpack.c.l.s4 1966171168
  %v1097 = vunpack.c.0.s8 %v1096
  %v1098 = vlaneseq
  %v1099 = vshrl.u32 %v1098, 7
  %v1100 = vsub.s32 %v1097, %v1099
  %v1101 = vrot.slane %v1073, %v1100
  %v1102 = vcombine.high %v1080, %v1080
  %v1103 = vcombine.high %v1087, %v1087
  %v1104 = vcombine.high %v1094, %v1094
  %v1105 = vcombine.high %v1101, %v1101
  %v1106 = vld [vmem:[#allocation2] sm:$0xff]
  %v1107 = vld [vmem:[#allocation2 + $0x8] sm:$0xff]
  %v1108 = vld [vmem:[#allocation2 + $0x10] sm:$0xff]
  %v1109 = vld [vmem:[#allocation2 + $0x18] sm:$0xff]
  %v1110 = vld [vmem:[#allocation2 + $0x20] sm:$0xff]
  %v1111 = vld [vmem:[#allocation2 + $0x28] sm:$0xff]
  %v1112 = vld [vmem:[#allocation2 + $0x30] sm:$0xff]
  %v1113 = vld [vmem:[#allocation2 + $0x38] sm:$0xff]
  %v1114 = vld [vmem:[#allocation2 + $0x40] sm:$0xff]
  %v1115 = vld [vmem:[#allocation2 + $0x48] sm:$0xff]
  %v1116 = vld [vmem:[#allocation2 + $0x50] sm:$0xff]
  %v1117 = vld [vmem:[#allocation2 + $0x58] sm:$0xff]
  %v1118 = vld [vmem:[#allocation2 + $0x60] sm:$0xff]
  %v1119 = vld [vmem:[#allocation2 + $0x68] sm:$0xff]
  %v1120 = vld [vmem:[#allocation2 + $0x70] sm:$0xff]
  %v1121 = vld [vmem:[#allocation2 + $0x78] sm:$0xff]
  %v1122 = vlaneseq
  %v1123 = vshrl.u32 %v1122, 7
  %v1124 = vsub.s32 0, %v1123
  %v1125 = vrot.slane %v1080, %v1124
  %v1126 = vlaneseq
  %v1127 = vshrl.u32 %v1126, 7
  %v1128 = vsub.s32 0, %v1127
  %v1129 = vrot.slane %v1094, %v1128
  %v1130 = vlaneseq
  %v1131 = vshrl.u32 %v1130, 7
  %v1132 = vsub.s32 0, %v1131
  %v1133 = vrot.slane %v1102, %v1132
  %v1134 = vlaneseq
  %v1135 = vshrl.u32 %v1134, 7
  %v1136 = vsub.s32 0, %v1135
  %v1137 = vrot.slane %v1104, %v1136
  %v1138 = vlaneseq
  %v1139 = vshrl.u32 %v1138, 7
  %v1140 = vsub.s32 0, %v1139
  %v1141 = vrot.slane %v1087, %v1140
  %v1142 = vlaneseq
  %v1143 = vshrl.u32 %v1142, 7
  %v1144 = vsub.s32 0, %v1143
  %v1145 = vrot.slane %v1101, %v1144
  %v1146 = vlaneseq
  %v1147 = vshrl.u32 %v1146, 7
  %v1148 = vsub.s32 0, %v1147
  %v1149 = vrot.slane %v1103, %v1148
  %v1150 = vlaneseq
  %v1151 = vshrl.u32 %v1150, 7
  %v1152 = vsub.s32 0, %v1151
  %v1153 = vrot.slane %v1105, %v1152
  %v1162 = vmul.f32 %v1125, %v1106
  %v1163 = vmul.f32 %v1125, %v1107
  %v1164 = vmul.f32 %v1129, %v1108
  %v1165 = vmul.f32 %v1129, %v1109
  %v1166 = vmul.f32 %v1133, %v1110
  %v1167 = vmul.f32 %v1133, %v1111
  %v1168 = vmul.f32 %v1137, %v1112
  %v1169 = vmul.f32 %v1137, %v1113
  %v1170 = vmul.f32 %v1141, %v1114
  %v1171 = vmul.f32 %v1141, %v1115
  %v1172 = vmul.f32 %v1145, %v1116
  %v1173 = vmul.f32 %v1145, %v1117
  %v1174 = vmul.f32 %v1149, %v1118
  %v1175 = vmul.f32 %v1149, %v1119
  %v1176 = vmul.f32 %v1153, %v1120
  %v1177 = vmul.f32 %v1153, %v1121
  %v1178 = vsel %vm239, %v1162, 0.0
  %1179 = vadd.xlane.f32.xlu0 %v1178
  %v1180 = vpop.xlane.xlu0 %1179
  %v1181 = vsel %vm239, %v1163, 0.0
  %1182 = vadd.xlane.f32.xlu0 %v1181
  %v1183 = vpop.xlane.xlu0 %1182
  %v1184 = vsel %vm239, %v1164, 0.0
  %1185 = vadd.xlane.f32.xlu0 %v1184
  %v1186 = vpop.xlane.xlu0 %1185
  %v1187 = vsel %vm239, %v1165, 0.0
  %1188 = vadd.xlane.f32.xlu0 %v1187
  %v1189 = vpop.xlane.xlu0 %1188
  %v1190 = vsel %vm239, %v1166, 0.0
  %1191 = vadd.xlane.f32.xlu0 %v1190
  %v1192 = vpop.xlane.xlu0 %1191
  %v1193 = vsel %vm239, %v1167, 0.0
  %1194 = vadd.xlane.f32.xlu0 %v1193
  %v1195 = vpop.xlane.xlu0 %1194
  %v1196 = vsel %vm239, %v1168, 0.0
  %1197 = vadd.xlane.f32.xlu0 %v1196
  %v1198 = vpop.xlane.xlu0 %1197
  %v1199 = vsel %vm239, %v1169, 0.0
  %1200 = vadd.xlane.f32.xlu0 %v1199
  %v1201 = vpop.xlane.xlu0 %1200
  %v1202 = vsel %vm239, %v1170, 0.0
  %1203 = vadd.xlane.f32.xlu0 %v1202
  %v1204 = vpop.xlane.xlu0 %1203
  %v1205 = vsel %vm239, %v1171, 0.0
  %1206 = vadd.xlane.f32.xlu0 %v1205
  %v1207 = vpop.xlane.xlu0 %1206
  %v1208 = vsel %vm239, %v1172, 0.0
  %1209 = vadd.xlane.f32.xlu0 %v1208
  %v1210 = vpop.xlane.xlu0 %1209
  %v1211 = vsel %vm239, %v1173, 0.0
  %1212 = vadd.xlane.f32.xlu0 %v1211
  %v1213 = vpop.xlane.xlu0 %1212
  %v1214 = vsel %vm239, %v1174, 0.0
  %1215 = vadd.xlane.f32.xlu0 %v1214
  %v1216 = vpop.xlane.xlu0 %1215
  %v1217 = vsel %vm239, %v1175, 0.0
  %1218 = vadd.xlane.f32.xlu0 %v1217
  %v1219 = vpop.xlane.xlu0 %1218
  %v1220 = vsel %vm239, %v1176, 0.0
  %1221 = vadd.xlane.f32.xlu0 %v1220
  %v1222 = vpop.xlane.xlu0 %1221
  %v1223 = vsel %vm239, %v1177, 0.0
  %1224 = vadd.xlane.f32.xlu0 %v1223
  %v1225 = vpop.xlane.xlu0 %1224
  %v1242 = vlaneseq
  %v1243 = vshrl.u32 %v1242, 7
  %v1244 = vsub.s32 %v337, %v1243
  %v1245 = vrot.slane %v1180, %v1244
  %v1246 = vlaneseq
  %v1247 = vshrl.u32 %v1246, 7
  %v1248 = vsub.s32 %v625, %v1247
  %v1249 = vrot.slane %v1183, %v1248
  %v1250 = vsel %vm630, %v1249, %v1245
  %v1251 = vlaneseq
  %v1252 = vshrl.u32 %v1251, 7
  %v1253 = vsub.s32 %v337, %v1252
  %v1254 = vrot.slane %v1186, %v1253
  %v1255 = vlaneseq
  %v1256 = vshrl.u32 %v1255, 7
  %v1257 = vsub.s32 %v625, %v1256
  %v1258 = vrot.slane %v1189, %v1257
  %v1259 = vsel %vm630, %v1258, %v1254
  %v1260 = vlaneseq
  %v1261 = vshrl.u32 %v1260, 7
  %v1262 = vsub.s32 %v337, %v1261
  %v1263 = vrot.slane %v1192, %v1262
  %v1264 = vlaneseq
  %v1265 = vshrl.u32 %v1264, 7
  %v1266 = vsub.s32 %v625, %v1265
  %v1267 = vrot.slane %v1195, %v1266
  %v1268 = vsel %vm630, %v1267, %v1263
  %v1269 = vlaneseq
  %v1270 = vshrl.u32 %v1269, 7
  %v1271 = vsub.s32 %v337, %v1270
  %v1272 = vrot.slane %v1198, %v1271
  %v1273 = vlaneseq
  %v1274 = vshrl.u32 %v1273, 7
  %v1275 = vsub.s32 %v625, %v1274
  %v1276 = vrot.slane %v1201, %v1275
  %v1277 = vsel %vm630, %v1276, %v1272
  %v1278 = vlaneseq
  %v1279 = vshrl.u32 %v1278, 7
  %v1280 = vsub.s32 %v337, %v1279
  %v1281 = vrot.slane %v1204, %v1280
  %v1282 = vlaneseq
  %v1283 = vshrl.u32 %v1282, 7
  %v1284 = vsub.s32 %v625, %v1283
  %v1285 = vrot.slane %v1207, %v1284
  %v1286 = vsel %vm630, %v1285, %v1281
  %v1287 = vlaneseq
  %v1288 = vshrl.u32 %v1287, 7
  %v1289 = vsub.s32 %v337, %v1288
  %v1290 = vrot.slane %v1210, %v1289
  %v1291 = vlaneseq
  %v1292 = vshrl.u32 %v1291, 7
  %v1293 = vsub.s32 %v625, %v1292
  %v1294 = vrot.slane %v1213, %v1293
  %v1295 = vsel %vm630, %v1294, %v1290
  %v1296 = vlaneseq
  %v1297 = vshrl.u32 %v1296, 7
  %v1298 = vsub.s32 %v337, %v1297
  %v1299 = vrot.slane %v1216, %v1298
  %v1300 = vlaneseq
  %v1301 = vshrl.u32 %v1300, 7
  %v1302 = vsub.s32 %v625, %v1301
  %v1303 = vrot.slane %v1219, %v1302
  %v1304 = vsel %vm630, %v1303, %v1299
  %v1305 = vlaneseq
  %v1306 = vshrl.u32 %v1305, 7
  %v1307 = vsub.s32 %v337, %v1306
  %v1308 = vrot.slane %v1222, %v1307
  %v1309 = vlaneseq
  %v1310 = vshrl.u32 %v1309, 7
  %v1311 = vsub.s32 %v625, %v1310
  %v1312 = vrot.slane %v1225, %v1311
  %v1313 = vsel %vm630, %v1312, %v1308
  %v1314 = vsel %vm695, %v1259, %v1250
  %v1315 = vsel %vm697, %v1268, %v1314
  %v1316 = vsel %vm699, %v1277, %v1315
  %v1317 = vsel %vm701, %v1286, %v1316
  %v1318 = vsel %vm703, %v1295, %v1317
  %v1319 = vsel %vm705, %v1304, %v1318
  %v1320 = vsel %vm707, %v1313, %v1319
  %v1322 = vsel %vm338, %v1320, -1e+30
  %v1323 = vsel %vm711, %v1322, -inf
  %1324 = vmax.xlane.f32.xlu0 %v1323
  %v1325 = vpop.xlane.xlu0 %1324
  %v1326 = vsub.f32 %v1322, %v1325
  %v1327 = vmul.f32 %v1326, 1.442695
  %v1328 = vpow.pop %v1327
  %v1329 = vsel %vm711, %v1328, 0.0
  %1330 = vadd.xlane.f32.xlu0 %v1329
  %v1331 = vpop.xlane.xlu0 %1330
  %v1332 = vrcp.pop %v1331
  %v1333 = vmul.f32 %v1328, %v1332
  %v1334 = vlaneseq
  %v1335 = vshrl.u32 %v1334, 7
  %v1336 = vsub.s32 0, %v1335
  %v1337 = vrot.slane %v1333, %v1336
  %1339 = vbcast.lane.b32.xlu0 %v1337, 256
  %v1340 = vpop.permute.xlu0 %1339
  %s1342 = sor.u32 256, 8
  %1343 = vbcast.lane.b32.xlu0 %v1337, %s1342
  %v1344 = vpop.permute.xlu0 %1343
  %v1345 = vlaneseq
  %v1346 = vshrl.u32 %v1345, 7
  %v1347 = vsub.s32 1, %v1346
  %v1348 = vrot.slane %v1333, %v1347
  %1350 = vbcast.lane.b32.xlu0 %v1348, 256
  %v1351 = vpop.permute.xlu0 %1350
  %s1353 = sor.u32 256, 8
  %1354 = vbcast.lane.b32.xlu0 %v1348, %s1353
  %v1355 = vpop.permute.xlu0 %1354
  %v1356 = vlaneseq
  %v1357 = vshrl.u32 %v1356, 7
  %v1358 = vsub.s32 2, %v1357
  %v1359 = vrot.slane %v1333, %v1358
  %1361 = vbcast.lane.b32.xlu0 %v1359, 256
  %v1362 = vpop.permute.xlu0 %1361
  %s1364 = sor.u32 256, 8
  %1365 = vbcast.lane.b32.xlu0 %v1359, %s1364
  %v1366 = vpop.permute.xlu0 %1365
  %v1367 = vlaneseq
  %v1368 = vshrl.u32 %v1367, 7
  %v1369 = vsub.s32 3, %v1368
  %v1370 = vrot.slane %v1333, %v1369
  %1372 = vbcast.lane.b32.xlu0 %v1370, 256
  %v1373 = vpop.permute.xlu0 %1372
  %s1375 = sor.u32 256, 8
  %1376 = vbcast.lane.b32.xlu0 %v1370, %s1375
  %v1377 = vpop.permute.xlu0 %1376
  %v1378 = vlaneseq
  %v1379 = vshrl.u32 %v1378, 7
  %v1380 = vsub.s32 4, %v1379
  %v1381 = vrot.slane %v1333, %v1380
  %1383 = vbcast.lane.b32.xlu0 %v1381, 256
  %v1384 = vpop.permute.xlu0 %1383
  %s1386 = sor.u32 256, 8
  %1387 = vbcast.lane.b32.xlu0 %v1381, %s1386
  %v1388 = vpop.permute.xlu0 %1387
  %v1389 = vlaneseq
  %v1390 = vshrl.u32 %v1389, 7
  %v1391 = vsub.s32 5, %v1390
  %v1392 = vrot.slane %v1333, %v1391
  %1394 = vbcast.lane.b32.xlu0 %v1392, 256
  %v1395 = vpop.permute.xlu0 %1394
  %s1397 = sor.u32 256, 8
  %1398 = vbcast.lane.b32.xlu0 %v1392, %s1397
  %v1399 = vpop.permute.xlu0 %1398
  %v1400 = vlaneseq
  %v1401 = vshrl.u32 %v1400, 7
  %v1402 = vsub.s32 6, %v1401
  %v1403 = vrot.slane %v1333, %v1402
  %1405 = vbcast.lane.b32.xlu0 %v1403, 256
  %v1406 = vpop.permute.xlu0 %1405
  %s1408 = sor.u32 256, 8
  %1409 = vbcast.lane.b32.xlu0 %v1403, %s1408
  %v1410 = vpop.permute.xlu0 %1409
  %v1411 = vlaneseq
  %v1412 = vshrl.u32 %v1411, 7
  %v1413 = vsub.s32 7, %v1412
  %v1414 = vrot.slane %v1333, %v1413
  %1416 = vbcast.lane.b32.xlu0 %v1414, 256
  %v1417 = vpop.permute.xlu0 %1416
  %s1419 = sor.u32 256, 8
  %1420 = vbcast.lane.b32.xlu0 %v1414, %s1419
  %v1421 = vpop.permute.xlu0 %1420
  %v1422 = vld [vmem:[#allocation3] sm:$0xff]
  %v1423 = vld [vmem:[#allocation3 + $0x8] sm:$0xff]
  %v1424 = vld [vmem:[#allocation3 + $0x10] sm:$0xff]
  %v1425 = vld [vmem:[#allocation3 + $0x18] sm:$0xff]
  %v1426 = vld [vmem:[#allocation3 + $0x20] sm:$0xff]
  %v1427 = vld [vmem:[#allocation3 + $0x28] sm:$0xff]
  %v1428 = vld [vmem:[#allocation3 + $0x30] sm:$0xff]
  %v1429 = vld [vmem:[#allocation3 + $0x38] sm:$0xff]
  %v1430 = vld [vmem:[#allocation3 + $0x40] sm:$0xff]
  %v1431 = vld [vmem:[#allocation3 + $0x48] sm:$0xff]
  %v1432 = vld [vmem:[#allocation3 + $0x50] sm:$0xff]
  %v1433 = vld [vmem:[#allocation3 + $0x58] sm:$0xff]
  %v1434 = vld [vmem:[#allocation3 + $0x60] sm:$0xff]
  %v1435 = vld [vmem:[#allocation3 + $0x68] sm:$0xff]
  %v1436 = vld [vmem:[#allocation3 + $0x70] sm:$0xff]
  %v1437 = vld [vmem:[#allocation3 + $0x78] sm:$0xff]
  %v1438 = vmul.f32 %v1340, %v1422
  %v1439 = vmul.f32 %v1344, %v1423
  %v1440 = vmul.f32 %v1351, %v1424
  %v1441 = vmul.f32 %v1355, %v1425
  %v1442 = vmul.f32 %v1362, %v1426
  %v1443 = vmul.f32 %v1366, %v1427
  %v1444 = vmul.f32 %v1373, %v1428
  %v1445 = vmul.f32 %v1377, %v1429
  %v1446 = vmul.f32 %v1384, %v1430
  %v1447 = vmul.f32 %v1388, %v1431
  %v1448 = vmul.f32 %v1395, %v1432
  %v1449 = vmul.f32 %v1399, %v1433
  %v1450 = vmul.f32 %v1406, %v1434
  %v1451 = vmul.f32 %v1410, %v1435
  %v1452 = vmul.f32 %v1417, %v1436
  %v1453 = vmul.f32 %v1421, %v1437
  %v1454 = vsel %vm239, %v1438, 0.0
  %v1455 = vsel %vm239, %v1439, 0.0
  %v1456 = vadd.f32 %v1454, %v1455
  %v1457 = vrot.slane %v1456, 4
  %v1458 = vadd.f32 %v1456, %v1457
  %v1459 = vrot.slane %v1458, 2
  %v1460 = vadd.f32 %v1458, %v1459
  %v1461 = vrot.slane %v1460, 1
  %v1462 = vadd.f32 %v1460, %v1461
  %v1463 = vsel %vm239, %v1440, 0.0
  %v1464 = vsel %vm239, %v1441, 0.0
  %v1465 = vadd.f32 %v1463, %v1464
  %v1466 = vrot.slane %v1465, 4
  %v1467 = vadd.f32 %v1465, %v1466
  %v1468 = vrot.slane %v1467, 2
  %v1469 = vadd.f32 %v1467, %v1468
  %v1470 = vrot.slane %v1469, 1
  %v1471 = vadd.f32 %v1469, %v1470
  %v1472 = vsel %vm239, %v1442, 0.0
  %v1473 = vsel %vm239, %v1443, 0.0
  %v1474 = vadd.f32 %v1472, %v1473
  %v1475 = vrot.slane %v1474, 4
  %v1476 = vadd.f32 %v1474, %v1475
  %v1477 = vrot.slane %v1476, 2
  %v1478 = vadd.f32 %v1476, %v1477
  %v1479 = vrot.slane %v1478, 1
  %v1480 = vadd.f32 %v1478, %v1479
  %v1481 = vsel %vm239, %v1444, 0.0
  %v1482 = vsel %vm239, %v1445, 0.0
  %v1483 = vadd.f32 %v1481, %v1482
  %v1484 = vrot.slane %v1483, 4
  %v1485 = vadd.f32 %v1483, %v1484
  %v1486 = vrot.slane %v1485, 2
  %v1487 = vadd.f32 %v1485, %v1486
  %v1488 = vrot.slane %v1487, 1
  %v1489 = vadd.f32 %v1487, %v1488
  %v1490 = vsel %vm239, %v1446, 0.0
  %v1491 = vsel %vm239, %v1447, 0.0
  %v1492 = vadd.f32 %v1490, %v1491
  %v1493 = vrot.slane %v1492, 4
  %v1494 = vadd.f32 %v1492, %v1493
  %v1495 = vrot.slane %v1494, 2
  %v1496 = vadd.f32 %v1494, %v1495
  %v1497 = vrot.slane %v1496, 1
  %v1498 = vadd.f32 %v1496, %v1497
  %v1499 = vsel %vm239, %v1448, 0.0
  %v1500 = vsel %vm239, %v1449, 0.0
  %v1501 = vadd.f32 %v1499, %v1500
  %v1502 = vrot.slane %v1501, 4
  %v1503 = vadd.f32 %v1501, %v1502
  %v1504 = vrot.slane %v1503, 2
  %v1505 = vadd.f32 %v1503, %v1504
  %v1506 = vrot.slane %v1505, 1
  %v1507 = vadd.f32 %v1505, %v1506
  %v1508 = vsel %vm239, %v1450, 0.0
  %v1509 = vsel %vm239, %v1451, 0.0
  %v1510 = vadd.f32 %v1508, %v1509
  %v1511 = vrot.slane %v1510, 4
  %v1512 = vadd.f32 %v1510, %v1511
  %v1513 = vrot.slane %v1512, 2
  %v1514 = vadd.f32 %v1512, %v1513
  %v1515 = vrot.slane %v1514, 1
  %v1516 = vadd.f32 %v1514, %v1515
  %v1517 = vsel %vm239, %v1452, 0.0
  %v1518 = vsel %vm239, %v1453, 0.0
  %v1519 = vadd.f32 %v1517, %v1518
  %v1520 = vrot.slane %v1519, 4
  %v1521 = vadd.f32 %v1519, %v1520
  %v1522 = vrot.slane %v1521, 2
  %v1523 = vadd.f32 %v1521, %v1522
  %v1524 = vrot.slane %v1523, 1
  %v1525 = vadd.f32 %v1523, %v1524
  %s1526 = scalar_lea.vmem %s0, 8
  %v1527 = vld [vmem:[%s1526] sm:$0xff]
  %v1528 = vadd.f32 %v1527, %v1052
  %v1529 = vxor.u32 %v1528, 2147483648
  %v1530 = vmul.f32 %v1529, 1.442695
  %v1531 = vpow.pop %v1530
  %v1532 = vadd.f32 %v1531, 1.0
  %v1533 = vrcp.pop %v1532
  %v1534 = vmul.f32 1.0, %v1533
  %v1535 = vtanh.pop %v1528
  %v1544 = vsel %vm695, %v1471, %v1462
  %v1545 = vsel %vm697, %v1480, %v1544
  %v1546 = vsel %vm699, %v1489, %v1545
  %v1547 = vsel %vm701, %v1498, %v1546
  %v1548 = vsel %vm703, %v1507, %v1547
  %v1549 = vsel %vm705, %v1516, %v1548
  %v1550 = vsel %vm707, %v1525, %v1549
  %v1552 = vmul.f32 %v1534, %v1550
  %1554 = vrot.lane.b32.xlu0 %v1535, 64
  %v1555 = vpop.permute.xlu0 %1554
  %v1557 = vmul.f32 %v1534, %v1555
  %1559 = vrot.lane.b32.xlu0 %v1557, 96
  %v1560 = vpop.permute.xlu0 %1559
  %v1562 = vadd.f32 %v1552, %v1560
  %v1563 = vtanh.pop %v1562
  %1565 = vrot.lane.b32.xlu0 %v1563, 64
  %v1566 = vpop.permute.xlu0 %1565
  %v1568 = vmul.f32 %v1534, %v1566
  %1570 = vrot.lane.b32.xlu0 %v1568, 64
  %v1571 = vpop.permute.xlu0 %1570
  %s1573 = scalar_lea.vmem [#allocation4], 8
  %1574 = vst.msk [vmem:[%s1573] sm:$0xff] %vm239, %v1571
  %s1575 = scalar_lea.vmem [#allocation5], 8
  %1576 = vst.msk [vmem:[%s1575] sm:$0xff] %vm711, %v1333
  %v1577 = vld [vmem:[%s3 + $0x80] sm:$0xff]
  %v1578 = vld [vmem:[%s3 + $0x88] sm:$0xff]
  %v1579 = vld [vmem:[%s3 + $0x90] sm:$0xff]
  %v1580 = vld [vmem:[%s3 + $0x98] sm:$0xff]
  %v1581 = vld [vmem:[%s3 + $0xa0] sm:$0xff]
  %v1582 = vld [vmem:[%s3 + $0xa8] sm:$0xff]
  %v1583 = vld [vmem:[%s3 + $0xb0] sm:$0xff]
  %v1584 = vld [vmem:[%s3 + $0xb8] sm:$0xff]
  %v1585 = vld [vmem:[%s348] ss:$8 sm:$0x3]
  %v1587 = vlaneseq
  %v1588 = vshrl.u32 %v1587, 7
  %v1589 = vsub.s32 0, %v1588
  %v1590 = vrot.slane %v1585, %v1589
  %v1591 = vlaneseq
  %v1592 = vshrl.u32 %v1591, 7
  %v1593 = vsub.s32 1, %v1592
  %v1594 = vrot.slane %v1585, %v1593
  %v1597 = vsel %vm239, %v1571, 0
  %1599 = vmatprep.subr.mxu0 %v1578
  %1600 = vmatpush1.msra.mxu0 %v1577
  %1601 = vmatprep.subr.mxu0 %v1580
  %1602 = vmatpush1.msra.mxu0 %v1579
  %1603 = vmatprep.subr.mxu0 %v1582
  %1604 = vmatpush1.msra.mxu0 %v1581
  %1605 = vmatprep.subr.mxu0 %v1584
  %1606 = vmatpush1.msra.mxu0 %v1583
  %1607 = vmatprep.subr.mxu0 0.0
  %1608 = vmatpush1.msra.mxu0 0.0
  %1609 = vmatprep.subr.mxu0 0.0
  %1610 = vmatpush1.msra.mxu0 0.0
  %1611 = vmatprep.subr.mxu0 0.0
  %1612 = vmatpush1.msra.mxu0 0.0
  %1613 = vmatprep.subr.mxu0 0.0
  %1614 = vmatpush1.msra.mxu0 0.0
  %1615 = vmatprep.subr.mxu0 0.0
  %1616 = vmatpush1.msra.mxu0 0.0
  %1617 = vmatprep.subr.mxu0 0.0
  %1618 = vmatpush1.msra.mxu0 0.0
  %1619 = vmatprep.subr.mxu0 0.0
  %1620 = vmatpush1.msra.mxu0 0.0
  %1621 = vmatprep.subr.mxu0 0.0
  %1622 = vmatpush1.msra.mxu0 0.0
  %1623 = vmatprep.subr.mxu0 0.0
  %1624 = vmatpush1.msra.mxu0 0.0
  %1625 = vmatprep.subr.mxu0 0.0
  %1626 = vmatpush1.msra.mxu0 0.0
  %1627 = vmatprep.subr.mxu0 0.0
  %1628 = vmatpush1.msra.mxu0 0.0
  %1629 = vmatprep.subr.mxu0 0.0
  %1630 = vmatpush1.msra.mxu0 0.0
  %1631 = vmatprep.subr.mxu0 0.0
  %1632 = vmatpush1.msra.mxu0 0.0
  %1633 = vmatprep.subr.mxu0 0.0
  %1634 = vmatpush1.msra.mxu0 0.0
  %1635 = vmatprep.subr.mxu0 0.0
  %1636 = vmatpush1.msra.mxu0 0.0
  %1637 = vmatprep.subr.mxu0 0.0
  %1638 = vmatpush1.msra.mxu0 0.0
  %1639 = vmatprep.subr.mxu0 0.0
  %1640 = vmatpush1.msra.mxu0 0.0
  %1641 = vmatprep.subr.mxu0 0.0
  %1642 = vmatpush1.msra.mxu0 0.0
  %1643 = vmatprep.subr.mxu0 0.0
  %1644 = vmatpush1.msra.mxu0 0.0
  %1645 = vmatprep.subr.mxu0 0.0
  %1646 = vmatpush1.msra.mxu0 0.0
  %1647 = vmatprep.subr.mxu0 0.0
  %1648 = vmatpush1.msra.mxu0 0.0
  %1649 = vmatprep.subr.mxu0 0.0
  %1650 = vmatpush1.msra.mxu0 0.0
  %1651 = vmatprep.subr.mxu0 0.0
  %1652 = vmatpush1.msra.mxu0 0.0
  %1653 = vmatprep.subr.mxu0 0.0
  %1654 = vmatpush1.msra.mxu0 0.0
  %1655 = vmatprep.subr.mxu0 0.0
  %1656 = vmatpush1.msra.mxu0 0.0
  %1657 = vmatprep.subr.mxu0 0.0
  %1658 = vmatpush1.msra.mxu0 0.0
  %1659 = vmatprep.subr.mxu0 0.0
  %1660 = vmatpush1.msra.mxu0 0.0
  %1661 = vmatprep.subr.mxu0 0.0
  %1662 = vmatpush1.msra.mxu0 0.0
  %1663 = vmatprep.mubr.f32.mxu0 0.0
  %1664 = vmatmul.mubr.f32.gmra.mrb[0].mxu0 %v1597
  %v1665 = vpop.f32.mrb[0].mxu0
  %v1666 = vadd.f32 %v1590, %v1665
  %v1667 = vpop.f32.mrb[0].mxu0
  %v1668 = vadd.f32 %v1594, %v1667
  %1669 = vdwg.mxu0
  %v1671 = vcombine.high %v1668, %v1668
  %v1673 = vunpack.c.l.s4 1966171168
  %v1674 = vunpack.c.0.s8 %v1673
  %v1675 = vlaneseq
  %v1676 = vshrl.u32 %v1675, 7
  %v1677 = vsub.s32 %v1674, %v1676
  %v1678 = vrot.slane %v1668, %v1677
  %v1680 = vunpack.c.l.s4 1966171168
  %v1681 = vunpack.c.0.s8 %v1680
  %v1682 = vlaneseq
  %v1683 = vshrl.u32 %v1682, 7
  %v1684 = vsub.s32 %v1681, %v1683
  %v1685 = vrot.slane %v1671, %v1684
  %v1686 = vcombine.high %v1678, %v1678
  %v1687 = vcombine.high %v1685, %v1685
  %v1689 = vunpack.c.l.s4 1966171168
  %v1690 = vunpack.c.0.s8 %v1689
  %v1691 = vlaneseq
  %v1692 = vshrl.u32 %v1691, 7
  %v1693 = vsub.s32 %v1690, %v1692
  %v1694 = vrot.slane %v1678, %v1693
  %v1696 = vunpack.c.l.s4 1966171168
  %v1697 = vunpack.c.0.s8 %v1696
  %v1698 = vlaneseq
  %v1699 = vshrl.u32 %v1698, 7
  %v1700 = vsub.s32 %v1697, %v1699
  %v1701 = vrot.slane %v1685, %v1700
  %v1703 = vunpack.c.l.s4 1966171168
  %v1704 = vunpack.c.0.s8 %v1703
  %v1705 = vlaneseq
  %v1706 = vshrl.u32 %v1705, 7
  %v1707 = vsub.s32 %v1704, %v1706
  %v1708 = vrot.slane %v1686, %v1707
  %v1710 = vunpack.c.l.s4 1966171168
  %v1711 = vunpack.c.0.s8 %v1710
  %v1712 = vlaneseq
  %v1713 = vshrl.u32 %v1712, 7
  %v1714 = vsub.s32 %v1711, %v1713
  %v1715 = vrot.slane %v1687, %v1714
  %v1716 = vcombine.high %v1694, %v1694
  %v1717 = vcombine.high %v1701, %v1701
  %v1718 = vcombine.high %v1708, %v1708
  %v1719 = vcombine.high %v1715, %v1715
  %v1720 = vld [vmem:[#allocation2] sm:$0xff]
  %v1721 = vld [vmem:[#allocation2 + $0x8] sm:$0xff]
  %v1722 = vld [vmem:[#allocation2 + $0x10] sm:$0xff]
  %v1723 = vld [vmem:[#allocation2 + $0x18] sm:$0xff]
  %v1724 = vld [vmem:[#allocation2 + $0x20] sm:$0xff]
  %v1725 = vld [vmem:[#allocation2 + $0x28] sm:$0xff]
  %v1726 = vld [vmem:[#allocation2 + $0x30] sm:$0xff]
  %v1727 = vld [vmem:[#allocation2 + $0x38] sm:$0xff]
  %v1728 = vld [vmem:[#allocation2 + $0x40] sm:$0xff]
  %v1729 = vld [vmem:[#allocation2 + $0x48] sm:$0xff]
  %v1730 = vld [vmem:[#allocation2 + $0x50] sm:$0xff]
  %v1731 = vld [vmem:[#allocation2 + $0x58] sm:$0xff]
  %v1732 = vld [vmem:[#allocation2 + $0x60] sm:$0xff]
  %v1733 = vld [vmem:[#allocation2 + $0x68] sm:$0xff]
  %v1734 = vld [vmem:[#allocation2 + $0x70] sm:$0xff]
  %v1735 = vld [vmem:[#allocation2 + $0x78] sm:$0xff]
  %v1736 = vlaneseq
  %v1737 = vshrl.u32 %v1736, 7
  %v1738 = vsub.s32 0, %v1737
  %v1739 = vrot.slane %v1694, %v1738
  %v1740 = vlaneseq
  %v1741 = vshrl.u32 %v1740, 7
  %v1742 = vsub.s32 0, %v1741
  %v1743 = vrot.slane %v1708, %v1742
  %v1744 = vlaneseq
  %v1745 = vshrl.u32 %v1744, 7
  %v1746 = vsub.s32 0, %v1745
  %v1747 = vrot.slane %v1716, %v1746
  %v1748 = vlaneseq
  %v1749 = vshrl.u32 %v1748, 7
  %v1750 = vsub.s32 0, %v1749
  %v1751 = vrot.slane %v1718, %v1750
  %v1752 = vlaneseq
  %v1753 = vshrl.u32 %v1752, 7
  %v1754 = vsub.s32 0, %v1753
  %v1755 = vrot.slane %v1701, %v1754
  %v1756 = vlaneseq
  %v1757 = vshrl.u32 %v1756, 7
  %v1758 = vsub.s32 0, %v1757
  %v1759 = vrot.slane %v1715, %v1758
  %v1760 = vlaneseq
  %v1761 = vshrl.u32 %v1760, 7
  %v1762 = vsub.s32 0, %v1761
  %v1763 = vrot.slane %v1717, %v1762
  %v1764 = vlaneseq
  %v1765 = vshrl.u32 %v1764, 7
  %v1766 = vsub.s32 0, %v1765
  %v1767 = vrot.slane %v1719, %v1766
  %v1776 = vmul.f32 %v1739, %v1720
  %v1777 = vmul.f32 %v1739, %v1721
  %v1778 = vmul.f32 %v1743, %v1722
  %v1779 = vmul.f32 %v1743, %v1723
  %v1780 = vmul.f32 %v1747, %v1724
  %v1781 = vmul.f32 %v1747, %v1725
  %v1782 = vmul.f32 %v1751, %v1726
  %v1783 = vmul.f32 %v1751, %v1727
  %v1784 = vmul.f32 %v1755, %v1728
  %v1785 = vmul.f32 %v1755, %v1729
  %v1786 = vmul.f32 %v1759, %v1730
  %v1787 = vmul.f32 %v1759, %v1731
  %v1788 = vmul.f32 %v1763, %v1732
  %v1789 = vmul.f32 %v1763, %v1733
  %v1790 = vmul.f32 %v1767, %v1734
  %v1791 = vmul.f32 %v1767, %v1735
  %v1792 = vsel %vm239, %v1776, 0.0
  %1793 = vadd.xlane.f32.xlu0 %v1792
  %v1794 = vpop.xlane.xlu0 %1793
  %v1795 = vsel %vm239, %v1777, 0.0
  %1796 = vadd.xlane.f32.xlu0 %v1795
  %v1797 = vpop.xlane.xlu0 %1796
  %v1798 = vsel %vm239, %v1778, 0.0
  %1799 = vadd.xlane.f32.xlu0 %v1798
  %v1800 = vpop.xlane.xlu0 %1799
  %v1801 = vsel %vm239, %v1779, 0.0
  %1802 = vadd.xlane.f32.xlu0 %v1801
  %v1803 = vpop.xlane.xlu0 %1802
  %v1804 = vsel %vm239, %v1780, 0.0
  %1805 = vadd.xlane.f32.xlu0 %v1804
  %v1806 = vpop.xlane.xlu0 %1805
  %v1807 = vsel %vm239, %v1781, 0.0
  %1808 = vadd.xlane.f32.xlu0 %v1807
  %v1809 = vpop.xlane.xlu0 %1808
  %v1810 = vsel %vm239, %v1782, 0.0
  %1811 = vadd.xlane.f32.xlu0 %v1810
  %v1812 = vpop.xlane.xlu0 %1811
  %v1813 = vsel %vm239, %v1783, 0.0
  %1814 = vadd.xlane.f32.xlu0 %v1813
  %v1815 = vpop.xlane.xlu0 %1814
  %v1816 = vsel %vm239, %v1784, 0.0
  %1817 = vadd.xlane.f32.xlu0 %v1816
  %v1818 = vpop.xlane.xlu0 %1817
  %v1819 = vsel %vm239, %v1785, 0.0
  %1820 = vadd.xlane.f32.xlu0 %v1819
  %v1821 = vpop.xlane.xlu0 %1820
  %v1822 = vsel %vm239, %v1786, 0.0
  %1823 = vadd.xlane.f32.xlu0 %v1822
  %v1824 = vpop.xlane.xlu0 %1823
  %v1825 = vsel %vm239, %v1787, 0.0
  %1826 = vadd.xlane.f32.xlu0 %v1825
  %v1827 = vpop.xlane.xlu0 %1826
  %v1828 = vsel %vm239, %v1788, 0.0
  %1829 = vadd.xlane.f32.xlu0 %v1828
  %v1830 = vpop.xlane.xlu0 %1829
  %v1831 = vsel %vm239, %v1789, 0.0
  %1832 = vadd.xlane.f32.xlu0 %v1831
  %v1833 = vpop.xlane.xlu0 %1832
  %v1834 = vsel %vm239, %v1790, 0.0
  %1835 = vadd.xlane.f32.xlu0 %v1834
  %v1836 = vpop.xlane.xlu0 %1835
  %v1837 = vsel %vm239, %v1791, 0.0
  %1838 = vadd.xlane.f32.xlu0 %v1837
  %v1839 = vpop.xlane.xlu0 %1838
  %v1856 = vlaneseq
  %v1857 = vshrl.u32 %v1856, 7
  %v1858 = vsub.s32 %v337, %v1857
  %v1859 = vrot.slane %v1794, %v1858
  %v1860 = vlaneseq
  %v1861 = vshrl.u32 %v1860, 7
  %v1862 = vsub.s32 %v625, %v1861
  %v1863 = vrot.slane %v1797, %v1862
  %v1864 = vsel %vm630, %v1863, %v1859
  %v1865 = vlaneseq
  %v1866 = vshrl.u32 %v1865, 7
  %v1867 = vsub.s32 %v337, %v1866
  %v1868 = vrot.slane %v1800, %v1867
  %v1869 = vlaneseq
  %v1870 = vshrl.u32 %v1869, 7
  %v1871 = vsub.s32 %v625, %v1870
  %v1872 = vrot.slane %v1803, %v1871
  %v1873 = vsel %vm630, %v1872, %v1868
  %v1874 = vlaneseq
  %v1875 = vshrl.u32 %v1874, 7
  %v1876 = vsub.s32 %v337, %v1875
  %v1877 = vrot.slane %v1806, %v1876
  %v1878 = vlaneseq
  %v1879 = vshrl.u32 %v1878, 7
  %v1880 = vsub.s32 %v625, %v1879
  %v1881 = vrot.slane %v1809, %v1880
  %v1882 = vsel %vm630, %v1881, %v1877
  %v1883 = vlaneseq
  %v1884 = vshrl.u32 %v1883, 7
  %v1885 = vsub.s32 %v337, %v1884
  %v1886 = vrot.slane %v1812, %v1885
  %v1887 = vlaneseq
  %v1888 = vshrl.u32 %v1887, 7
  %v1889 = vsub.s32 %v625, %v1888
  %v1890 = vrot.slane %v1815, %v1889
  %v1891 = vsel %vm630, %v1890, %v1886
  %v1892 = vlaneseq
  %v1893 = vshrl.u32 %v1892, 7
  %v1894 = vsub.s32 %v337, %v1893
  %v1895 = vrot.slane %v1818, %v1894
  %v1896 = vlaneseq
  %v1897 = vshrl.u32 %v1896, 7
  %v1898 = vsub.s32 %v625, %v1897
  %v1899 = vrot.slane %v1821, %v1898
  %v1900 = vsel %vm630, %v1899, %v1895
  %v1901 = vlaneseq
  %v1902 = vshrl.u32 %v1901, 7
  %v1903 = vsub.s32 %v337, %v1902
  %v1904 = vrot.slane %v1824, %v1903
  %v1905 = vlaneseq
  %v1906 = vshrl.u32 %v1905, 7
  %v1907 = vsub.s32 %v625, %v1906
  %v1908 = vrot.slane %v1827, %v1907
  %v1909 = vsel %vm630, %v1908, %v1904
  %v1910 = vlaneseq
  %v1911 = vshrl.u32 %v1910, 7
  %v1912 = vsub.s32 %v337, %v1911
  %v1913 = vrot.slane %v1830, %v1912
  %v1914 = vlaneseq
  %v1915 = vshrl.u32 %v1914, 7
  %v1916 = vsub.s32 %v625, %v1915
  %v1917 = vrot.slane %v1833, %v1916
  %v1918 = vsel %vm630, %v1917, %v1913
  %v1919 = vlaneseq
  %v1920 = vshrl.u32 %v1919, 7
  %v1921 = vsub.s32 %v337, %v1920
  %v1922 = vrot.slane %v1836, %v1921
  %v1923 = vlaneseq
  %v1924 = vshrl.u32 %v1923, 7
  %v1925 = vsub.s32 %v625, %v1924
  %v1926 = vrot.slane %v1839, %v1925
  %v1927 = vsel %vm630, %v1926, %v1922
  %v1928 = vsel %vm695, %v1873, %v1864
  %v1929 = vsel %vm697, %v1882, %v1928
  %v1930 = vsel %vm699, %v1891, %v1929
  %v1931 = vsel %vm701, %v1900, %v1930
  %v1932 = vsel %vm703, %v1909, %v1931
  %v1933 = vsel %vm705, %v1918, %v1932
  %v1934 = vsel %vm707, %v1927, %v1933
  %v1936 = vsel %vm338, %v1934, -1e+30
  %v1937 = vsel %vm711, %v1936, -inf
  %1938 = vmax.xlane.f32.xlu0 %v1937
  %v1939 = vpop.xlane.xlu0 %1938
  %v1940 = vsub.f32 %v1936, %v1939
  %v1941 = vmul.f32 %v1940, 1.442695
  %v1942 = vpow.pop %v1941
  %v1943 = vsel %vm711, %v1942, 0.0
  %1944 = vadd.xlane.f32.xlu0 %v1943
  %v1945 = vpop.xlane.xlu0 %1944
  %v1946 = vrcp.pop %v1945
  %v1947 = vmul.f32 %v1942, %v1946
  %v1948 = vlaneseq
  %v1949 = vshrl.u32 %v1948, 7
  %v1950 = vsub.s32 0, %v1949
  %v1951 = vrot.slane %v1947, %v1950
  %1953 = vbcast.lane.b32.xlu0 %v1951, 256
  %v1954 = vpop.permute.xlu0 %1953
  %s1956 = sor.u32 256, 8
  %1957 = vbcast.lane.b32.xlu0 %v1951, %s1956
  %v1958 = vpop.permute.xlu0 %1957
  %v1959 = vlaneseq
  %v1960 = vshrl.u32 %v1959, 7
  %v1961 = vsub.s32 1, %v1960
  %v1962 = vrot.slane %v1947, %v1961
  %1964 = vbcast.lane.b32.xlu0 %v1962, 256
  %v1965 = vpop.permute.xlu0 %1964
  %s1967 = sor.u32 256, 8
  %1968 = vbcast.lane.b32.xlu0 %v1962, %s1967
  %v1969 = vpop.permute.xlu0 %1968
  %v1970 = vlaneseq
  %v1971 = vshrl.u32 %v1970, 7
  %v1972 = vsub.s32 2, %v1971
  %v1973 = vrot.slane %v1947, %v1972
  %1975 = vbcast.lane.b32.xlu0 %v1973, 256
  %v1976 = vpop.permute.xlu0 %1975
  %s1978 = sor.u32 256, 8
  %1979 = vbcast.lane.b32.xlu0 %v1973, %s1978
  %v1980 = vpop.permute.xlu0 %1979
  %v1981 = vlaneseq
  %v1982 = vshrl.u32 %v1981, 7
  %v1983 = vsub.s32 3, %v1982
  %v1984 = vrot.slane %v1947, %v1983
  %1986 = vbcast.lane.b32.xlu0 %v1984, 256
  %v1987 = vpop.permute.xlu0 %1986
  %s1989 = sor.u32 256, 8
  %1990 = vbcast.lane.b32.xlu0 %v1984, %s1989
  %v1991 = vpop.permute.xlu0 %1990
  %v1992 = vlaneseq
  %v1993 = vshrl.u32 %v1992, 7
  %v1994 = vsub.s32 4, %v1993
  %v1995 = vrot.slane %v1947, %v1994
  %1997 = vbcast.lane.b32.xlu0 %v1995, 256
  %v1998 = vpop.permute.xlu0 %1997
  %s2000 = sor.u32 256, 8
  %2001 = vbcast.lane.b32.xlu0 %v1995, %s2000
  %v2002 = vpop.permute.xlu0 %2001
  %v2003 = vlaneseq
  %v2004 = vshrl.u32 %v2003, 7
  %v2005 = vsub.s32 5, %v2004
  %v2006 = vrot.slane %v1947, %v2005
  %2008 = vbcast.lane.b32.xlu0 %v2006, 256
  %v2009 = vpop.permute.xlu0 %2008
  %s2011 = sor.u32 256, 8
  %2012 = vbcast.lane.b32.xlu0 %v2006, %s2011
  %v2013 = vpop.permute.xlu0 %2012
  %v2014 = vlaneseq
  %v2015 = vshrl.u32 %v2014, 7
  %v2016 = vsub.s32 6, %v2015
  %v2017 = vrot.slane %v1947, %v2016
  %2019 = vbcast.lane.b32.xlu0 %v2017, 256
  %v2020 = vpop.permute.xlu0 %2019
  %s2022 = sor.u32 256, 8
  %2023 = vbcast.lane.b32.xlu0 %v2017, %s2022
  %v2024 = vpop.permute.xlu0 %2023
  %v2025 = vlaneseq
  %v2026 = vshrl.u32 %v2025, 7
  %v2027 = vsub.s32 7, %v2026
  %v2028 = vrot.slane %v1947, %v2027
  %2030 = vbcast.lane.b32.xlu0 %v2028, 256
  %v2031 = vpop.permute.xlu0 %2030
  %s2033 = sor.u32 256, 8
  %2034 = vbcast.lane.b32.xlu0 %v2028, %s2033
  %v2035 = vpop.permute.xlu0 %2034
  %v2036 = vld [vmem:[#allocation3] sm:$0xff]
  %v2037 = vld [vmem:[#allocation3 + $0x8] sm:$0xff]
  %v2038 = vld [vmem:[#allocation3 + $0x10] sm:$0xff]
  %v2039 = vld [vmem:[#allocation3 + $0x18] sm:$0xff]
  %v2040 = vld [vmem:[#allocation3 + $0x20] sm:$0xff]
  %v2041 = vld [vmem:[#allocation3 + $0x28] sm:$0xff]
  %v2042 = vld [vmem:[#allocation3 + $0x30] sm:$0xff]
  %v2043 = vld [vmem:[#allocation3 + $0x38] sm:$0xff]
  %v2044 = vld [vmem:[#allocation3 + $0x40] sm:$0xff]
  %v2045 = vld [vmem:[#allocation3 + $0x48] sm:$0xff]
  %v2046 = vld [vmem:[#allocation3 + $0x50] sm:$0xff]
  %v2047 = vld [vmem:[#allocation3 + $0x58] sm:$0xff]
  %v2048 = vld [vmem:[#allocation3 + $0x60] sm:$0xff]
  %v2049 = vld [vmem:[#allocation3 + $0x68] sm:$0xff]
  %v2050 = vld [vmem:[#allocation3 + $0x70] sm:$0xff]
  %v2051 = vld [vmem:[#allocation3 + $0x78] sm:$0xff]
  %v2052 = vmul.f32 %v1954, %v2036
  %v2053 = vmul.f32 %v1958, %v2037
  %v2054 = vmul.f32 %v1965, %v2038
  %v2055 = vmul.f32 %v1969, %v2039
  %v2056 = vmul.f32 %v1976, %v2040
  %v2057 = vmul.f32 %v1980, %v2041
  %v2058 = vmul.f32 %v1987, %v2042
  %v2059 = vmul.f32 %v1991, %v2043
  %v2060 = vmul.f32 %v1998, %v2044
  %v2061 = vmul.f32 %v2002, %v2045
  %v2062 = vmul.f32 %v2009, %v2046
  %v2063 = vmul.f32 %v2013, %v2047
  %v2064 = vmul.f32 %v2020, %v2048
  %v2065 = vmul.f32 %v2024, %v2049
  %v2066 = vmul.f32 %v2031, %v2050
  %v2067 = vmul.f32 %v2035, %v2051
  %v2068 = vsel %vm239, %v2052, 0.0
  %v2069 = vsel %vm239, %v2053, 0.0
  %v2070 = vadd.f32 %v2068, %v2069
  %v2071 = vrot.slane %v2070, 4
  %v2072 = vadd.f32 %v2070, %v2071
  %v2073 = vrot.slane %v2072, 2
  %v2074 = vadd.f32 %v2072, %v2073
  %v2075 = vrot.slane %v2074, 1
  %v2076 = vadd.f32 %v2074, %v2075
  %v2077 = vsel %vm239, %v2054, 0.0
  %v2078 = vsel %vm239, %v2055, 0.0
  %v2079 = vadd.f32 %v2077, %v2078
  %v2080 = vrot.slane %v2079, 4
  %v2081 = vadd.f32 %v2079, %v2080
  %v2082 = vrot.slane %v2081, 2
  %v2083 = vadd.f32 %v2081, %v2082
  %v2084 = vrot.slane %v2083, 1
  %v2085 = vadd.f32 %v2083, %v2084
  %v2086 = vsel %vm239, %v2056, 0.0
  %v2087 = vsel %vm239, %v2057, 0.0
  %v2088 = vadd.f32 %v2086, %v2087
  %v2089 = vrot.slane %v2088, 4
  %v2090 = vadd.f32 %v2088, %v2089
  %v2091 = vrot.slane %v2090, 2
  %v2092 = vadd.f32 %v2090, %v2091
  %v2093 = vrot.slane %v2092, 1
  %v2094 = vadd.f32 %v2092, %v2093
  %v2095 = vsel %vm239, %v2058, 0.0
  %v2096 = vsel %vm239, %v2059, 0.0
  %v2097 = vadd.f32 %v2095, %v2096
  %v2098 = vrot.slane %v2097, 4
  %v2099 = vadd.f32 %v2097, %v2098
  %v2100 = vrot.slane %v2099, 2
  %v2101 = vadd.f32 %v2099, %v2100
  %v2102 = vrot.slane %v2101, 1
  %v2103 = vadd.f32 %v2101, %v2102
  %v2104 = vsel %vm239, %v2060, 0.0
  %v2105 = vsel %vm239, %v2061, 0.0
  %v2106 = vadd.f32 %v2104, %v2105
  %v2107 = vrot.slane %v2106, 4
  %v2108 = vadd.f32 %v2106, %v2107
  %v2109 = vrot.slane %v2108, 2
  %v2110 = vadd.f32 %v2108, %v2109
  %v2111 = vrot.slane %v2110, 1
  %v2112 = vadd.f32 %v2110, %v2111
  %v2113 = vsel %vm239, %v2062, 0.0
  %v2114 = vsel %vm239, %v2063, 0.0
  %v2115 = vadd.f32 %v2113, %v2114
  %v2116 = vrot.slane %v2115, 4
  %v2117 = vadd.f32 %v2115, %v2116
  %v2118 = vrot.slane %v2117, 2
  %v2119 = vadd.f32 %v2117, %v2118
  %v2120 = vrot.slane %v2119, 1
  %v2121 = vadd.f32 %v2119, %v2120
  %v2122 = vsel %vm239, %v2064, 0.0
  %v2123 = vsel %vm239, %v2065, 0.0
  %v2124 = vadd.f32 %v2122, %v2123
  %v2125 = vrot.slane %v2124, 4
  %v2126 = vadd.f32 %v2124, %v2125
  %v2127 = vrot.slane %v2126, 2
  %v2128 = vadd.f32 %v2126, %v2127
  %v2129 = vrot.slane %v2128, 1
  %v2130 = vadd.f32 %v2128, %v2129
  %v2131 = vsel %vm239, %v2066, 0.0
  %v2132 = vsel %vm239, %v2067, 0.0
  %v2133 = vadd.f32 %v2131, %v2132
  %v2134 = vrot.slane %v2133, 4
  %v2135 = vadd.f32 %v2133, %v2134
  %v2136 = vrot.slane %v2135, 2
  %v2137 = vadd.f32 %v2135, %v2136
  %v2138 = vrot.slane %v2137, 1
  %v2139 = vadd.f32 %v2137, %v2138
  %s2140 = scalar_lea.vmem %s0, 16
  %v2141 = vld [vmem:[%s2140] sm:$0xff]
  %v2142 = vadd.f32 %v2141, %v1666
  %v2143 = vxor.u32 %v2142, 2147483648
  %v2144 = vmul.f32 %v2143, 1.442695
  %v2145 = vpow.pop %v2144
  %v2146 = vadd.f32 %v2145, 1.0
  %v2147 = vrcp.pop %v2146
  %v2148 = vmul.f32 1.0, %v2147
  %v2149 = vtanh.pop %v2142
  %v2158 = vsel %vm695, %v2085, %v2076
  %v2159 = vsel %vm697, %v2094, %v2158
  %v2160 = vsel %vm699, %v2103, %v2159
  %v2161 = vsel %vm701, %v2112, %v2160
  %v2162 = vsel %vm703, %v2121, %v2161
  %v2163 = vsel %vm705, %v2130, %v2162
  %v2164 = vsel %vm707, %v2139, %v2163
  %v2166 = vmul.f32 %v2148, %v2164
  %2168 = vrot.lane.b32.xlu0 %v2149, 64
  %v2169 = vpop.permute.xlu0 %2168
  %v2171 = vmul.f32 %v2148, %v2169
  %2173 = vrot.lane.b32.xlu0 %v2171, 96
  %v2174 = vpop.permute.xlu0 %2173
  %v2176 = vadd.f32 %v2166, %v2174
  %v2177 = vtanh.pop %v2176
  %2179 = vrot.lane.b32.xlu0 %v2177, 64
  %v2180 = vpop.permute.xlu0 %2179
  %v2182 = vmul.f32 %v2148, %v2180
  %2184 = vrot.lane.b32.xlu0 %v2182, 64
  %v2185 = vpop.permute.xlu0 %2184
  %s2187 = scalar_lea.vmem [#allocation4], 16
  %2188 = vst.msk [vmem:[%s2187] sm:$0xff] %vm239, %v2185
  %s2189 = scalar_lea.vmem [#allocation5], 16
  %2190 = vst.msk [vmem:[%s2189] sm:$0xff] %vm711, %v1947
  %v2191 = vld [vmem:[%s3 + $0x80] sm:$0xff]
  %v2192 = vld [vmem:[%s3 + $0x88] sm:$0xff]
  %v2193 = vld [vmem:[%s3 + $0x90] sm:$0xff]
  %v2194 = vld [vmem:[%s3 + $0x98] sm:$0xff]
  %v2195 = vld [vmem:[%s3 + $0xa0] sm:$0xff]
  %v2196 = vld [vmem:[%s3 + $0xa8] sm:$0xff]
  %v2197 = vld [vmem:[%s3 + $0xb0] sm:$0xff]
  %v2198 = vld [vmem:[%s3 + $0xb8] sm:$0xff]
  %v2199 = vld [vmem:[%s348] ss:$8 sm:$0x3]
  %v2201 = vlaneseq
  %v2202 = vshrl.u32 %v2201, 7
  %v2203 = vsub.s32 0, %v2202
  %v2204 = vrot.slane %v2199, %v2203
  %v2205 = vlaneseq
  %v2206 = vshrl.u32 %v2205, 7
  %v2207 = vsub.s32 1, %v2206
  %v2208 = vrot.slane %v2199, %v2207
  %v2211 = vsel %vm239, %v2185, 0
  %2213 = vmatprep.subr.mxu0 %v2192
  %2214 = vmatpush1.msra.mxu0 %v2191
  %2215 = vmatprep.subr.mxu0 %v2194
  %2216 = vmatpush1.msra.mxu0 %v2193
  %2217 = vmatprep.subr.mxu0 %v2196
  %2218 = vmatpush1.msra.mxu0 %v2195
  %2219 = vmatprep.subr.mxu0 %v2198
  %2220 = vmatpush1.msra.mxu0 %v2197
  %2221 = vmatprep.subr.mxu0 0.0
  %2222 = vmatpush1.msra.mxu0 0.0
  %2223 = vmatprep.subr.mxu0 0.0
  %2224 = vmatpush1.msra.mxu0 0.0
  %2225 = vmatprep.subr.mxu0 0.0
  %2226 = vmatpush1.msra.mxu0 0.0
  %2227 = vmatprep.subr.mxu0 0.0
  %2228 = vmatpush1.msra.mxu0 0.0
  %2229 = vmatprep.subr.mxu0 0.0
  %2230 = vmatpush1.msra.mxu0 0.0
  %2231 = vmatprep.subr.mxu0 0.0
  %2232 = vmatpush1.msra.mxu0 0.0
  %2233 = vmatprep.subr.mxu0 0.0
  %2234 = vmatpush1.msra.mxu0 0.0
  %2235 = vmatprep.subr.mxu0 0.0
  %2236 = vmatpush1.msra.mxu0 0.0
  %2237 = vmatprep.subr.mxu0 0.0
  %2238 = vmatpush1.msra.mxu0 0.0
  %2239 = vmatprep.subr.mxu0 0.0
  %2240 = vmatpush1.msra.mxu0 0.0
  %2241 = vmatprep.subr.mxu0 0.0
  %2242 = vmatpush1.msra.mxu0 0.0
  %2243 = vmatprep.subr.mxu0 0.0
  %2244 = vmatpush1.msra.mxu0 0.0
  %2245 = vmatprep.subr.mxu0 0.0
  %2246 = vmatpush1.msra.mxu0 0.0
  %2247 = vmatprep.subr.mxu0 0.0
  %2248 = vmatpush1.msra.mxu0 0.0
  %2249 = vmatprep.subr.mxu0 0.0
  %2250 = vmatpush1.msra.mxu0 0.0
  %2251 = vmatprep.subr.mxu0 0.0
  %2252 = vmatpush1.msra.mxu0 0.0
  %2253 = vmatprep.subr.mxu0 0.0
  %2254 = vmatpush1.msra.mxu0 0.0
  %2255 = vmatprep.subr.mxu0 0.0
  %2256 = vmatpush1.msra.mxu0 0.0
  %2257 = vmatprep.subr.mxu0 0.0
  %2258 = vmatpush1.msra.mxu0 0.0
  %2259 = vmatprep.subr.mxu0 0.0
  %2260 = vmatpush1.msra.mxu0 0.0
  %2261 = vmatprep.subr.mxu0 0.0
  %2262 = vmatpush1.msra.mxu0 0.0
  %2263 = vmatprep.subr.mxu0 0.0
  %2264 = vmatpush1.msra.mxu0 0.0
  %2265 = vmatprep.subr.mxu0 0.0
  %2266 = vmatpush1.msra.mxu0 0.0
  %2267 = vmatprep.subr.mxu0 0.0
  %2268 = vmatpush1.msra.mxu0 0.0
  %2269 = vmatprep.subr.mxu0 0.0
  %2270 = vmatpush1.msra.mxu0 0.0
  %2271 = vmatprep.subr.mxu0 0.0
  %2272 = vmatpush1.msra.mxu0 0.0
  %2273 = vmatprep.subr.mxu0 0.0
  %2274 = vmatpush1.msra.mxu0 0.0
  %2275 = vmatprep.subr.mxu0 0.0
  %2276 = vmatpush1.msra.mxu0 0.0
  %2277 = vmatprep.mubr.f32.mxu0 0.0
  %2278 = vmatmul.mubr.f32.gmra.mrb[0].mxu0 %v2211
  %v2279 = vpop.f32.mrb[0].mxu0
  %v2280 = vadd.f32 %v2204, %v2279
  %v2281 = vpop.f32.mrb[0].mxu0
  %v2282 = vadd.f32 %v2208, %v2281
  %2283 = vdwg.mxu0
  %v2285 = vcombine.high %v2282, %v2282
  %v2287 = vunpack.c.l.s4 1966171168
  %v2288 = vunpack.c.0.s8 %v2287
  %v2289 = vlaneseq
  %v2290 = vshrl.u32 %v2289, 7
  %v2291 = vsub.s32 %v2288, %v2290
  %v2292 = vrot.slane %v2282, %v2291
  %v2294 = vunpack.c.l.s4 1966171168
  %v2295 = vunpack.c.0.s8 %v2294
  %v2296 = vlaneseq
  %v2297 = vshrl.u32 %v2296, 7
  %v2298 = vsub.s32 %v2295, %v2297
  %v2299 = vrot.slane %v2285, %v2298
  %v2300 = vcombine.high %v2292, %v2292
  %v2301 = vcombine.high %v2299, %v2299
  %v2303 = vunpack.c.l.s4 1966171168
  %v2304 = vunpack.c.0.s8 %v2303
  %v2305 = vlaneseq
  %v2306 = vshrl.u32 %v2305, 7
  %v2307 = vsub.s32 %v2304, %v2306
  %v2308 = vrot.slane %v2292, %v2307
  %v2310 = vunpack.c.l.s4 1966171168
  %v2311 = vunpack.c.0.s8 %v2310
  %v2312 = vlaneseq
  %v2313 = vshrl.u32 %v2312, 7
  %v2314 = vsub.s32 %v2311, %v2313
  %v2315 = vrot.slane %v2299, %v2314
  %v2317 = vunpack.c.l.s4 1966171168
  %v2318 = vunpack.c.0.s8 %v2317
  %v2319 = vlaneseq
  %v2320 = vshrl.u32 %v2319, 7
  %v2321 = vsub.s32 %v2318, %v2320
  %v2322 = vrot.slane %v2300, %v2321
  %v2324 = vunpack.c.l.s4 1966171168
  %v2325 = vunpack.c.0.s8 %v2324
  %v2326 = vlaneseq
  %v2327 = vshrl.u32 %v2326, 7
  %v2328 = vsub.s32 %v2325, %v2327
  %v2329 = vrot.slane %v2301, %v2328
  %v2330 = vcombine.high %v2308, %v2308
  %v2331 = vcombine.high %v2315, %v2315
  %v2332 = vcombine.high %v2322, %v2322
  %v2333 = vcombine.high %v2329, %v2329
  %v2334 = vld [vmem:[#allocation2] sm:$0xff]
  %v2335 = vld [vmem:[#allocation2 + $0x8] sm:$0xff]
  %v2336 = vld [vmem:[#allocation2 + $0x10] sm:$0xff]
  %v2337 = vld [vmem:[#allocation2 + $0x18] sm:$0xff]
  %v2338 = vld [vmem:[#allocation2 + $0x20] sm:$0xff]
  %v2339 = vld [vmem:[#allocation2 + $0x28] sm:$0xff]
  %v2340 = vld [vmem:[#allocation2 + $0x30] sm:$0xff]
  %v2341 = vld [vmem:[#allocation2 + $0x38] sm:$0xff]
  %v2342 = vld [vmem:[#allocation2 + $0x40] sm:$0xff]
  %v2343 = vld [vmem:[#allocation2 + $0x48] sm:$0xff]
  %v2344 = vld [vmem:[#allocation2 + $0x50] sm:$0xff]
  %v2345 = vld [vmem:[#allocation2 + $0x58] sm:$0xff]
  %v2346 = vld [vmem:[#allocation2 + $0x60] sm:$0xff]
  %v2347 = vld [vmem:[#allocation2 + $0x68] sm:$0xff]
  %v2348 = vld [vmem:[#allocation2 + $0x70] sm:$0xff]
  %v2349 = vld [vmem:[#allocation2 + $0x78] sm:$0xff]
  %v2350 = vlaneseq
  %v2351 = vshrl.u32 %v2350, 7
  %v2352 = vsub.s32 0, %v2351
  %v2353 = vrot.slane %v2308, %v2352
  %v2354 = vlaneseq
  %v2355 = vshrl.u32 %v2354, 7
  %v2356 = vsub.s32 0, %v2355
  %v2357 = vrot.slane %v2322, %v2356
  %v2358 = vlaneseq
  %v2359 = vshrl.u32 %v2358, 7
  %v2360 = vsub.s32 0, %v2359
  %v2361 = vrot.slane %v2330, %v2360
  %v2362 = vlaneseq
  %v2363 = vshrl.u32 %v2362, 7
  %v2364 = vsub.s32 0, %v2363
  %v2365 = vrot.slane %v2332, %v2364
  %v2366 = vlaneseq
  %v2367 = vshrl.u32 %v2366, 7
  %v2368 = vsub.s32 0, %v2367
  %v2369 = vrot.slane %v2315, %v2368
  %v2370 = vlaneseq
  %v2371 = vshrl.u32 %v2370, 7
  %v2372 = vsub.s32 0, %v2371
  %v2373 = vrot.slane %v2329, %v2372
  %v2374 = vlaneseq
  %v2375 = vshrl.u32 %v2374, 7
  %v2376 = vsub.s32 0, %v2375
  %v2377 = vrot.slane %v2331, %v2376
  %v2378 = vlaneseq
  %v2379 = vshrl.u32 %v2378, 7
  %v2380 = vsub.s32 0, %v2379
  %v2381 = vrot.slane %v2333, %v2380
  %v2390 = vmul.f32 %v2353, %v2334
  %v2391 = vmul.f32 %v2353, %v2335
  %v2392 = vmul.f32 %v2357, %v2336
  %v2393 = vmul.f32 %v2357, %v2337
  %v2394 = vmul.f32 %v2361, %v2338
  %v2395 = vmul.f32 %v2361, %v2339
  %v2396 = vmul.f32 %v2365, %v2340
  %v2397 = vmul.f32 %v2365, %v2341
  %v2398 = vmul.f32 %v2369, %v2342
  %v2399 = vmul.f32 %v2369, %v2343
  %v2400 = vmul.f32 %v2373, %v2344
  %v2401 = vmul.f32 %v2373, %v2345
  %v2402 = vmul.f32 %v2377, %v2346
  %v2403 = vmul.f32 %v2377, %v2347
  %v2404 = vmul.f32 %v2381, %v2348
  %v2405 = vmul.f32 %v2381, %v2349
  %v2406 = vsel %vm239, %v2390, 0.0
  %2407 = vadd.xlane.f32.xlu0 %v2406
  %v2408 = vpop.xlane.xlu0 %2407
  %v2409 = vsel %vm239, %v2391, 0.0
  %2410 = vadd.xlane.f32.xlu0 %v2409
  %v2411 = vpop.xlane.xlu0 %2410
  %v2412 = vsel %vm239, %v2392, 0.0
  %2413 = vadd.xlane.f32.xlu0 %v2412
  %v2414 = vpop.xlane.xlu0 %2413
  %v2415 = vsel %vm239, %v2393, 0.0
  %2416 = vadd.xlane.f32.xlu0 %v2415
  %v2417 = vpop.xlane.xlu0 %2416
  %v2418 = vsel %vm239, %v2394, 0.0
  %2419 = vadd.xlane.f32.xlu0 %v2418
  %v2420 = vpop.xlane.xlu0 %2419
  %v2421 = vsel %vm239, %v2395, 0.0
  %2422 = vadd.xlane.f32.xlu0 %v2421
  %v2423 = vpop.xlane.xlu0 %2422
  %v2424 = vsel %vm239, %v2396, 0.0
  %2425 = vadd.xlane.f32.xlu0 %v2424
  %v2426 = vpop.xlane.xlu0 %2425
  %v2427 = vsel %vm239, %v2397, 0.0
  %2428 = vadd.xlane.f32.xlu0 %v2427
  %v2429 = vpop.xlane.xlu0 %2428
  %v2430 = vsel %vm239, %v2398, 0.0
  %2431 = vadd.xlane.f32.xlu0 %v2430
  %v2432 = vpop.xlane.xlu0 %2431
  %v2433 = vsel %vm239, %v2399, 0.0
  %2434 = vadd.xlane.f32.xlu0 %v2433
  %v2435 = vpop.xlane.xlu0 %2434
  %v2436 = vsel %vm239, %v2400, 0.0
  %2437 = vadd.xlane.f32.xlu0 %v2436
  %v2438 = vpop.xlane.xlu0 %2437
  %v2439 = vsel %vm239, %v2401, 0.0
  %2440 = vadd.xlane.f32.xlu0 %v2439
  %v2441 = vpop.xlane.xlu0 %2440
  %v2442 = vsel %vm239, %v2402, 0.0
  %2443 = vadd.xlane.f32.xlu0 %v2442
  %v2444 = vpop.xlane.xlu0 %2443
  %v2445 = vsel %vm239, %v2403, 0.0
  %2446 = vadd.xlane.f32.xlu0 %v2445
  %v2447 = vpop.xlane.xlu0 %2446
  %v2448 = vsel %vm239, %v2404, 0.0
  %2449 = vadd.xlane.f32.xlu0 %v2448
  %v2450 = vpop.xlane.xlu0 %2449
  %v2451 = vsel %vm239, %v2405, 0.0
  %2452 = vadd.xlane.f32.xlu0 %v2451
  %v2453 = vpop.xlane.xlu0 %2452
  %v2470 = vlaneseq
  %v2471 = vshrl.u32 %v2470, 7
  %v2472 = vsub.s32 %v337, %v2471
  %v2473 = vrot.slane %v2408, %v2472
  %v2474 = vlaneseq
  %v2475 = vshrl.u32 %v2474, 7
  %v2476 = vsub.s32 %v625, %v2475
  %v2477 = vrot.slane %v2411, %v2476
  %v2478 = vsel %vm630, %v2477, %v2473
  %v2479 = vlaneseq
  %v2480 = vshrl.u32 %v2479, 7
  %v2481 = vsub.s32 %v337, %v2480
  %v2482 = vrot.slane %v2414, %v2481
  %v2483 = vlaneseq
  %v2484 = vshrl.u32 %v2483, 7
  %v2485 = vsub.s32 %v625, %v2484
  %v2486 = vrot.slane %v2417, %v2485
  %v2487 = vsel %vm630, %v2486, %v2482
  %v2488 = vlaneseq
  %v2489 = vshrl.u32 %v2488, 7
  %v2490 = vsub.s32 %v337, %v2489
  %v2491 = vrot.slane %v2420, %v2490
  %v2492 = vlaneseq
  %v2493 = vshrl.u32 %v2492, 7
  %v2494 = vsub.s32 %v625, %v2493
  %v2495 = vrot.slane %v2423, %v2494
  %v2496 = vsel %vm630, %v2495, %v2491
  %v2497 = vlaneseq
  %v2498 = vshrl.u32 %v2497, 7
  %v2499 = vsub.s32 %v337, %v2498
  %v2500 = vrot.slane %v2426, %v2499
  %v2501 = vlaneseq
  %v2502 = vshrl.u32 %v2501, 7
  %v2503 = vsub.s32 %v625, %v2502
  %v2504 = vrot.slane %v2429, %v2503
  %v2505 = vsel %vm630, %v2504, %v2500
  %v2506 = vlaneseq
  %v2507 = vshrl.u32 %v2506, 7
  %v2508 = vsub.s32 %v337, %v2507
  %v2509 = vrot.slane %v2432, %v2508
  %v2510 = vlaneseq
  %v2511 = vshrl.u32 %v2510, 7
  %v2512 = vsub.s32 %v625, %v2511
  %v2513 = vrot.slane %v2435, %v2512
  %v2514 = vsel %vm630, %v2513, %v2509
  %v2515 = vlaneseq
  %v2516 = vshrl.u32 %v2515, 7
  %v2517 = vsub.s32 %v337, %v2516
  %v2518 = vrot.slane %v2438, %v2517
  %v2519 = vlaneseq
  %v2520 = vshrl.u32 %v2519, 7
  %v2521 = vsub.s32 %v625, %v2520
  %v2522 = vrot.slane %v2441, %v2521
  %v2523 = vsel %vm630, %v2522, %v2518
  %v2524 = vlaneseq
  %v2525 = vshrl.u32 %v2524, 7
  %v2526 = vsub.s32 %v337, %v2525
  %v2527 = vrot.slane %v2444, %v2526
  %v2528 = vlaneseq
  %v2529 = vshrl.u32 %v2528, 7
  %v2530 = vsub.s32 %v625, %v2529
  %v2531 = vrot.slane %v2447, %v2530
  %v2532 = vsel %vm630, %v2531, %v2527
  %v2533 = vlaneseq
  %v2534 = vshrl.u32 %v2533, 7
  %v2535 = vsub.s32 %v337, %v2534
  %v2536 = vrot.slane %v2450, %v2535
  %v2537 = vlaneseq
  %v2538 = vshrl.u32 %v2537, 7
  %v2539 = vsub.s32 %v625, %v2538
  %v2540 = vrot.slane %v2453, %v2539
  %v2541 = vsel %vm630, %v2540, %v2536
  %v2542 = vsel %vm695, %v2487, %v2478
  %v2543 = vsel %vm697, %v2496, %v2542
  %v2544 = vsel %vm699, %v2505, %v2543
  %v2545 = vsel %vm701, %v2514, %v2544
  %v2546 = vsel %vm703, %v2523, %v2545
  %v2547 = vsel %vm705, %v2532, %v2546
  %v2548 = vsel %vm707, %v2541, %v2547
  %v2550 = vsel %vm338, %v2548, -1e+30
  %v2551 = vsel %vm711, %v2550, -inf
  %2552 = vmax.xlane.f32.xlu0 %v2551
  %v2553 = vpop.xlane.xlu0 %2552
  %v2554 = vsub.f32 %v2550, %v2553
  %v2555 = vmul.f32 %v2554, 1.442695
  %v2556 = vpow.pop %v2555
  %v2557 = vsel %vm711, %v2556, 0.0
  %2558 = vadd.xlane.f32.xlu0 %v2557
  %v2559 = vpop.xlane.xlu0 %2558
  %v2560 = vrcp.pop %v2559
  %v2561 = vmul.f32 %v2556, %v2560
  %v2562 = vlaneseq
  %v2563 = vshrl.u32 %v2562, 7
  %v2564 = vsub.s32 0, %v2563
  %v2565 = vrot.slane %v2561, %v2564
  %2567 = vbcast.lane.b32.xlu0 %v2565, 256
  %v2568 = vpop.permute.xlu0 %2567
  %s2570 = sor.u32 256, 8
  %2571 = vbcast.lane.b32.xlu0 %v2565, %s2570
  %v2572 = vpop.permute.xlu0 %2571
  %v2573 = vlaneseq
  %v2574 = vshrl.u32 %v2573, 7
  %v2575 = vsub.s32 1, %v2574
  %v2576 = vrot.slane %v2561, %v2575
  %2578 = vbcast.lane.b32.xlu0 %v2576, 256
  %v2579 = vpop.permute.xlu0 %2578
  %s2581 = sor.u32 256, 8
  %2582 = vbcast.lane.b32.xlu0 %v2576, %s2581
  %v2583 = vpop.permute.xlu0 %2582
  %v2584 = vlaneseq
  %v2585 = vshrl.u32 %v2584, 7
  %v2586 = vsub.s32 2, %v2585
  %v2587 = vrot.slane %v2561, %v2586
  %2589 = vbcast.lane.b32.xlu0 %v2587, 256
  %v2590 = vpop.permute.xlu0 %2589
  %s2592 = sor.u32 256, 8
  %2593 = vbcast.lane.b32.xlu0 %v2587, %s2592
  %v2594 = vpop.permute.xlu0 %2593
  %v2595 = vlaneseq
  %v2596 = vshrl.u32 %v2595, 7
  %v2597 = vsub.s32 3, %v2596
  %v2598 = vrot.slane %v2561, %v2597
  %2600 = vbcast.lane.b32.xlu0 %v2598, 256
  %v2601 = vpop.permute.xlu0 %2600
  %s2603 = sor.u32 256, 8
  %2604 = vbcast.lane.b32.xlu0 %v2598, %s2603
  %v2605 = vpop.permute.xlu0 %2604
  %v2606 = vlaneseq
  %v2607 = vshrl.u32 %v2606, 7
  %v2608 = vsub.s32 4, %v2607
  %v2609 = vrot.slane %v2561, %v2608
  %2611 = vbcast.lane.b32.xlu0 %v2609, 256
  %v2612 = vpop.permute.xlu0 %2611
  %s2614 = sor.u32 256, 8
  %2615 = vbcast.lane.b32.xlu0 %v2609, %s2614
  %v2616 = vpop.permute.xlu0 %2615
  %v2617 = vlaneseq
  %v2618 = vshrl.u32 %v2617, 7
  %v2619 = vsub.s32 5, %v2618
  %v2620 = vrot.slane %v2561, %v2619
  %2622 = vbcast.lane.b32.xlu0 %v2620, 256
  %v2623 = vpop.permute.xlu0 %2622
  %s2625 = sor.u32 256, 8
  %2626 = vbcast.lane.b32.xlu0 %v2620, %s2625
  %v2627 = vpop.permute.xlu0 %2626
  %v2628 = vlaneseq
  %v2629 = vshrl.u32 %v2628, 7
  %v2630 = vsub.s32 6, %v2629
  %v2631 = vrot.slane %v2561, %v2630
  %2633 = vbcast.lane.b32.xlu0 %v2631, 256
  %v2634 = vpop.permute.xlu0 %2633
  %s2636 = sor.u32 256, 8
  %2637 = vbcast.lane.b32.xlu0 %v2631, %s2636
  %v2638 = vpop.permute.xlu0 %2637
  %v2639 = vlaneseq
  %v2640 = vshrl.u32 %v2639, 7
  %v2641 = vsub.s32 7, %v2640
  %v2642 = vrot.slane %v2561, %v2641
  %2644 = vbcast.lane.b32.xlu0 %v2642, 256
  %v2645 = vpop.permute.xlu0 %2644
  %s2647 = sor.u32 256, 8
  %2648 = vbcast.lane.b32.xlu0 %v2642, %s2647
  %v2649 = vpop.permute.xlu0 %2648
  %v2650 = vld [vmem:[#allocation3] sm:$0xff]
  %v2651 = vld [vmem:[#allocation3 + $0x8] sm:$0xff]
  %v2652 = vld [vmem:[#allocation3 + $0x10] sm:$0xff]
  %v2653 = vld [vmem:[#allocation3 + $0x18] sm:$0xff]
  %v2654 = vld [vmem:[#allocation3 + $0x20] sm:$0xff]
  %v2655 = vld [vmem:[#allocation3 + $0x28] sm:$0xff]
  %v2656 = vld [vmem:[#allocation3 + $0x30] sm:$0xff]
  %v2657 = vld [vmem:[#allocation3 + $0x38] sm:$0xff]
  %v2658 = vld [vmem:[#allocation3 + $0x40] sm:$0xff]
  %v2659 = vld [vmem:[#allocation3 + $0x48] sm:$0xff]
  %v2660 = vld [vmem:[#allocation3 + $0x50] sm:$0xff]
  %v2661 = vld [vmem:[#allocation3 + $0x58] sm:$0xff]
  %v2662 = vld [vmem:[#allocation3 + $0x60] sm:$0xff]
  %v2663 = vld [vmem:[#allocation3 + $0x68] sm:$0xff]
  %v2664 = vld [vmem:[#allocation3 + $0x70] sm:$0xff]
  %v2665 = vld [vmem:[#allocation3 + $0x78] sm:$0xff]
  %v2666 = vmul.f32 %v2568, %v2650
  %v2667 = vmul.f32 %v2572, %v2651
  %v2668 = vmul.f32 %v2579, %v2652
  %v2669 = vmul.f32 %v2583, %v2653
  %v2670 = vmul.f32 %v2590, %v2654
  %v2671 = vmul.f32 %v2594, %v2655
  %v2672 = vmul.f32 %v2601, %v2656
  %v2673 = vmul.f32 %v2605, %v2657
  %v2674 = vmul.f32 %v2612, %v2658
  %v2675 = vmul.f32 %v2616, %v2659
  %v2676 = vmul.f32 %v2623, %v2660
  %v2677 = vmul.f32 %v2627, %v2661
  %v2678 = vmul.f32 %v2634, %v2662
  %v2679 = vmul.f32 %v2638, %v2663
  %v2680 = vmul.f32 %v2645, %v2664
  %v2681 = vmul.f32 %v2649, %v2665
  %v2682 = vsel %vm239, %v2666, 0.0
  %v2683 = vsel %vm239, %v2667, 0.0
  %v2684 = vadd.f32 %v2682, %v2683
  %v2685 = vrot.slane %v2684, 4
  %v2686 = vadd.f32 %v2684, %v2685
  %v2687 = vrot.slane %v2686, 2
  %v2688 = vadd.f32 %v2686, %v2687
  %v2689 = vrot.slane %v2688, 1
  %v2690 = vadd.f32 %v2688, %v2689
  %v2691 = vsel %vm239, %v2668, 0.0
  %v2692 = vsel %vm239, %v2669, 0.0
  %v2693 = vadd.f32 %v2691, %v2692
  %v2694 = vrot.slane %v2693, 4
  %v2695 = vadd.f32 %v2693, %v2694
  %v2696 = vrot.slane %v2695, 2
  %v2697 = vadd.f32 %v2695, %v2696
  %v2698 = vrot.slane %v2697, 1
  %v2699 = vadd.f32 %v2697, %v2698
  %v2700 = vsel %vm239, %v2670, 0.0
  %v2701 = vsel %vm239, %v2671, 0.0
  %v2702 = vadd.f32 %v2700, %v2701
  %v2703 = vrot.slane %v2702, 4
  %v2704 = vadd.f32 %v2702, %v2703
  %v2705 = vrot.slane %v2704, 2
  %v2706 = vadd.f32 %v2704, %v2705
  %v2707 = vrot.slane %v2706, 1
  %v2708 = vadd.f32 %v2706, %v2707
  %v2709 = vsel %vm239, %v2672, 0.0
  %v2710 = vsel %vm239, %v2673, 0.0
  %v2711 = vadd.f32 %v2709, %v2710
  %v2712 = vrot.slane %v2711, 4
  %v2713 = vadd.f32 %v2711, %v2712
  %v2714 = vrot.slane %v2713, 2
  %v2715 = vadd.f32 %v2713, %v2714
  %v2716 = vrot.slane %v2715, 1
  %v2717 = vadd.f32 %v2715, %v2716
  %v2718 = vsel %vm239, %v2674, 0.0
  %v2719 = vsel %vm239, %v2675, 0.0
  %v2720 = vadd.f32 %v2718, %v2719
  %v2721 = vrot.slane %v2720, 4
  %v2722 = vadd.f32 %v2720, %v2721
  %v2723 = vrot.slane %v2722, 2
  %v2724 = vadd.f32 %v2722, %v2723
  %v2725 = vrot.slane %v2724, 1
  %v2726 = vadd.f32 %v2724, %v2725
  %v2727 = vsel %vm239, %v2676, 0.0
  %v2728 = vsel %vm239, %v2677, 0.0
  %v2729 = vadd.f32 %v2727, %v2728
  %v2730 = vrot.slane %v2729, 4
  %v2731 = vadd.f32 %v2729, %v2730
  %v2732 = vrot.slane %v2731, 2
  %v2733 = vadd.f32 %v2731, %v2732
  %v2734 = vrot.slane %v2733, 1
  %v2735 = vadd.f32 %v2733, %v2734
  %v2736 = vsel %vm239, %v2678, 0.0
  %v2737 = vsel %vm239, %v2679, 0.0
  %v2738 = vadd.f32 %v2736, %v2737
  %v2739 = vrot.slane %v2738, 4
  %v2740 = vadd.f32 %v2738, %v2739
  %v2741 = vrot.slane %v2740, 2
  %v2742 = vadd.f32 %v2740, %v2741
  %v2743 = vrot.slane %v2742, 1
  %v2744 = vadd.f32 %v2742, %v2743
  %v2745 = vsel %vm239, %v2680, 0.0
  %v2746 = vsel %vm239, %v2681, 0.0
  %v2747 = vadd.f32 %v2745, %v2746
  %v2748 = vrot.slane %v2747, 4
  %v2749 = vadd.f32 %v2747, %v2748
  %v2750 = vrot.slane %v2749, 2
  %v2751 = vadd.f32 %v2749, %v2750
  %v2752 = vrot.slane %v2751, 1
  %v2753 = vadd.f32 %v2751, %v2752
  %s2754 = scalar_lea.vmem %s0, 24
  %v2755 = vld [vmem:[%s2754] sm:$0xff]
  %v2756 = vadd.f32 %v2755, %v2280
  %v2757 = vxor.u32 %v2756, 2147483648
  %v2758 = vmul.f32 %v2757, 1.442695
  %v2759 = vpow.pop %v2758
  %v2760 = vadd.f32 %v2759, 1.0
  %v2761 = vrcp.pop %v2760
  %v2762 = vmul.f32 1.0, %v2761
  %v2763 = vtanh.pop %v2756
  %v2772 = vsel %vm695, %v2699, %v2690
  %v2773 = vsel %vm697, %v2708, %v2772
  %v2774 = vsel %vm699, %v2717, %v2773
  %v2775 = vsel %vm701, %v2726, %v2774
  %v2776 = vsel %vm703, %v2735, %v2775
  %v2777 = vsel %vm705, %v2744, %v2776
  %v2778 = vsel %vm707, %v2753, %v2777
  %v2780 = vmul.f32 %v2762, %v2778
  %2782 = vrot.lane.b32.xlu0 %v2763, 64
  %v2783 = vpop.permute.xlu0 %2782
  %v2785 = vmul.f32 %v2762, %v2783
  %2787 = vrot.lane.b32.xlu0 %v2785, 96
  %v2788 = vpop.permute.xlu0 %2787
  %v2790 = vadd.f32 %v2780, %v2788
  %v2791 = vtanh.pop %v2790
  %2793 = vrot.lane.b32.xlu0 %v2791, 64
  %v2794 = vpop.permute.xlu0 %2793
  %v2796 = vmul.f32 %v2762, %v2794
  %2798 = vrot.lane.b32.xlu0 %v2796, 64
  %v2799 = vpop.permute.xlu0 %2798
  %s2801 = scalar_lea.vmem [#allocation4], 24
  %2802 = vst.msk [vmem:[%s2801] sm:$0xff] %vm239, %v2799
  %s2803 = scalar_lea.vmem [#allocation5], 24
  %2804 = vst.msk [vmem:[%s2803] sm:$0xff] %vm711, %v2561
  %v2805 = vld [vmem:[%s3 + $0x80] sm:$0xff]
  %v2806 = vld [vmem:[%s3 + $0x88] sm:$0xff]
  %v2807 = vld [vmem:[%s3 + $0x90] sm:$0xff]
  %v2808 = vld [vmem:[%s3 + $0x98] sm:$0xff]
  %v2809 = vld [vmem:[%s3 + $0xa0] sm:$0xff]
  %v2810 = vld [vmem:[%s3 + $0xa8] sm:$0xff]
  %v2811 = vld [vmem:[%s3 + $0xb0] sm:$0xff]
  %v2812 = vld [vmem:[%s3 + $0xb8] sm:$0xff]
  %v2813 = vld [vmem:[%s348] ss:$8 sm:$0x3]
  %v2815 = vlaneseq
  %v2816 = vshrl.u32 %v2815, 7
  %v2817 = vsub.s32 0, %v2816
  %v2818 = vrot.slane %v2813, %v2817
  %v2819 = vlaneseq
  %v2820 = vshrl.u32 %v2819, 7
  %v2821 = vsub.s32 1, %v2820
  %v2822 = vrot.slane %v2813, %v2821
  %v2825 = vsel %vm239, %v2799, 0
  %2827 = vmatprep.subr.mxu0 %v2806
  %2828 = vmatpush1.msra.mxu0 %v2805
  %2829 = vmatprep.subr.mxu0 %v2808
  %2830 = vmatpush1.msra.mxu0 %v2807
  %2831 = vmatprep.subr.mxu0 %v2810
  %2832 = vmatpush1.msra.mxu0 %v2809
  %2833 = vmatprep.subr.mxu0 %v2812
  %2834 = vmatpush1.msra.mxu0 %v2811
  %2835 = vmatprep.subr.mxu0 0.0
  %2836 = vmatpush1.msra.mxu0 0.0
  %2837 = vmatprep.subr.mxu0 0.0
  %2838 = vmatpush1.msra.mxu0 0.0
  %2839 = vmatprep.subr.mxu0 0.0
  %2840 = vmatpush1.msra.mxu0 0.0
  %2841 = vmatprep.subr.mxu0 0.0
  %2842 = vmatpush1.msra.mxu0 0.0
  %2843 = vmatprep.subr.mxu0 0.0
  %2844 = vmatpush1.msra.mxu0 0.0
  %2845 = vmatprep.subr.mxu0 0.0
  %2846 = vmatpush1.msra.mxu0 0.0
  %2847 = vmatprep.subr.mxu0 0.0
  %2848 = vmatpush1.msra.mxu0 0.0
  %2849 = vmatprep.subr.mxu0 0.0
  %2850 = vmatpush1.msra.mxu0 0.0
  %2851 = vmatprep.subr.mxu0 0.0
  %2852 = vmatpush1.msra.mxu0 0.0
  %2853 = vmatprep.subr.mxu0 0.0
  %2854 = vmatpush1.msra.mxu0 0.0
  %2855 = vmatprep.subr.mxu0 0.0
  %2856 = vmatpush1.msra.mxu0 0.0
  %2857 = vmatprep.subr.mxu0 0.0
  %2858 = vmatpush1.msra.mxu0 0.0
  %2859 = vmatprep.subr.mxu0 0.0
  %2860 = vmatpush1.msra.mxu0 0.0
  %2861 = vmatprep.subr.mxu0 0.0
  %2862 = vmatpush1.msra.mxu0 0.0
  %2863 = vmatprep.subr.mxu0 0.0
  %2864 = vmatpush1.msra.mxu0 0.0
  %2865 = vmatprep.subr.mxu0 0.0
  %2866 = vmatpush1.msra.mxu0 0.0
  %2867 = vmatprep.subr.mxu0 0.0
  %2868 = vmatpush1.msra.mxu0 0.0
  %2869 = vmatprep.subr.mxu0 0.0
  %2870 = vmatpush1.msra.mxu0 0.0
  %2871 = vmatprep.subr.mxu0 0.0
  %2872 = vmatpush1.msra.mxu0 0.0
  %2873 = vmatprep.subr.mxu0 0.0
  %2874 = vmatpush1.msra.mxu0 0.0
  %2875 = vmatprep.subr.mxu0 0.0
  %2876 = vmatpush1.msra.mxu0 0.0
  %2877 = vmatprep.subr.mxu0 0.0
  %2878 = vmatpush1.msra.mxu0 0.0
  %2879 = vmatprep.subr.mxu0 0.0
  %2880 = vmatpush1.msra.mxu0 0.0
  %2881 = vmatprep.subr.mxu0 0.0
  %2882 = vmatpush1.msra.mxu0 0.0
  %2883 = vmatprep.subr.mxu0 0.0
  %2884 = vmatpush1.msra.mxu0 0.0
  %2885 = vmatprep.subr.mxu0 0.0
  %2886 = vmatpush1.msra.mxu0 0.0
  %2887 = vmatprep.subr.mxu0 0.0
  %2888 = vmatpush1.msra.mxu0 0.0
  %2889 = vmatprep.subr.mxu0 0.0
  %2890 = vmatpush1.msra.mxu0 0.0
  %2891 = vmatprep.mubr.f32.mxu0 0.0
  %2892 = vmatmul.mubr.f32.gmra.mrb[0].mxu0 %v2825
  %v2893 = vpop.f32.mrb[0].mxu0
  %v2894 = vadd.f32 %v2818, %v2893
  %v2895 = vpop.f32.mrb[0].mxu0
  %v2896 = vadd.f32 %v2822, %v2895
  %2897 = vdwg.mxu0
  %v2899 = vcombine.high %v2896, %v2896
  %v2901 = vunpack.c.l.s4 1966171168
  %v2902 = vunpack.c.0.s8 %v2901
  %v2903 = vlaneseq
  %v2904 = vshrl.u32 %v2903, 7
  %v2905 = vsub.s32 %v2902, %v2904
  %v2906 = vrot.slane %v2896, %v2905
  %v2908 = vunpack.c.l.s4 1966171168
  %v2909 = vunpack.c.0.s8 %v2908
  %v2910 = vlaneseq
  %v2911 = vshrl.u32 %v2910, 7
  %v2912 = vsub.s32 %v2909, %v2911
  %v2913 = vrot.slane %v2899, %v2912
  %v2914 = vcombine.high %v2906, %v2906
  %v2915 = vcombine.high %v2913, %v2913
  %v2917 = vunpack.c.l.s4 1966171168
  %v2918 = vunpack.c.0.s8 %v2917
  %v2919 = vlaneseq
  %v2920 = vshrl.u32 %v2919, 7
  %v2921 = vsub.s32 %v2918, %v2920
  %v2922 = vrot.slane %v2906, %v2921
  %v2924 = vunpack.c.l.s4 1966171168
  %v2925 = vunpack.c.0.s8 %v2924
  %v2926 = vlaneseq
  %v2927 = vshrl.u32 %v2926, 7
  %v2928 = vsub.s32 %v2925, %v2927
  %v2929 = vrot.slane %v2913, %v2928
  %v2931 = vunpack.c.l.s4 1966171168
  %v2932 = vunpack.c.0.s8 %v2931
  %v2933 = vlaneseq
  %v2934 = vshrl.u32 %v2933, 7
  %v2935 = vsub.s32 %v2932, %v2934
  %v2936 = vrot.slane %v2914, %v2935
  %v2938 = vunpack.c.l.s4 1966171168
  %v2939 = vunpack.c.0.s8 %v2938
  %v2940 = vlaneseq
  %v2941 = vshrl.u32 %v2940, 7
  %v2942 = vsub.s32 %v2939, %v2941
  %v2943 = vrot.slane %v2915, %v2942
  %v2944 = vcombine.high %v2922, %v2922
  %v2945 = vcombine.high %v2929, %v2929
  %v2946 = vcombine.high %v2936, %v2936
  %v2947 = vcombine.high %v2943, %v2943
  %v2948 = vld [vmem:[#allocation2] sm:$0xff]
  %v2949 = vld [vmem:[#allocation2 + $0x8] sm:$0xff]
  %v2950 = vld [vmem:[#allocation2 + $0x10] sm:$0xff]
  %v2951 = vld [vmem:[#allocation2 + $0x18] sm:$0xff]
  %v2952 = vld [vmem:[#allocation2 + $0x20] sm:$0xff]
  %v2953 = vld [vmem:[#allocation2 + $0x28] sm:$0xff]
  %v2954 = vld [vmem:[#allocation2 + $0x30] sm:$0xff]
  %v2955 = vld [vmem:[#allocation2 + $0x38] sm:$0xff]
  %v2956 = vld [vmem:[#allocation2 + $0x40] sm:$0xff]
  %v2957 = vld [vmem:[#allocation2 + $0x48] sm:$0xff]
  %v2958 = vld [vmem:[#allocation2 + $0x50] sm:$0xff]
  %v2959 = vld [vmem:[#allocation2 + $0x58] sm:$0xff]
  %v2960 = vld [vmem:[#allocation2 + $0x60] sm:$0xff]
  %v2961 = vld [vmem:[#allocation2 + $0x68] sm:$0xff]
  %v2962 = vld [vmem:[#allocation2 + $0x70] sm:$0xff]
  %v2963 = vld [vmem:[#allocation2 + $0x78] sm:$0xff]
  %v2964 = vlaneseq
  %v2965 = vshrl.u32 %v2964, 7
  %v2966 = vsub.s32 0, %v2965
  %v2967 = vrot.slane %v2922, %v2966
  %v2968 = vlaneseq
  %v2969 = vshrl.u32 %v2968, 7
  %v2970 = vsub.s32 0, %v2969
  %v2971 = vrot.slane %v2936, %v2970
  %v2972 = vlaneseq
  %v2973 = vshrl.u32 %v2972, 7
  %v2974 = vsub.s32 0, %v2973
  %v2975 = vrot.slane %v2944, %v2974
  %v2976 = vlaneseq
  %v2977 = vshrl.u32 %v2976, 7
  %v2978 = vsub.s32 0, %v2977
  %v2979 = vrot.slane %v2946, %v2978
  %v2980 = vlaneseq
  %v2981 = vshrl.u32 %v2980, 7
  %v2982 = vsub.s32 0, %v2981
  %v2983 = vrot.slane %v2929, %v2982
  %v2984 = vlaneseq
  %v2985 = vshrl.u32 %v2984, 7
  %v2986 = vsub.s32 0, %v2985
  %v2987 = vrot.slane %v2943, %v2986
  %v2988 = vlaneseq
  %v2989 = vshrl.u32 %v2988, 7
  %v2990 = vsub.s32 0, %v2989
  %v2991 = vrot.slane %v2945, %v2990
  %v2992 = vlaneseq
  %v2993 = vshrl.u32 %v2992, 7
  %v2994 = vsub.s32 0, %v2993
  %v2995 = vrot.slane %v2947, %v2994
  %v3004 = vmul.f32 %v2967, %v2948
  %v3005 = vmul.f32 %v2967, %v2949
  %v3006 = vmul.f32 %v2971, %v2950
  %v3007 = vmul.f32 %v2971, %v2951
  %v3008 = vmul.f32 %v2975, %v2952
  %v3009 = vmul.f32 %v2975, %v2953
  %v3010 = vmul.f32 %v2979, %v2954
  %v3011 = vmul.f32 %v2979, %v2955
  %v3012 = vmul.f32 %v2983, %v2956
  %v3013 = vmul.f32 %v2983, %v2957
  %v3014 = vmul.f32 %v2987, %v2958
  %v3015 = vmul.f32 %v2987, %v2959
  %v3016 = vmul.f32 %v2991, %v2960
  %v3017 = vmul.f32 %v2991, %v2961
  %v3018 = vmul.f32 %v2995, %v2962
  %v3019 = vmul.f32 %v2995, %v2963
  %v3020 = vsel %vm239, %v3004, 0.0
  %3021 = vadd.xlane.f32.xlu0 %v3020
  %v3022 = vpop.xlane.xlu0 %3021
  %v3023 = vsel %vm239, %v3005, 0.0
  %3024 = vadd.xlane.f32.xlu0 %v3023
  %v3025 = vpop.xlane.xlu0 %3024
  %v3026 = vsel %vm239, %v3006, 0.0
  %3027 = vadd.xlane.f32.xlu0 %v3026
  %v3028 = vpop.xlane.xlu0 %3027
  %v3029 = vsel %vm239, %v3007, 0.0
  %3030 = vadd.xlane.f32.xlu0 %v3029
  %v3031 = vpop.xlane.xlu0 %3030
  %v3032 = vsel %vm239, %v3008, 0.0
  %3033 = vadd.xlane.f32.xlu0 %v3032
  %v3034 = vpop.xlane.xlu0 %3033
  %v3035 = vsel %vm239, %v3009, 0.0
  %3036 = vadd.xlane.f32.xlu0 %v3035
  %v3037 = vpop.xlane.xlu0 %3036
  %v3038 = vsel %vm239, %v3010, 0.0
  %3039 = vadd.xlane.f32.xlu0 %v3038
  %v3040 = vpop.xlane.xlu0 %3039
  %v3041 = vsel %vm239, %v3011, 0.0
  %3042 = vadd.xlane.f32.xlu0 %v3041
  %v3043 = vpop.xlane.xlu0 %3042
  %v3044 = vsel %vm239, %v3012, 0.0
  %3045 = vadd.xlane.f32.xlu0 %v3044
  %v3046 = vpop.xlane.xlu0 %3045
  %v3047 = vsel %vm239, %v3013, 0.0
  %3048 = vadd.xlane.f32.xlu0 %v3047
  %v3049 = vpop.xlane.xlu0 %3048
  %v3050 = vsel %vm239, %v3014, 0.0
  %3051 = vadd.xlane.f32.xlu0 %v3050
  %v3052 = vpop.xlane.xlu0 %3051
  %v3053 = vsel %vm239, %v3015, 0.0
  %3054 = vadd.xlane.f32.xlu0 %v3053
  %v3055 = vpop.xlane.xlu0 %3054
  %v3056 = vsel %vm239, %v3016, 0.0
  %3057 = vadd.xlane.f32.xlu0 %v3056
  %v3058 = vpop.xlane.xlu0 %3057
  %v3059 = vsel %vm239, %v3017, 0.0
  %3060 = vadd.xlane.f32.xlu0 %v3059
  %v3061 = vpop.xlane.xlu0 %3060
  %v3062 = vsel %vm239, %v3018, 0.0
  %3063 = vadd.xlane.f32.xlu0 %v3062
  %v3064 = vpop.xlane.xlu0 %3063
  %v3065 = vsel %vm239, %v3019, 0.0
  %3066 = vadd.xlane.f32.xlu0 %v3065
  %v3067 = vpop.xlane.xlu0 %3066
  %v3084 = vlaneseq
  %v3085 = vshrl.u32 %v3084, 7
  %v3086 = vsub.s32 %v337, %v3085
  %v3087 = vrot.slane %v3022, %v3086
  %v3088 = vlaneseq
  %v3089 = vshrl.u32 %v3088, 7
  %v3090 = vsub.s32 %v625, %v3089
  %v3091 = vrot.slane %v3025, %v3090
  %v3092 = vsel %vm630, %v3091, %v3087
  %v3093 = vlaneseq
  %v3094 = vshrl.u32 %v3093, 7
  %v3095 = vsub.s32 %v337, %v3094
  %v3096 = vrot.slane %v3028, %v3095
  %v3097 = vlaneseq
  %v3098 = vshrl.u32 %v3097, 7
  %v3099 = vsub.s32 %v625, %v3098
  %v3100 = vrot.slane %v3031, %v3099
  %v3101 = vsel %vm630, %v3100, %v3096
  %v3102 = vlaneseq
  %v3103 = vshrl.u32 %v3102, 7
  %v3104 = vsub.s32 %v337, %v3103
  %v3105 = vrot.slane %v3034, %v3104
  %v3106 = vlaneseq
  %v3107 = vshrl.u32 %v3106, 7
  %v3108 = vsub.s32 %v625, %v3107
  %v3109 = vrot.slane %v3037, %v3108
  %v3110 = vsel %vm630, %v3109, %v3105
  %v3111 = vlaneseq
  %v3112 = vshrl.u32 %v3111, 7
  %v3113 = vsub.s32 %v337, %v3112
  %v3114 = vrot.slane %v3040, %v3113
  %v3115 = vlaneseq
  %v3116 = vshrl.u32 %v3115, 7
  %v3117 = vsub.s32 %v625, %v3116
  %v3118 = vrot.slane %v3043, %v3117
  %v3119 = vsel %vm630, %v3118, %v3114
  %v3120 = vlaneseq
  %v3121 = vshrl.u32 %v3120, 7
  %v3122 = vsub.s32 %v337, %v3121
  %v3123 = vrot.slane %v3046, %v3122
  %v3124 = vlaneseq
  %v3125 = vshrl.u32 %v3124, 7
  %v3126 = vsub.s32 %v625, %v3125
  %v3127 = vrot.slane %v3049, %v3126
  %v3128 = vsel %vm630, %v3127, %v3123
  %v3129 = vlaneseq
  %v3130 = vshrl.u32 %v3129, 7
  %v3131 = vsub.s32 %v337, %v3130
  %v3132 = vrot.slane %v3052, %v3131
  %v3133 = vlaneseq
  %v3134 = vshrl.u32 %v3133, 7
  %v3135 = vsub.s32 %v625, %v3134
  %v3136 = vrot.slane %v3055, %v3135
  %v3137 = vsel %vm630, %v3136, %v3132
  %v3138 = vlaneseq
  %v3139 = vshrl.u32 %v3138, 7
  %v3140 = vsub.s32 %v337, %v3139
  %v3141 = vrot.slane %v3058, %v3140
  %v3142 = vlaneseq
  %v3143 = vshrl.u32 %v3142, 7
  %v3144 = vsub.s32 %v625, %v3143
  %v3145 = vrot.slane %v3061, %v3144
  %v3146 = vsel %vm630, %v3145, %v3141
  %v3147 = vlaneseq
  %v3148 = vshrl.u32 %v3147, 7
  %v3149 = vsub.s32 %v337, %v3148
  %v3150 = vrot.slane %v3064, %v3149
  %v3151 = vlaneseq
  %v3152 = vshrl.u32 %v3151, 7
  %v3153 = vsub.s32 %v625, %v3152
  %v3154 = vrot.slane %v3067, %v3153
  %v3155 = vsel %vm630, %v3154, %v3150
  %v3156 = vsel %vm695, %v3101, %v3092
  %v3157 = vsel %vm697, %v3110, %v3156
  %v3158 = vsel %vm699, %v3119, %v3157
  %v3159 = vsel %vm701, %v3128, %v3158
  %v3160 = vsel %vm703, %v3137, %v3159
  %v3161 = vsel %vm705, %v3146, %v3160
  %v3162 = vsel %vm707, %v3155, %v3161
  %v3164 = vsel %vm338, %v3162, -1e+30
  %v3165 = vsel %vm711, %v3164, -inf
  %3166 = vmax.xlane.f32.xlu0 %v3165
  %v3167 = vpop.xlane.xlu0 %3166
  %v3168 = vsub.f32 %v3164, %v3167
  %v3169 = vmul.f32 %v3168, 1.442695
  %v3170 = vpow.pop %v3169
  %v3171 = vsel %vm711, %v3170, 0.0
  %3172 = vadd.xlane.f32.xlu0 %v3171
  %v3173 = vpop.xlane.xlu0 %3172
  %v3174 = vrcp.pop %v3173
  %v3175 = vmul.f32 %v3170, %v3174
  %v3176 = vlaneseq
  %v3177 = vshrl.u32 %v3176, 7
  %v3178 = vsub.s32 0, %v3177
  %v3179 = vrot.slane %v3175, %v3178
  %3181 = vbcast.lane.b32.xlu0 %v3179, 256
  %v3182 = vpop.permute.xlu0 %3181
  %s3184 = sor.u32 256, 8
  %3185 = vbcast.lane.b32.xlu0 %v3179, %s3184
  %v3186 = vpop.permute.xlu0 %3185
  %v3187 = vlaneseq
  %v3188 = vshrl.u32 %v3187, 7
  %v3189 = vsub.s32 1, %v3188
  %v3190 = vrot.slane %v3175, %v3189
  %3192 = vbcast.lane.b32.xlu0 %v3190, 256
  %v3193 = vpop.permute.xlu0 %3192
  %s3195 = sor.u32 256, 8
  %3196 = vbcast.lane.b32.xlu0 %v3190, %s3195
  %v3197 = vpop.permute.xlu0 %3196
  %v3198 = vlaneseq
  %v3199 = vshrl.u32 %v3198, 7
  %v3200 = vsub.s32 2, %v3199
  %v3201 = vrot.slane %v3175, %v3200
  %3203 = vbcast.lane.b32.xlu0 %v3201, 256
  %v3204 = vpop.permute.xlu0 %3203
  %s3206 = sor.u32 256, 8
  %3207 = vbcast.lane.b32.xlu0 %v3201, %s3206
  %v3208 = vpop.permute.xlu0 %3207
  %v3209 = vlaneseq
  %v3210 = vshrl.u32 %v3209, 7
  %v3211 = vsub.s32 3, %v3210
  %v3212 = vrot.slane %v3175, %v3211
  %3214 = vbcast.lane.b32.xlu0 %v3212, 256
  %v3215 = vpop.permute.xlu0 %3214
  %s3217 = sor.u32 256, 8
  %3218 = vbcast.lane.b32.xlu0 %v3212, %s3217
  %v3219 = vpop.permute.xlu0 %3218
  %v3220 = vlaneseq
  %v3221 = vshrl.u32 %v3220, 7
  %v3222 = vsub.s32 4, %v3221
  %v3223 = vrot.slane %v3175, %v3222
  %3225 = vbcast.lane.b32.xlu0 %v3223, 256
  %v3226 = vpop.permute.xlu0 %3225
  %s3228 = sor.u32 256, 8
  %3229 = vbcast.lane.b32.xlu0 %v3223, %s3228
  %v3230 = vpop.permute.xlu0 %3229
  %v3231 = vlaneseq
  %v3232 = vshrl.u32 %v3231, 7
  %v3233 = vsub.s32 5, %v3232
  %v3234 = vrot.slane %v3175, %v3233
  %3236 = vbcast.lane.b32.xlu0 %v3234, 256
  %v3237 = vpop.permute.xlu0 %3236
  %s3239 = sor.u32 256, 8
  %3240 = vbcast.lane.b32.xlu0 %v3234, %s3239
  %v3241 = vpop.permute.xlu0 %3240
  %v3242 = vlaneseq
  %v3243 = vshrl.u32 %v3242, 7
  %v3244 = vsub.s32 6, %v3243
  %v3245 = vrot.slane %v3175, %v3244
  %3247 = vbcast.lane.b32.xlu0 %v3245, 256
  %v3248 = vpop.permute.xlu0 %3247
  %s3250 = sor.u32 256, 8
  %3251 = vbcast.lane.b32.xlu0 %v3245, %s3250
  %v3252 = vpop.permute.xlu0 %3251
  %v3253 = vlaneseq
  %v3254 = vshrl.u32 %v3253, 7
  %v3255 = vsub.s32 7, %v3254
  %v3256 = vrot.slane %v3175, %v3255
  %3258 = vbcast.lane.b32.xlu0 %v3256, 256
  %v3259 = vpop.permute.xlu0 %3258
  %s3261 = sor.u32 256, 8
  %3262 = vbcast.lane.b32.xlu0 %v3256, %s3261
  %v3263 = vpop.permute.xlu0 %3262
  %v3264 = vld [vmem:[#allocation3] sm:$0xff]
  %v3265 = vld [vmem:[#allocation3 + $0x8] sm:$0xff]
  %v3266 = vld [vmem:[#allocation3 + $0x10] sm:$0xff]
  %v3267 = vld [vmem:[#allocation3 + $0x18] sm:$0xff]
  %v3268 = vld [vmem:[#allocation3 + $0x20] sm:$0xff]
  %v3269 = vld [vmem:[#allocation3 + $0x28] sm:$0xff]
  %v3270 = vld [vmem:[#allocation3 + $0x30] sm:$0xff]
  %v3271 = vld [vmem:[#allocation3 + $0x38] sm:$0xff]
  %v3272 = vld [vmem:[#allocation3 + $0x40] sm:$0xff]
  %v3273 = vld [vmem:[#allocation3 + $0x48] sm:$0xff]
  %v3274 = vld [vmem:[#allocation3 + $0x50] sm:$0xff]
  %v3275 = vld [vmem:[#allocation3 + $0x58] sm:$0xff]
  %v3276 = vld [vmem:[#allocation3 + $0x60] sm:$0xff]
  %v3277 = vld [vmem:[#allocation3 + $0x68] sm:$0xff]
  %v3278 = vld [vmem:[#allocation3 + $0x70] sm:$0xff]
  %v3279 = vld [vmem:[#allocation3 + $0x78] sm:$0xff]
  %v3280 = vmul.f32 %v3182, %v3264
  %v3281 = vmul.f32 %v3186, %v3265
  %v3282 = vmul.f32 %v3193, %v3266
  %v3283 = vmul.f32 %v3197, %v3267
  %v3284 = vmul.f32 %v3204, %v3268
  %v3285 = vmul.f32 %v3208, %v3269
  %v3286 = vmul.f32 %v3215, %v3270
  %v3287 = vmul.f32 %v3219, %v3271
  %v3288 = vmul.f32 %v3226, %v3272
  %v3289 = vmul.f32 %v3230, %v3273
  %v3290 = vmul.f32 %v3237, %v3274
  %v3291 = vmul.f32 %v3241, %v3275
  %v3292 = vmul.f32 %v3248, %v3276
  %v3293 = vmul.f32 %v3252, %v3277
  %v3294 = vmul.f32 %v3259, %v3278
  %v3295 = vmul.f32 %v3263, %v3279
  %v3296 = vsel %vm239, %v3280, 0.0
  %v3297 = vsel %vm239, %v3281, 0.0
  %v3298 = vadd.f32 %v3296, %v3297
  %v3299 = vrot.slane %v3298, 4
  %v3300 = vadd.f32 %v3298, %v3299
  %v3301 = vrot.slane %v3300, 2
  %v3302 = vadd.f32 %v3300, %v3301
  %v3303 = vrot.slane %v3302, 1
  %v3304 = vadd.f32 %v3302, %v3303
  %v3305 = vsel %vm239, %v3282, 0.0
  %v3306 = vsel %vm239, %v3283, 0.0
  %v3307 = vadd.f32 %v3305, %v3306
  %v3308 = vrot.slane %v3307, 4
  %v3309 = vadd.f32 %v3307, %v3308
  %v3310 = vrot.slane %v3309, 2
  %v3311 = vadd.f32 %v3309, %v3310
  %v3312 = vrot.slane %v3311, 1
  %v3313 = vadd.f32 %v3311, %v3312
  %v3314 = vsel %vm239, %v3284, 0.0
  %v3315 = vsel %vm239, %v3285, 0.0
  %v3316 = vadd.f32 %v3314, %v3315
  %v3317 = vrot.slane %v3316, 4
  %v3318 = vadd.f32 %v3316, %v3317
  %v3319 = vrot.slane %v3318, 2
  %v3320 = vadd.f32 %v3318, %v3319
  %v3321 = vrot.slane %v3320, 1
  %v3322 = vadd.f32 %v3320, %v3321
  %v3323 = vsel %vm239, %v3286, 0.0
  %v3324 = vsel %vm239, %v3287, 0.0
  %v3325 = vadd.f32 %v3323, %v3324
  %v3326 = vrot.slane %v3325, 4
  %v3327 = vadd.f32 %v3325, %v3326
  %v3328 = vrot.slane %v3327, 2
  %v3329 = vadd.f32 %v3327, %v3328
  %v3330 = vrot.slane %v3329, 1
  %v3331 = vadd.f32 %v3329, %v3330
  %v3332 = vsel %vm239, %v3288, 0.0
  %v3333 = vsel %vm239, %v3289, 0.0
  %v3334 = vadd.f32 %v3332, %v3333
  %v3335 = vrot.slane %v3334, 4
  %v3336 = vadd.f32 %v3334, %v3335
  %v3337 = vrot.slane %v3336, 2
  %v3338 = vadd.f32 %v3336, %v3337
  %v3339 = vrot.slane %v3338, 1
  %v3340 = vadd.f32 %v3338, %v3339
  %v3341 = vsel %vm239, %v3290, 0.0
  %v3342 = vsel %vm239, %v3291, 0.0
  %v3343 = vadd.f32 %v3341, %v3342
  %v3344 = vrot.slane %v3343, 4
  %v3345 = vadd.f32 %v3343, %v3344
  %v3346 = vrot.slane %v3345, 2
  %v3347 = vadd.f32 %v3345, %v3346
  %v3348 = vrot.slane %v3347, 1
  %v3349 = vadd.f32 %v3347, %v3348
  %v3350 = vsel %vm239, %v3292, 0.0
  %v3351 = vsel %vm239, %v3293, 0.0
  %v3352 = vadd.f32 %v3350, %v3351
  %v3353 = vrot.slane %v3352, 4
  %v3354 = vadd.f32 %v3352, %v3353
  %v3355 = vrot.slane %v3354, 2
  %v3356 = vadd.f32 %v3354, %v3355
  %v3357 = vrot.slane %v3356, 1
  %v3358 = vadd.f32 %v3356, %v3357
  %v3359 = vsel %vm239, %v3294, 0.0
  %v3360 = vsel %vm239, %v3295, 0.0
  %v3361 = vadd.f32 %v3359, %v3360
  %v3362 = vrot.slane %v3361, 4
  %v3363 = vadd.f32 %v3361, %v3362
  %v3364 = vrot.slane %v3363, 2
  %v3365 = vadd.f32 %v3363, %v3364
  %v3366 = vrot.slane %v3365, 1
  %v3367 = vadd.f32 %v3365, %v3366
  %s3368 = scalar_lea.vmem %s0, 32
  %v3369 = vld [vmem:[%s3368] sm:$0xff]
  %v3370 = vadd.f32 %v3369, %v2894
  %v3371 = vxor.u32 %v3370, 2147483648
  %v3372 = vmul.f32 %v3371, 1.442695
  %v3373 = vpow.pop %v3372
  %v3374 = vadd.f32 %v3373, 1.0
  %v3375 = vrcp.pop %v3374
  %v3376 = vmul.f32 1.0, %v3375
  %v3377 = vtanh.pop %v3370
  %v3386 = vsel %vm695, %v3313, %v3304
  %v3387 = vsel %vm697, %v3322, %v3386
  %v3388 = vsel %vm699, %v3331, %v3387
  %v3389 = vsel %vm701, %v3340, %v3388
  %v3390 = vsel %vm703, %v3349, %v3389
  %v3391 = vsel %vm705, %v3358, %v3390
  %v3392 = vsel %vm707, %v3367, %v3391
  %v3394 = vmul.f32 %v3376, %v3392
  %3396 = vrot.lane.b32.xlu0 %v3377, 64
  %v3397 = vpop.permute.xlu0 %3396
  %v3399 = vmul.f32 %v3376, %v3397
  %3401 = vrot.lane.b32.xlu0 %v3399, 96
  %v3402 = vpop.permute.xlu0 %3401
  %v3404 = vadd.f32 %v3394, %v3402
  %v3405 = vtanh.pop %v3404
  %3407 = vrot.lane.b32.xlu0 %v3405, 64
  %v3408 = vpop.permute.xlu0 %3407
  %v3410 = vmul.f32 %v3376, %v3408
  %3412 = vrot.lane.b32.xlu0 %v3410, 64
  %v3413 = vpop.permute.xlu0 %3412
  %s3415 = scalar_lea.vmem [#allocation4], 32
  %3416 = vst.msk [vmem:[%s3415] sm:$0xff] %vm239, %v3413
  %s3417 = scalar_lea.vmem [#allocation5], 32
  %3418 = vst.msk [vmem:[%s3417] sm:$0xff] %vm711, %v3175
  %v3419 = vld [vmem:[%s3 + $0x80] sm:$0xff]
  %v3420 = vld [vmem:[%s3 + $0x88] sm:$0xff]
  %v3421 = vld [vmem:[%s3 + $0x90] sm:$0xff]
  %v3422 = vld [vmem:[%s3 + $0x98] sm:$0xff]
  %v3423 = vld [vmem:[%s3 + $0xa0] sm:$0xff]
  %v3424 = vld [vmem:[%s3 + $0xa8] sm:$0xff]
  %v3425 = vld [vmem:[%s3 + $0xb0] sm:$0xff]
  %v3426 = vld [vmem:[%s3 + $0xb8] sm:$0xff]
  %v3427 = vld [vmem:[%s348] ss:$8 sm:$0x3]
  %v3429 = vlaneseq
  %v3430 = vshrl.u32 %v3429, 7
  %v3431 = vsub.s32 0, %v3430
  %v3432 = vrot.slane %v3427, %v3431
  %v3433 = vlaneseq
  %v3434 = vshrl.u32 %v3433, 7
  %v3435 = vsub.s32 1, %v3434
  %v3436 = vrot.slane %v3427, %v3435
  %v3439 = vsel %vm239, %v3413, 0
  %3441 = vmatprep.subr.mxu0 %v3420
  %3442 = vmatpush1.msra.mxu0 %v3419
  %3443 = vmatprep.subr.mxu0 %v3422
  %3444 = vmatpush1.msra.mxu0 %v3421
  %3445 = vmatprep.subr.mxu0 %v3424
  %3446 = vmatpush1.msra.mxu0 %v3423
  %3447 = vmatprep.subr.mxu0 %v3426
  %3448 = vmatpush1.msra.mxu0 %v3425
  %3449 = vmatprep.subr.mxu0 0.0
  %3450 = vmatpush1.msra.mxu0 0.0
  %3451 = vmatprep.subr.mxu0 0.0
  %3452 = vmatpush1.msra.mxu0 0.0
  %3453 = vmatprep.subr.mxu0 0.0
  %3454 = vmatpush1.msra.mxu0 0.0
  %3455 = vmatprep.subr.mxu0 0.0
  %3456 = vmatpush1.msra.mxu0 0.0
  %3457 = vmatprep.subr.mxu0 0.0
  %3458 = vmatpush1.msra.mxu0 0.0
  %3459 = vmatprep.subr.mxu0 0.0
  %3460 = vmatpush1.msra.mxu0 0.0
  %3461 = vmatprep.subr.mxu0 0.0
  %3462 = vmatpush1.msra.mxu0 0.0
  %3463 = vmatprep.subr.mxu0 0.0
  %3464 = vmatpush1.msra.mxu0 0.0
  %3465 = vmatprep.subr.mxu0 0.0
  %3466 = vmatpush1.msra.mxu0 0.0
  %3467 = vmatprep.subr.mxu0 0.0
  %3468 = vmatpush1.msra.mxu0 0.0
  %3469 = vmatprep.subr.mxu0 0.0
  %3470 = vmatpush1.msra.mxu0 0.0
  %3471 = vmatprep.subr.mxu0 0.0
  %3472 = vmatpush1.msra.mxu0 0.0
  %3473 = vmatprep.subr.mxu0 0.0
  %3474 = vmatpush1.msra.mxu0 0.0
  %3475 = vmatprep.subr.mxu0 0.0
  %3476 = vmatpush1.msra.mxu0 0.0
  %3477 = vmatprep.subr.mxu0 0.0
  %3478 = vmatpush1.msra.mxu0 0.0
  %3479 = vmatprep.subr.mxu0 0.0
  %3480 = vmatpush1.msra.mxu0 0.0
  %3481 = vmatprep.subr.mxu0 0.0
  %3482 = vmatpush1.msra.mxu0 0.0
  %3483 = vmatprep.subr.mxu0 0.0
  %3484 = vmatpush1.msra.mxu0 0.0
  %3485 = vmatprep.subr.mxu0 0.0
  %3486 = vmatpush1.msra.mxu0 0.0
  %3487 = vmatprep.subr.mxu0 0.0
  %3488 = vmatpush1.msra.mxu0 0.0
  %3489 = vmatprep.subr.mxu0 0.0
  %3490 = vmatpush1.msra.mxu0 0.0
  %3491 = vmatprep.subr.mxu0 0.0
  %3492 = vmatpush1.msra.mxu0 0.0
  %3493 = vmatprep.subr.mxu0 0.0
  %3494 = vmatpush1.msra.mxu0 0.0
  %3495 = vmatprep.subr.mxu0 0.0
  %3496 = vmatpush1.msra.mxu0 0.0
  %3497 = vmatprep.subr.mxu0 0.0
  %3498 = vmatpush1.msra.mxu0 0.0
  %3499 = vmatprep.subr.mxu0 0.0
  %3500 = vmatpush1.msra.mxu0 0.0
  %3501 = vmatprep.subr.mxu0 0.0
  %3502 = vmatpush1.msra.mxu0 0.0
  %3503 = vmatprep.subr.mxu0 0.0
  %3504 = vmatpush1.msra.mxu0 0.0
  %3505 = vmatprep.mubr.f32.mxu0 0.0
  %3506 = vmatmul.mubr.f32.gmra.mrb[0].mxu0 %v3439
  %v3507 = vpop.f32.mrb[0].mxu0
  %v3508 = vadd.f32 %v3432, %v3507
  %v3509 = vpop.f32.mrb[0].mxu0
  %v3510 = vadd.f32 %v3436, %v3509
  %3511 = vdwg.mxu0
  %v3513 = vcombine.high %v3510, %v3510
  %v3515 = vunpack.c.l.s4 1966171168
  %v3516 = vunpack.c.0.s8 %v3515
  %v3517 = vlaneseq
  %v3518 = vshrl.u32 %v3517, 7
  %v3519 = vsub.s32 %v3516, %v3518
  %v3520 = vrot.slane %v3510, %v3519
  %v3522 = vunpack.c.l.s4 1966171168
  %v3523 = vunpack.c.0.s8 %v3522
  %v3524 = vlaneseq
  %v3525 = vshrl.u32 %v3524, 7
  %v3526 = vsub.s32 %v3523, %v3525
  %v3527 = vrot.slane %v3513, %v3526
  %v3528 = vcombine.high %v3520, %v3520
  %v3529 = vcombine.high %v3527, %v3527
  %v3531 = vunpack.c.l.s4 1966171168
  %v3532 = vunpack.c.0.s8 %v3531
  %v3533 = vlaneseq
  %v3534 = vshrl.u32 %v3533, 7
  %v3535 = vsub.s32 %v3532, %v3534
  %v3536 = vrot.slane %v3520, %v3535
  %v3538 = vunpack.c.l.s4 1966171168
  %v3539 = vunpack.c.0.s8 %v3538
  %v3540 = vlaneseq
  %v3541 = vshrl.u32 %v3540, 7
  %v3542 = vsub.s32 %v3539, %v3541
  %v3543 = vrot.slane %v3527, %v3542
  %v3545 = vunpack.c.l.s4 1966171168
  %v3546 = vunpack.c.0.s8 %v3545
  %v3547 = vlaneseq
  %v3548 = vshrl.u32 %v3547, 7
  %v3549 = vsub.s32 %v3546, %v3548
  %v3550 = vrot.slane %v3528, %v3549
  %v3552 = vunpack.c.l.s4 1966171168
  %v3553 = vunpack.c.0.s8 %v3552
  %v3554 = vlaneseq
  %v3555 = vshrl.u32 %v3554, 7
  %v3556 = vsub.s32 %v3553, %v3555
  %v3557 = vrot.slane %v3529, %v3556
  %v3558 = vcombine.high %v3536, %v3536
  %v3559 = vcombine.high %v3543, %v3543
  %v3560 = vcombine.high %v3550, %v3550
  %v3561 = vcombine.high %v3557, %v3557
  %v3562 = vld [vmem:[#allocation2] sm:$0xff]
  %v3563 = vld [vmem:[#allocation2 + $0x8] sm:$0xff]
  %v3564 = vld [vmem:[#allocation2 + $0x10] sm:$0xff]
  %v3565 = vld [vmem:[#allocation2 + $0x18] sm:$0xff]
  %v3566 = vld [vmem:[#allocation2 + $0x20] sm:$0xff]
  %v3567 = vld [vmem:[#allocation2 + $0x28] sm:$0xff]
  %v3568 = vld [vmem:[#allocation2 + $0x30] sm:$0xff]
  %v3569 = vld [vmem:[#allocation2 + $0x38] sm:$0xff]
  %v3570 = vld [vmem:[#allocation2 + $0x40] sm:$0xff]
  %v3571 = vld [vmem:[#allocation2 + $0x48] sm:$0xff]
  %v3572 = vld [vmem:[#allocation2 + $0x50] sm:$0xff]
  %v3573 = vld [vmem:[#allocation2 + $0x58] sm:$0xff]
  %v3574 = vld [vmem:[#allocation2 + $0x60] sm:$0xff]
  %v3575 = vld [vmem:[#allocation2 + $0x68] sm:$0xff]
  %v3576 = vld [vmem:[#allocation2 + $0x70] sm:$0xff]
  %v3577 = vld [vmem:[#allocation2 + $0x78] sm:$0xff]
  %v3578 = vlaneseq
  %v3579 = vshrl.u32 %v3578, 7
  %v3580 = vsub.s32 0, %v3579
  %v3581 = vrot.slane %v3536, %v3580
  %v3582 = vlaneseq
  %v3583 = vshrl.u32 %v3582, 7
  %v3584 = vsub.s32 0, %v3583
  %v3585 = vrot.slane %v3550, %v3584
  %v3586 = vlaneseq
  %v3587 = vshrl.u32 %v3586, 7
  %v3588 = vsub.s32 0, %v3587
  %v3589 = vrot.slane %v3558, %v3588
  %v3590 = vlaneseq
  %v3591 = vshrl.u32 %v3590, 7
  %v3592 = vsub.s32 0, %v3591
  %v3593 = vrot.slane %v3560, %v3592
  %v3594 = vlaneseq
  %v3595 = vshrl.u32 %v3594, 7
  %v3596 = vsub.s32 0, %v3595
  %v3597 = vrot.slane %v3543, %v3596
  %v3598 = vlaneseq
  %v3599 = vshrl.u32 %v3598, 7
  %v3600 = vsub.s32 0, %v3599
  %v3601 = vrot.slane %v3557, %v3600
  %v3602 = vlaneseq
  %v3603 = vshrl.u32 %v3602, 7
  %v3604 = vsub.s32 0, %v3603
  %v3605 = vrot.slane %v3559, %v3604
  %v3606 = vlaneseq
  %v3607 = vshrl.u32 %v3606, 7
  %v3608 = vsub.s32 0, %v3607
  %v3609 = vrot.slane %v3561, %v3608
  %v3618 = vmul.f32 %v3581, %v3562
  %v3619 = vmul.f32 %v3581, %v3563
  %v3620 = vmul.f32 %v3585, %v3564
  %v3621 = vmul.f32 %v3585, %v3565
  %v3622 = vmul.f32 %v3589, %v3566
  %v3623 = vmul.f32 %v3589, %v3567
  %v3624 = vmul.f32 %v3593, %v3568
  %v3625 = vmul.f32 %v3593, %v3569
  %v3626 = vmul.f32 %v3597, %v3570
  %v3627 = vmul.f32 %v3597, %v3571
  %v3628 = vmul.f32 %v3601, %v3572
  %v3629 = vmul.f32 %v3601, %v3573
  %v3630 = vmul.f32 %v3605, %v3574
  %v3631 = vmul.f32 %v3605, %v3575
  %v3632 = vmul.f32 %v3609, %v3576
  %v3633 = vmul.f32 %v3609, %v3577
  %v3634 = vsel %vm239, %v3618, 0.0
  %3635 = vadd.xlane.f32.xlu0 %v3634
  %v3636 = vpop.xlane.xlu0 %3635
  %v3637 = vsel %vm239, %v3619, 0.0
  %3638 = vadd.xlane.f32.xlu0 %v3637
  %v3639 = vpop.xlane.xlu0 %3638
  %v3640 = vsel %vm239, %v3620, 0.0
  %3641 = vadd.xlane.f32.xlu0 %v3640
  %v3642 = vpop.xlane.xlu0 %3641
  %v3643 = vsel %vm239, %v3621, 0.0
  %3644 = vadd.xlane.f32.xlu0 %v3643
  %v3645 = vpop.xlane.xlu0 %3644
  %v3646 = vsel %vm239, %v3622, 0.0
  %3647 = vadd.xlane.f32.xlu0 %v3646
  %v3648 = vpop.xlane.xlu0 %3647
  %v3649 = vsel %vm239, %v3623, 0.0
  %3650 = vadd.xlane.f32.xlu0 %v3649
  %v3651 = vpop.xlane.xlu0 %3650
  %v3652 = vsel %vm239, %v3624, 0.0
  %3653 = vadd.xlane.f32.xlu0 %v3652
  %v3654 = vpop.xlane.xlu0 %3653
  %v3655 = vsel %vm239, %v3625, 0.0
  %3656 = vadd.xlane.f32.xlu0 %v3655
  %v3657 = vpop.xlane.xlu0 %3656
  %v3658 = vsel %vm239, %v3626, 0.0
  %3659 = vadd.xlane.f32.xlu0 %v3658
  %v3660 = vpop.xlane.xlu0 %3659
  %v3661 = vsel %vm239, %v3627, 0.0
  %3662 = vadd.xlane.f32.xlu0 %v3661
  %v3663 = vpop.xlane.xlu0 %3662
  %v3664 = vsel %vm239, %v3628, 0.0
  %3665 = vadd.xlane.f32.xlu0 %v3664
  %v3666 = vpop.xlane.xlu0 %3665
  %v3667 = vsel %vm239, %v3629, 0.0
  %3668 = vadd.xlane.f32.xlu0 %v3667
  %v3669 = vpop.xlane.xlu0 %3668
  %v3670 = vsel %vm239, %v3630, 0.0
  %3671 = vadd.xlane.f32.xlu0 %v3670
  %v3672 = vpop.xlane.xlu0 %3671
  %v3673 = vsel %vm239, %v3631, 0.0
  %3674 = vadd.xlane.f32.xlu0 %v3673
  %v3675 = vpop.xlane.xlu0 %3674
  %v3676 = vsel %vm239, %v3632, 0.0
  %3677 = vadd.xlane.f32.xlu0 %v3676
  %v3678 = vpop.xlane.xlu0 %3677
  %v3679 = vsel %vm239, %v3633, 0.0
  %3680 = vadd.xlane.f32.xlu0 %v3679
  %v3681 = vpop.xlane.xlu0 %3680
  %v3698 = vlaneseq
  %v3699 = vshrl.u32 %v3698, 7
  %v3700 = vsub.s32 %v337, %v3699
  %v3701 = vrot.slane %v3636, %v3700
  %v3702 = vlaneseq
  %v3703 = vshrl.u32 %v3702, 7
  %v3704 = vsub.s32 %v625, %v3703
  %v3705 = vrot.slane %v3639, %v3704
  %v3706 = vsel %vm630, %v3705, %v3701
  %v3707 = vlaneseq
  %v3708 = vshrl.u32 %v3707, 7
  %v3709 = vsub.s32 %v337, %v3708
  %v3710 = vrot.slane %v3642, %v3709
  %v3711 = vlaneseq
  %v3712 = vshrl.u32 %v3711, 7
  %v3713 = vsub.s32 %v625, %v3712
  %v3714 = vrot.slane %v3645, %v3713
  %v3715 = vsel %vm630, %v3714, %v3710
  %v3716 = vlaneseq
  %v3717 = vshrl.u32 %v3716, 7
  %v3718 = vsub.s32 %v337, %v3717
  %v3719 = vrot.slane %v3648, %v3718
  %v3720 = vlaneseq
  %v3721 = vshrl.u32 %v3720, 7
  %v3722 = vsub.s32 %v625, %v3721
  %v3723 = vrot.slane %v3651, %v3722
  %v3724 = vsel %vm630, %v3723, %v3719
  %v3725 = vlaneseq
  %v3726 = vshrl.u32 %v3725, 7
  %v3727 = vsub.s32 %v337, %v3726
  %v3728 = vrot.slane %v3654, %v3727
  %v3729 = vlaneseq
  %v3730 = vshrl.u32 %v3729, 7
  %v3731 = vsub.s32 %v625, %v3730
  %v3732 = vrot.slane %v3657, %v3731
  %v3733 = vsel %vm630, %v3732, %v3728
  %v3734 = vlaneseq
  %v3735 = vshrl.u32 %v3734, 7
  %v3736 = vsub.s32 %v337, %v3735
  %v3737 = vrot.slane %v3660, %v3736
  %v3738 = vlaneseq
  %v3739 = vshrl.u32 %v3738, 7
  %v3740 = vsub.s32 %v625, %v3739
  %v3741 = vrot.slane %v3663, %v3740
  %v3742 = vsel %vm630, %v3741, %v3737
  %v3743 = vlaneseq
  %v3744 = vshrl.u32 %v3743, 7
  %v3745 = vsub.s32 %v337, %v3744
  %v3746 = vrot.slane %v3666, %v3745
  %v3747 = vlaneseq
  %v3748 = vshrl.u32 %v3747, 7
  %v3749 = vsub.s32 %v625, %v3748
  %v3750 = vrot.slane %v3669, %v3749
  %v3751 = vsel %vm630, %v3750, %v3746
  %v3752 = vlaneseq
  %v3753 = vshrl.u32 %v3752, 7
  %v3754 = vsub.s32 %v337, %v3753
  %v3755 = vrot.slane %v3672, %v3754
  %v3756 = vlaneseq
  %v3757 = vshrl.u32 %v3756, 7
  %v3758 = vsub.s32 %v625, %v3757
  %v3759 = vrot.slane %v3675, %v3758
  %v3760 = vsel %vm630, %v3759, %v3755
  %v3761 = vlaneseq
  %v3762 = vshrl.u32 %v3761, 7
  %v3763 = vsub.s32 %v337, %v3762
  %v3764 = vrot.slane %v3678, %v3763
  %v3765 = vlaneseq
  %v3766 = vshrl.u32 %v3765, 7
  %v3767 = vsub.s32 %v625, %v3766
  %v3768 = vrot.slane %v3681, %v3767
  %v3769 = vsel %vm630, %v3768, %v3764
  %v3770 = vsel %vm695, %v3715, %v3706
  %v3771 = vsel %vm697, %v3724, %v3770
  %v3772 = vsel %vm699, %v3733, %v3771
  %v3773 = vsel %vm701, %v3742, %v3772
  %v3774 = vsel %vm703, %v3751, %v3773
  %v3775 = vsel %vm705, %v3760, %v3774
  %v3776 = vsel %vm707, %v3769, %v3775
  %v3778 = vsel %vm338, %v3776, -1e+30
  %v3779 = vsel %vm711, %v3778, -inf
  %3780 = vmax.xlane.f32.xlu0 %v3779
  %v3781 = vpop.xlane.xlu0 %3780
  %v3782 = vsub.f32 %v3778, %v3781
  %v3783 = vmul.f32 %v3782, 1.442695
  %v3784 = vpow.pop %v3783
  %v3785 = vsel %vm711, %v3784, 0.0
  %3786 = vadd.xlane.f32.xlu0 %v3785
  %v3787 = vpop.xlane.xlu0 %3786
  %v3788 = vrcp.pop %v3787
  %v3789 = vmul.f32 %v3784, %v3788
  %v3790 = vlaneseq
  %v3791 = vshrl.u32 %v3790, 7
  %v3792 = vsub.s32 0, %v3791
  %v3793 = vrot.slane %v3789, %v3792
  %3795 = vbcast.lane.b32.xlu0 %v3793, 256
  %v3796 = vpop.permute.xlu0 %3795
  %s3798 = sor.u32 256, 8
  %3799 = vbcast.lane.b32.xlu0 %v3793, %s3798
  %v3800 = vpop.permute.xlu0 %3799
  %v3801 = vlaneseq
  %v3802 = vshrl.u32 %v3801, 7
  %v3803 = vsub.s32 1, %v3802
  %v3804 = vrot.slane %v3789, %v3803
  %3806 = vbcast.lane.b32.xlu0 %v3804, 256
  %v3807 = vpop.permute.xlu0 %3806
  %s3809 = sor.u32 256, 8
  %3810 = vbcast.lane.b32.xlu0 %v3804, %s3809
  %v3811 = vpop.permute.xlu0 %3810
  %v3812 = vlaneseq
  %v3813 = vshrl.u32 %v3812, 7
  %v3814 = vsub.s32 2, %v3813
  %v3815 = vrot.slane %v3789, %v3814
  %3817 = vbcast.lane.b32.xlu0 %v3815, 256
  %v3818 = vpop.permute.xlu0 %3817
  %s3820 = sor.u32 256, 8
  %3821 = vbcast.lane.b32.xlu0 %v3815, %s3820
  %v3822 = vpop.permute.xlu0 %3821
  %v3823 = vlaneseq
  %v3824 = vshrl.u32 %v3823, 7
  %v3825 = vsub.s32 3, %v3824
  %v3826 = vrot.slane %v3789, %v3825
  %3828 = vbcast.lane.b32.xlu0 %v3826, 256
  %v3829 = vpop.permute.xlu0 %3828
  %s3831 = sor.u32 256, 8
  %3832 = vbcast.lane.b32.xlu0 %v3826, %s3831
  %v3833 = vpop.permute.xlu0 %3832
  %v3834 = vlaneseq
  %v3835 = vshrl.u32 %v3834, 7
  %v3836 = vsub.s32 4, %v3835
  %v3837 = vrot.slane %v3789, %v3836
  %3839 = vbcast.lane.b32.xlu0 %v3837, 256
  %v3840 = vpop.permute.xlu0 %3839
  %s3842 = sor.u32 256, 8
  %3843 = vbcast.lane.b32.xlu0 %v3837, %s3842
  %v3844 = vpop.permute.xlu0 %3843
  %v3845 = vlaneseq
  %v3846 = vshrl.u32 %v3845, 7
  %v3847 = vsub.s32 5, %v3846
  %v3848 = vrot.slane %v3789, %v3847
  %3850 = vbcast.lane.b32.xlu0 %v3848, 256
  %v3851 = vpop.permute.xlu0 %3850
  %s3853 = sor.u32 256, 8
  %3854 = vbcast.lane.b32.xlu0 %v3848, %s3853
  %v3855 = vpop.permute.xlu0 %3854
  %v3856 = vlaneseq
  %v3857 = vshrl.u32 %v3856, 7
  %v3858 = vsub.s32 6, %v3857
  %v3859 = vrot.slane %v3789, %v3858
  %3861 = vbcast.lane.b32.xlu0 %v3859, 256
  %v3862 = vpop.permute.xlu0 %3861
  %s3864 = sor.u32 256, 8
  %3865 = vbcast.lane.b32.xlu0 %v3859, %s3864
  %v3866 = vpop.permute.xlu0 %3865
  %v3867 = vlaneseq
  %v3868 = vshrl.u32 %v3867, 7
  %v3869 = vsub.s32 7, %v3868
  %v3870 = vrot.slane %v3789, %v3869
  %3872 = vbcast.lane.b32.xlu0 %v3870, 256
  %v3873 = vpop.permute.xlu0 %3872
  %s3875 = sor.u32 256, 8
  %3876 = vbcast.lane.b32.xlu0 %v3870, %s3875
  %v3877 = vpop.permute.xlu0 %3876
  %v3878 = vld [vmem:[#allocation3] sm:$0xff]
  %v3879 = vld [vmem:[#allocation3 + $0x8] sm:$0xff]
  %v3880 = vld [vmem:[#allocation3 + $0x10] sm:$0xff]
  %v3881 = vld [vmem:[#allocation3 + $0x18] sm:$0xff]
  %v3882 = vld [vmem:[#allocation3 + $0x20] sm:$0xff]
  %v3883 = vld [vmem:[#allocation3 + $0x28] sm:$0xff]
  %v3884 = vld [vmem:[#allocation3 + $0x30] sm:$0xff]
  %v3885 = vld [vmem:[#allocation3 + $0x38] sm:$0xff]
  %v3886 = vld [vmem:[#allocation3 + $0x40] sm:$0xff]
  %v3887 = vld [vmem:[#allocation3 + $0x48] sm:$0xff]
  %v3888 = vld [vmem:[#allocation3 + $0x50] sm:$0xff]
  %v3889 = vld [vmem:[#allocation3 + $0x58] sm:$0xff]
  %v3890 = vld [vmem:[#allocation3 + $0x60] sm:$0xff]
  %v3891 = vld [vmem:[#allocation3 + $0x68] sm:$0xff]
  %v3892 = vld [vmem:[#allocation3 + $0x70] sm:$0xff]
  %v3893 = vld [vmem:[#allocation3 + $0x78] sm:$0xff]
  %v3894 = vmul.f32 %v3796, %v3878
  %v3895 = vmul.f32 %v3800, %v3879
  %v3896 = vmul.f32 %v3807, %v3880
  %v3897 = vmul.f32 %v3811, %v3881
  %v3898 = vmul.f32 %v3818, %v3882
  %v3899 = vmul.f32 %v3822, %v3883
  %v3900 = vmul.f32 %v3829, %v3884
  %v3901 = vmul.f32 %v3833, %v3885
  %v3902 = vmul.f32 %v3840, %v3886
  %v3903 = vmul.f32 %v3844, %v3887
  %v3904 = vmul.f32 %v3851, %v3888
  %v3905 = vmul.f32 %v3855, %v3889
  %v3906 = vmul.f32 %v3862, %v3890
  %v3907 = vmul.f32 %v3866, %v3891
  %v3908 = vmul.f32 %v3873, %v3892
  %v3909 = vmul.f32 %v3877, %v3893
  %v3910 = vsel %vm239, %v3894, 0.0
  %v3911 = vsel %vm239, %v3895, 0.0
  %v3912 = vadd.f32 %v3910, %v3911
  %v3913 = vrot.slane %v3912, 4
  %v3914 = vadd.f32 %v3912, %v3913
  %v3915 = vrot.slane %v3914, 2
  %v3916 = vadd.f32 %v3914, %v3915
  %v3917 = vrot.slane %v3916, 1
  %v3918 = vadd.f32 %v3916, %v3917
  %v3919 = vsel %vm239, %v3896, 0.0
  %v3920 = vsel %vm239, %v3897, 0.0
  %v3921 = vadd.f32 %v3919, %v3920
  %v3922 = vrot.slane %v3921, 4
  %v3923 = vadd.f32 %v3921, %v3922
  %v3924 = vrot.slane %v3923, 2
  %v3925 = vadd.f32 %v3923, %v3924
  %v3926 = vrot.slane %v3925, 1
  %v3927 = vadd.f32 %v3925, %v3926
  %v3928 = vsel %vm239, %v3898, 0.0
  %v3929 = vsel %vm239, %v3899, 0.0
  %v3930 = vadd.f32 %v3928, %v3929
  %v3931 = vrot.slane %v3930, 4
  %v3932 = vadd.f32 %v3930, %v3931
  %v3933 = vrot.slane %v3932, 2
  %v3934 = vadd.f32 %v3932, %v3933
  %v3935 = vrot.slane %v3934, 1
  %v3936 = vadd.f32 %v3934, %v3935
  %v3937 = vsel %vm239, %v3900, 0.0
  %v3938 = vsel %vm239, %v3901, 0.0
  %v3939 = vadd.f32 %v3937, %v3938
  %v3940 = vrot.slane %v3939, 4
  %v3941 = vadd.f32 %v3939, %v3940
  %v3942 = vrot.slane %v3941, 2
  %v3943 = vadd.f32 %v3941, %v3942
  %v3944 = vrot.slane %v3943, 1
  %v3945 = vadd.f32 %v3943, %v3944
  %v3946 = vsel %vm239, %v3902, 0.0
  %v3947 = vsel %vm239, %v3903, 0.0
  %v3948 = vadd.f32 %v3946, %v3947
  %v3949 = vrot.slane %v3948, 4
  %v3950 = vadd.f32 %v3948, %v3949
  %v3951 = vrot.slane %v3950, 2
  %v3952 = vadd.f32 %v3950, %v3951
  %v3953 = vrot.slane %v3952, 1
  %v3954 = vadd.f32 %v3952, %v3953
  %v3955 = vsel %vm239, %v3904, 0.0
  %v3956 = vsel %vm239, %v3905, 0.0
  %v3957 = vadd.f32 %v3955, %v3956
  %v3958 = vrot.slane %v3957, 4
  %v3959 = vadd.f32 %v3957, %v3958
  %v3960 = vrot.slane %v3959, 2
  %v3961 = vadd.f32 %v3959, %v3960
  %v3962 = vrot.slane %v3961, 1
  %v3963 = vadd.f32 %v3961, %v3962
  %v3964 = vsel %vm239, %v3906, 0.0
  %v3965 = vsel %vm239, %v3907, 0.0
  %v3966 = vadd.f32 %v3964, %v3965
  %v3967 = vrot.slane %v3966, 4
  %v3968 = vadd.f32 %v3966, %v3967
  %v3969 = vrot.slane %v3968, 2
  %v3970 = vadd.f32 %v3968, %v3969
  %v3971 = vrot.slane %v3970, 1
  %v3972 = vadd.f32 %v3970, %v3971
  %v3973 = vsel %vm239, %v3908, 0.0
  %v3974 = vsel %vm239, %v3909, 0.0
  %v3975 = vadd.f32 %v3973, %v3974
  %v3976 = vrot.slane %v3975, 4
  %v3977 = vadd.f32 %v3975, %v3976
  %v3978 = vrot.slane %v3977, 2
  %v3979 = vadd.f32 %v3977, %v3978
  %v3980 = vrot.slane %v3979, 1
  %v3981 = vadd.f32 %v3979, %v3980
  %s3982 = scalar_lea.vmem %s0, 40
  %v3983 = vld [vmem:[%s3982] sm:$0xff]
  %v3984 = vadd.f32 %v3983, %v3508
  %v3985 = vxor.u32 %v3984, 2147483648
  %v3986 = vmul.f32 %v3985, 1.442695
  %v3987 = vpow.pop %v3986
  %v3988 = vadd.f32 %v3987, 1.0
  %v3989 = vrcp.pop %v3988
  %v3990 = vmul.f32 1.0, %v3989
  %v3991 = vtanh.pop %v3984
  %v4000 = vsel %vm695, %v3927, %v3918
  %v4001 = vsel %vm697, %v3936, %v4000
  %v4002 = vsel %vm699, %v3945, %v4001
  %v4003 = vsel %vm701, %v3954, %v4002
  %v4004 = vsel %vm703, %v3963, %v4003
  %v4005 = vsel %vm705, %v3972, %v4004
  %v4006 = vsel %vm707, %v3981, %v4005
  %v4008 = vmul.f32 %v3990, %v4006
  %4010 = vrot.lane.b32.xlu0 %v3991, 64
  %v4011 = vpop.permute.xlu0 %4010
  %v4013 = vmul.f32 %v3990, %v4011
  %4015 = vrot.lane.b32.xlu0 %v4013, 96
  %v4016 = vpop.permute.xlu0 %4015
  %v4018 = vadd.f32 %v4008, %v4016
  %v4019 = vtanh.pop %v4018
  %4021 = vrot.lane.b32.xlu0 %v4019, 64
  %v4022 = vpop.permute.xlu0 %4021
  %v4024 = vmul.f32 %v3990, %v4022
  %4026 = vrot.lane.b32.xlu0 %v4024, 64
  %v4027 = vpop.permute.xlu0 %4026
  %s4029 = scalar_lea.vmem [#allocation4], 40
  %4030 = vst.msk [vmem:[%s4029] sm:$0xff] %vm239, %v4027
  %s4031 = scalar_lea.vmem [#allocation5], 40
  %4032 = vst.msk [vmem:[%s4031] sm:$0xff] %vm711, %v3789
  %v4033 = vld [vmem:[#allocation4] sm:$0xff]
  %v4034 = vld [vmem:[#allocation4 + $0x8] sm:$0xff]
  %v4035 = vld [vmem:[#allocation4 + $0x10] sm:$0xff]
  %v4036 = vld [vmem:[#allocation4 + $0x18] sm:$0xff]
  %v4037 = vld [vmem:[#allocation4 + $0x20] sm:$0xff]
  %v4038 = vld [vmem:[#allocation4 + $0x28] sm:$0xff]
  %v4039 = vld [vmem:[%s3 + $0xc0] sm:$0xff]
  %v4040 = vld [vmem:[%s3 + $0xd0] sm:$0xff]
  %v4041 = vld [vmem:[%s3 + $0xe0] sm:$0xff]
  %v4042 = vld [vmem:[%s3 + $0xf0] sm:$0xff]
  %v4043 = vld [vmem:[%s4 + $0x2] ss:$0 sm:$0xff]
  %v4045 = vsel %vm239, %v4033, 0
  %v4048 = vsel %vm239, %v4034, 0
  %v4051 = vsel %vm239, %v4035, 0
  %v4054 = vsel %vm239, %v4036, 0
  %v4057 = vsel %vm239, %v4037, 0
  %v4060 = vsel %vm239, %v4038, 0
  %4062 = vmatprep.subr.mxu0 0.0
  %4063 = vmatpush1.msra.mxu0 %v4039
  %4064 = vmatprep.subr.mxu0 0.0
  %4065 = vmatpush1.msra.mxu0 %v4040
  %4066 = vmatprep.subr.mxu0 0.0
  %4067 = vmatpush1.msra.mxu0 %v4041
  %4068 = vmatprep.subr.mxu0 0.0
  %4069 = vmatpush1.msra.mxu0 %v4042
  %4070 = vmatprep.subr.mxu0 0.0
  %4071 = vmatpush1.msra.mxu0 0.0
  %4072 = vmatprep.subr.mxu0 0.0
  %4073 = vmatpush1.msra.mxu0 0.0
  %4074 = vmatprep.subr.mxu0 0.0
  %4075 = vmatpush1.msra.mxu0 0.0
  %4076 = vmatprep.subr.mxu0 0.0
  %4077 = vmatpush1.msra.mxu0 0.0
  %4078 = vmatprep.subr.mxu0 0.0
  %4079 = vmatpush1.msra.mxu0 0.0
  %4080 = vmatprep.subr.mxu0 0.0
  %4081 = vmatpush1.msra.mxu0 0.0
  %4082 = vmatprep.subr.mxu0 0.0
  %4083 = vmatpush1.msra.mxu0 0.0
  %4084 = vmatprep.subr.mxu0 0.0
  %4085 = vmatpush1.msra.mxu0 0.0
  %4086 = vmatprep.subr.mxu0 0.0
  %4087 = vmatpush1.msra.mxu0 0.0
  %4088 = vmatprep.subr.mxu0 0.0
  %4089 = vmatpush1.msra.mxu0 0.0
  %4090 = vmatprep.subr.mxu0 0.0
  %4091 = vmatpush1.msra.mxu0 0.0
  %4092 = vmatprep.subr.mxu0 0.0
  %4093 = vmatpush1.msra.mxu0 0.0
  %4094 = vmatprep.subr.mxu0 0.0
  %4095 = vmatpush1.msra.mxu0 0.0
  %4096 = vmatprep.subr.mxu0 0.0
  %4097 = vmatpush1.msra.mxu0 0.0
  %4098 = vmatprep.subr.mxu0 0.0
  %4099 = vmatpush1.msra.mxu0 0.0
  %4100 = vmatprep.subr.mxu0 0.0
  %4101 = vmatpush1.msra.mxu0 0.0
  %4102 = vmatprep.subr.mxu0 0.0
  %4103 = vmatpush1.msra.mxu0 0.0
  %4104 = vmatprep.subr.mxu0 0.0
  %4105 = vmatpush1.msra.mxu0 0.0
  %4106 = vmatprep.subr.mxu0 0.0
  %4107 = vmatpush1.msra.mxu0 0.0
  %4108 = vmatprep.subr.mxu0 0.0
  %4109 = vmatpush1.msra.mxu0 0.0
  %4110 = vmatprep.subr.mxu0 0.0
  %4111 = vmatpush1.msra.mxu0 0.0
  %4112 = vmatprep.subr.mxu0 0.0
  %4113 = vmatpush1.msra.mxu0 0.0
  %4114 = vmatprep.subr.mxu0 0.0
  %4115 = vmatpush1.msra.mxu0 0.0
  %4116 = vmatprep.subr.mxu0 0.0
  %4117 = vmatpush1.msra.mxu0 0.0
  %4118 = vmatprep.subr.mxu0 0.0
  %4119 = vmatpush1.msra.mxu0 0.0
  %4120 = vmatprep.subr.mxu0 0.0
  %4121 = vmatpush1.msra.mxu0 0.0
  %4122 = vmatprep.subr.mxu0 0.0
  %4123 = vmatpush1.msra.mxu0 0.0
  %4124 = vmatprep.subr.mxu0 0.0
  %4125 = vmatpush1.msra.mxu0 0.0
  %4126 = vmatprep.mubr.f32.mxu0 0.0
  %4127 = vmatmul.mubr.f32.gmra.mrb[0].mxu0 %v4045
  %v4128 = vpop.f32.mrb[0].mxu0
  %v4129 = vadd.f32 %v4043, %v4128
  %v4130 = vpop.f32.mrb[0].mxu0
  %4131 = vmatprep.mubr.f32.mxu0 0.0
  %4132 = vmatmul.mubr.f32.gmra.mrb[0].mxu0 %v4048
  %v4133 = vpop.f32.mrb[0].mxu0
  %v4134 = vadd.f32 %v4043, %v4133
  %v4135 = vpop.f32.mrb[0].mxu0
  %4136 = vmatprep.mubr.f32.mxu0 0.0
  %4137 = vmatmul.mubr.f32.gmra.mrb[0].mxu0 %v4051
  %v4138 = vpop.f32.mrb[0].mxu0
  %v4139 = vadd.f32 %v4043, %v4138
  %v4140 = vpop.f32.mrb[0].mxu0
  %4141 = vmatprep.mubr.f32.mxu0 0.0
  %4142 = vmatmul.mubr.f32.gmra.mrb[0].mxu0 %v4054
  %v4143 = vpop.f32.mrb[0].mxu0
  %v4144 = vadd.f32 %v4043, %v4143
  %v4145 = vpop.f32.mrb[0].mxu0
  %4146 = vmatprep.mubr.f32.mxu0 0.0
  %4147 = vmatmul.mubr.f32.gmra.mrb[0].mxu0 %v4057
  %v4148 = vpop.f32.mrb[0].mxu0
  %v4149 = vadd.f32 %v4043, %v4148
  %v4150 = vpop.f32.mrb[0].mxu0
  %4151 = vmatprep.mubr.f32.mxu0 0.0
  %4152 = vmatmul.mubr.f32.gmra.mrb[0].mxu0 %v4060
  %v4153 = vpop.f32.mrb[0].mxu0
  %v4154 = vadd.f32 %v4043, %v4153
  %v4155 = vpop.f32.mrb[0].mxu0
  %4156 = vdwg.mxu0
  %v4157 = vsel %vm45, %v4129, -inf
  %4158 = vmax.xlane.f32.xlu0 %v4157
  %v4159 = vpop.xlane.xlu0 %4158
  %v4160 = vsel %vm45, %v4134, -inf
  %4161 = vmax.xlane.f32.xlu0 %v4160
  %v4162 = vpop.xlane.xlu0 %4161
  %v4163 = vsel %vm45, %v4139, -inf
  %4164 = vmax.xlane.f32.xlu0 %v4163
  %v4165 = vpop.xlane.xlu0 %4164
  %v4166 = vsel %vm45, %v4144, -inf
  %4167 = vmax.xlane.f32.xlu0 %v4166
  %v4168 = vpop.xlane.xlu0 %4167
  %v4169 = vsel %vm45, %v4149, -inf
  %4170 = vmax.xlane.f32.xlu0 %v4169
  %v4171 = vpop.xlane.xlu0 %4170
  %v4172 = vsel %vm45, %v4154, -inf
  %4173 = vmax.xlane.f32.xlu0 %v4172
  %v4174 = vpop.xlane.xlu0 %4173
  %v4175 = vsub.f32 %v4129, %v4159
  %v4176 = vsub.f32 %v4134, %v4162
  %v4177 = vsub.f32 %v4139, %v4165
  %v4178 = vsub.f32 %v4144, %v4168
  %v4179 = vsub.f32 %v4149, %v4171
  %v4180 = vsub.f32 %v4154, %v4174
  %v4181 = vmul.f32 %v4175, 1.442695
  %v4182 = vpow.pop %v4181
  %v4183 = vmul.f32 %v4176, 1.442695
  %v4184 = vpow.pop %v4183
  %v4185 = vmul.f32 %v4177, 1.442695
  %v4186 = vpow.pop %v4185
  %v4187 = vmul.f32 %v4178, 1.442695
  %v4188 = vpow.pop %v4187
  %v4189 = vmul.f32 %v4179, 1.442695
  %v4190 = vpow.pop %v4189
  %v4191 = vmul.f32 %v4180, 1.442695
  %v4192 = vpow.pop %v4191
  %v4193 = vsel %vm45, %v4182, 0.0
  %4194 = vadd.xlane.f32.xlu0 %v4193
  %v4195 = vpop.xlane.xlu0 %4194
  %v4196 = vsel %vm45, %v4184, 0.0
  %4197 = vadd.xlane.f32.xlu0 %v4196
  %v4198 = vpop.xlane.xlu0 %4197
  %v4199 = vsel %vm45, %v4186, 0.0
  %4200 = vadd.xlane.f32.xlu0 %v4199
  %v4201 = vpop.xlane.xlu0 %4200
  %v4202 = vsel %vm45, %v4188, 0.0
  %4203 = vadd.xlane.f32.xlu0 %v4202
  %v4204 = vpop.xlane.xlu0 %4203
  %v4205 = vsel %vm45, %v4190, 0.0
  %4206 = vadd.xlane.f32.xlu0 %v4205
  %v4207 = vpop.xlane.xlu0 %4206
  %v4208 = vsel %vm45, %v4192, 0.0
  %4209 = vadd.xlane.f32.xlu0 %v4208
  %v4210 = vpop.xlane.xlu0 %4209
  %v4211 = vlog2.pop %v4195
  %v4212 = vmul.f32 %v4211, 0.6931472
  %v4213 = vlog2.pop %v4198
  %v4214 = vmul.f32 %v4213, 0.6931472
  %v4215 = vlog2.pop %v4201
  %v4216 = vmul.f32 %v4215, 0.6931472
  %v4217 = vlog2.pop %v4204
  %v4218 = vmul.f32 %v4217, 0.6931472
  %v4219 = vlog2.pop %v4207
  %v4220 = vmul.f32 %v4219, 0.6931472
  %v4221 = vlog2.pop %v4210
  %v4222 = vmul.f32 %v4221, 0.6931472
  %v4223 = vsub.f32 %v4175, %v4212
  %v4224 = vsub.f32 %v4176, %v4214
  %v4225 = vsub.f32 %v4177, %v4216
  %v4226 = vsub.f32 %v4178, %v4218
  %v4227 = vsub.f32 %v4179, %v4220
  %v4228 = vsub.f32 %v4180, %v4222
  %v4229 = vld [vmem:[#allocation5] sm:$0xff]
  %v4230 = vld [vmem:[#allocation5 + $0x8] sm:$0xff]
  %v4231 = vld [vmem:[#allocation5 + $0x10] sm:$0xff]
  %v4232 = vld [vmem:[#allocation5 + $0x18] sm:$0xff]
  %v4233 = vld [vmem:[#allocation5 + $0x20] sm:$0xff]
  %v4234 = vld [vmem:[#allocation5 + $0x28] sm:$0xff]
  %4235 = vrot.lane.b32.xlu0 %v4033, 64
  %v4236 = vpop.permute.xlu0 %4235
  %4237 = vrot.lane.b32.xlu0 %v4034, 64
  %v4238 = vpop.permute.xlu0 %4237
  %4239 = vrot.lane.b32.xlu0 %v4035, 64
  %v4240 = vpop.permute.xlu0 %4239
  %4241 = vrot.lane.b32.xlu0 %v4036, 64
  %v4242 = vpop.permute.xlu0 %4241
  %4243 = vrot.lane.b32.xlu0 %v4037, 64
  %v4244 = vpop.permute.xlu0 %4243
  %4245 = vrot.lane.b32.xlu0 %v4038, 64
  %v4246 = vpop.permute.xlu0 %4245
  %4259 = vrot.lane.b32.xlu0 %v4229, 96
  %v4260 = vpop.permute.xlu0 %4259
  %4261 = vrot.lane.b32.xlu0 %v4230, 96
  %v4262 = vpop.permute.xlu0 %4261
  %4263 = vrot.lane.b32.xlu0 %v4231, 96
  %v4264 = vpop.permute.xlu0 %4263
  %4265 = vrot.lane.b32.xlu0 %v4232, 96
  %v4266 = vpop.permute.xlu0 %4265
  %4267 = vrot.lane.b32.xlu0 %v4233, 96
  %v4268 = vpop.permute.xlu0 %4267
  %4269 = vrot.lane.b32.xlu0 %v4234, 96
  %v4270 = vpop.permute.xlu0 %4269
  %v4277 = vsel %vm45, %v4223, %v4236
  %v4278 = vsel %vm45, %v4224, %v4238
  %v4279 = vsel %vm45, %v4225, %v4240
  %v4280 = vsel %vm45, %v4226, %v4242
  %v4281 = vsel %vm45, %v4227, %v4244
  %v4282 = vsel %vm45, %v4228, %v4246
  %vm4283 = vcmask 785408
  %v4284 = vsel %vm4283, %v4277, %v4260
  %v4285 = vsel %vm4283, %v4278, %v4262
  %v4286 = vsel %vm4283, %v4279, %v4264
  %v4287 = vsel %vm4283, %v4280, %v4266
  %v4288 = vsel %vm4283, %v4281, %v4268
  %v4289 = vsel %vm4283, %v4282, %v4270
  %vm4290 = vcmask 916480
  %v4291 = vsel %vm4290, %v4284, 0.0
  %v4292 = vsel %vm4290, %v4285, 0.0
  %v4293 = vsel %vm4290, %v4286, 0.0
  %v4294 = vsel %vm4290, %v4287, 0.0
  %v4295 = vsel %vm4290, %v4288, 0.0
  %v4296 = vsel %vm4290, %v4289, 0.0
  %4297 = vst [vmem:[%s5] sm:$0xff] %v4291
  %4298 = vst [vmem:[%s5 + $0x8] sm:$0xff] %v4292
  %4299 = vst [vmem:[%s5 + $0x10] sm:$0xff] %v4293
  %4300 = vst [vmem:[%s5 + $0x18] sm:$0xff] %v4294
  %4301 = vst [vmem:[%s5 + $0x20] sm:$0xff] %v4295
  %4302 = vst [vmem:[%s5 + $0x28] sm:$0xff] %v4296
  // Predicated region
  $region22: #{attn_decoder_decode.1} parent=0 // pred_check
    _
  $region23: #{attn_decoder_decode.1} parent=0 // pred_check_branch
    %4304 = sbr.rel (0) target = $region25
  $region24: #{attn_decoder_decode.1} parent=0 // pred_region
    _
  $region25: #{attn_decoder_decode.1} parent=0 // pred_fallthru
    _
  // Predicated region
  $region26: #{attn_decoder_decode.1} parent=0 // pred_check
    _
  $region27: #{attn_decoder_decode.1} parent=0 // pred_check_branch
    %4306 = sbr.rel (0) target = $region29
  $region28: #{attn_decoder_decode.1} parent=0 // pred_region
    _
  $region29: #{attn_decoder_decode.1} parent=0 // pred_fallthru
    _

</llo_original>
